<compile_context>
chip_gen: v5e
topology: v5e:2x2
jax: 0.10.0
libtpu: 0.0.40
codegen_flags: <defaults>
</compile_context>

<pallas_src>
import functools

import numpy as np
import jax
import jax.numpy as jnp
from jax.experimental import pallas as pl
from jax.experimental.pallas import tpu as pltpu


def _round_up(v, m):
    return ((v + m - 1) // m) * m


def _silu(x):
    return x * jax.nn.sigmoid(x)


# ---------------------------------------------------------------------------
# Packed-slab layout.  All row offsets are multiples of 8 (aligned sublane
# slices in-kernel); each weight block keeps its bias in a spare lane.
# ---------------------------------------------------------------------------
def _slab_layout(c1, c, mid, ch, c2):
    lay = {}
    off = 0

    def add(name, nrows):
        nonlocal off
        lay[name] = off
        off += _round_up(nrows, 8)

    add("cv1", 4 * c)      # W (4c, 2c1)        | bias at lane 2c1
    add("c12", 4 * ch)     # W (4ch, 4c)        | bias at lane 4c
    add("cg", 2 * c)       # W (2c, 4ch)        | bias at lane 4ch
    add("cv4", 2 * mid)    # W (2mid, 2mid)     | bias at lane 2mid
    add("cv2", 2 * c2)     # splits at lanes 0 / 2c / 2c+2mid | bias at 2c+4mid
    add("p8", 4 * ch)      # 0/1 pair-sum+dup matrix (4ch, 8) | bias at lane 8
    add("dw5", 2 * c)      # (2c, 25)           | bias at lane 25
    add("dw7", 2 * c)      # (2c, 49)           | bias at lane 49
    add("sqz", 8)          # (8, 49) per-tap squeeze weights, duplicated rows
    add("m5", 5)           # column-validity masks, full H*W lanes
    add("m7", 7)
    add("msq", 7)
    return lay, _round_up(off, 8)


def _col_masks_np(W, HW, K, dil, pad):
    w_idx = np.arange(HW) % W
    rows = [((w_idx + j * dil - pad >= 0) & (w_idx + j * dil - pad < W))
            .astype(np.float32) for j in range(K)]
    return np.stack(rows, axis=0)


# ---------------------------------------------------------------------------
# In-kernel helpers
# ---------------------------------------------------------------------------
def _dw_conv_flat(x, w, b, masks, *, K, dil, pad, W):
    """Depthwise KxK conv (stride 1) on flattened (rows, H*W) spatial layout.

    Rows may stack {batch, channel}; the conv acts per row so batch stacking
    is safe.  Out-of-image rows land in the lane-aligned zero padding of the
    flat buffer; out-of-image columns are zeroed by per-column masks, applied
    once per kernel column instead of per tap.
    """
    R, HW = x.shape
    P = _round_up(pad * W + pad, 128)
    z = jnp.zeros((R, P), jnp.float32)
    xp = jnp.concatenate([z, x, z], axis=1)
    acc = jnp.zeros((R, HW), jnp.float32) + b
    for j in range(K):
        dj = j * dil - pad
        inner = None
        for i in range(K):
            di = i * dil - pad
            start = P + di * W + dj
            t = i * K + j
            term = xp[:, start:start + HW] * w[:, t:t + 1]
            inner = term if inner is None else inner + term
        acc = acc + inner * masks[j:j + 1, :]
    return acc


def _mea_kernel(x_ref, slab_ref, o_ref, *, lay, c1, c, mid, ch, c2, H, W):
    HW = H * W
    x = x_ref[0]                                    # (2*c1, HW) : two stacked images
    slab = slab_ref[...]                            # (R, HW)    : packed constants

    def blk(name, nrows, ncols, col0=0):
        r0 = lay[name]
        return slab[r0:r0 + nrows, col0:col0 + ncols]

    def dot(a, b):
        return jnp.dot(a, b, preferred_element_type=jnp.float32)

    # ---- cv1 (1x1 + folded BN + SiLU); out rows [y0_b0, y0_b1, y1_b0, y1_b1] --
    y = _silu(dot(blk("cv1", 4 * c, 2 * c1), x) + blk("cv1", 4 * c, 1, 2 * c1))
    y0 = y[:2 * c, :]                               # [y0_b0(c), y0_b1(c)]
    y1 = y[2 * c:, :]                               # [y1_b0(c), y1_b1(c)]

    # ---- conv0: depthwise 5x5, pad 2 (batch-stacked rows) ---------------------
    a1s = _dw_conv_flat(y1,
                        blk("dw5", 2 * c, 25), blk("dw5", 2 * c, 1, 25),
                        blk("m5", 5, HW), K=5, dil=1, pad=2, W=W)
    # ---- conv_spatial: depthwise 7x7, dilation 3, pad 9 -----------------------
    a2s = _dw_conv_flat(a1s,
                        blk("dw7", 2 * c, 49), blk("dw7", 2 * c, 1, 49),
                        blk("m7", 7, HW), K=7, dil=3, pad=9, W=W)

    # ---- conv1 & conv2 fused into one (4ch, 4c) matmul ------------------------
    sp = jnp.concatenate([a1s, a2s], axis=0)        # [a1s_b0, a1s_b1, a2s_b0, a2s_b1]
    attn_all = dot(blk("c12", 4 * ch, 4 * c), sp) + blk("c12", 4 * ch, 1, 4 * c)
    # rows: [attn1_b0(ch), attn2_b0(ch), attn1_b1(ch), attn2_b1(ch)]

    # ---- per-image channel mean / max over cat([attn1, attn2]) ----------------
    half0 = attn_all[:2 * ch, :]
    half1 = attn_all[2 * ch:, :]
    am4 = jnp.concatenate([
        jnp.mean(half0, axis=0, keepdims=True),
        jnp.mean(half1, axis=0, keepdims=True),
        jnp.max(half0, axis=0, keepdims=True),
        jnp.max(half1, axis=0, keepdims=True)], axis=0)   # [avg0, avg1, mx0, mx1]

    # ---- conv_squeeze: 7x7, 2->2, pad 3, on a duplicated 8-row stack ----------
    # One lane slice + one FMA per tap serves 2 images x 2 out-channels.
    K, pad = 7, 3
    P = _round_up(pad * W + pad, 128)
    am8 = jnp.concatenate([am4, am4], axis=0)              # (8, HW)
    z = jnp.zeros((8, P), jnp.float32)
    ap = jnp.concatenate([z, am8, z], axis=1)              # (8, HW + 2P)
    wsq = blk("sqz", 8, 49)
    msq = blk("msq", 7, HW)
    acc = jnp.zeros((8, HW), jnp.float32)
    for j in range(K):
        dj = j - pad
        inner = None
        for i in range(K):
            start = P + (i - pad) * W + dj
            t = i * K + j
            term = ap[:, start:start + HW] * wsq[:, t:t + 1]
            inner = term if inner is None else inner + term
        acc = acc + inner * msq[j:j + 1, :]
    # pair-sum of partials, duplication to per-attn-row gates, and bias add all
    # happen in one 0/1 matmul on the MXU, then sigmoid (EUP).
    gate = jax.nn.sigmoid(dot(blk("p8", 4 * ch, 8), acc) + blk("p8", 4 * ch, 1, 8))

    # ---- gated combine + conv (c//2 -> c) fused into one matmul ---------------
    gated = attn_all * gate
    attn_c = dot(blk("cg", 2 * c, 4 * ch), gated) + blk("cg", 2 * c, 1, 4 * ch)
    y1n = y1 * attn_c

    # self.m is empty for n=1.
    # TODO(synk): the 3x3 Conv blocks in self.m (only used when n > 1) are not
    # implemented in this fused kernel.

    # ---- cv4 (1x1 + folded BN + SiLU) -----------------------------------------
    y2 = _silu(dot(blk("cv4", 2 * mid, 2 * mid), y1n)
               + blk("cv4", 2 * mid, 1, 2 * mid))

    # ---- cv2 on cat([y0, y1n, y2]) via three split-weight matmuls -------------
    out = (dot(blk("cv2", 2 * c2, 2 * c), y0)
           + dot(blk("cv2", 2 * c2, 2 * mid, 2 * c), y1n)
           + dot(blk("cv2", 2 * c2, 2 * mid, 2 * c + 2 * mid), y2)
           + blk("cv2", 2 * c2, 1, 2 * c + 4 * mid))
    o_ref[0] = _silu(out)


# ---------------------------------------------------------------------------
# Host-side: pack every constant into one slab (done once at init).
# ---------------------------------------------------------------------------
def pack_mea_slab(params, *, c1, c, mid, ch, c2, H, W):
    HW = H * W
    assert HW % 128 == 0 and HW >= 128, "H*W must be a multiple of 128"
    lay, R = _slab_layout(c1, c, mid, ch, c2)
    slab = np.zeros((R, HW), np.float32)

    def g(k):
        return np.asarray(params[k], np.float32)

    def put(name, arr, col0=0):
        a = np.asarray(arr, np.float32)
        r0 = lay[name]
        slab[r0:r0 + a.shape[0], col0:col0 + a.shape[1]] = a

    # cv1: out rows [y0_b0, y0_b1, y1_b0, y1_b1]; in cols [x_b0 (c1), x_b1 (c1)]
    w, b = g("cv1_w"), g("cv1_b")
    Wb = np.zeros((4 * c, 2 * c1), np.float32)
    Bb = np.zeros((4 * c, 1), np.float32)
    Wb[0:c, 0:c1] = w[0:c];                  Bb[0:c] = b[0:c]
    Wb[c:2 * c, c1:2 * c1] = w[0:c];         Bb[c:2 * c] = b[0:c]
    Wb[2 * c:3 * c, 0:c1] = w[c:2 * c];      Bb[2 * c:3 * c] = b[c:2 * c]
    Wb[3 * c:4 * c, c1:2 * c1] = w[c:2 * c]; Bb[3 * c:4 * c] = b[c:2 * c]
    put("cv1", Wb); put("cv1", Bb, 2 * c1)

    # conv1 + conv2 fused: in cols [a1s_b0, a1s_b1, a2s_b0, a2s_b1];
    #                      out rows [attn1_b0, attn2_b0, attn1_b1, attn2_b1]
    w1, b1, w2, b2 = g("conv1_w"), g("conv1_b"), g("conv2_w"), g("conv2_b")
    Wb = np.zeros((4 * ch, 4 * c), np.float32)
    Bb = np.zeros((4 * ch, 1), np.float32)
    Wb[0:ch, 0:c] = w1;                  Bb[0:ch] = b1
    Wb[ch:2 * ch, 2 * c:3 * c] = w2;     Bb[ch:2 * ch] = b2
    Wb[2 * ch:3 * ch, c:2 * c] = w1;     Bb[2 * ch:3 * ch] = b1
    Wb[3 * ch:4 * ch, 3 * c:4 * c] = w2; Bb[3 * ch:4 * ch] = b2
    put("c12", Wb); put("c12", Bb, 4 * c)

    # conv (c//2 -> c), with the gated sum (attn1*s0 + attn2*s1) folded in
    w, b = g("conv_w"), g("conv_b")
    Wb = np.zeros((2 * c, 4 * ch), np.float32)
    Bb = np.zeros((2 * c, 1), np.float32)
    Wb[0:c, 0:ch] = w; Wb[0:c, ch:2 * ch] = w;                     Bb[0:c] = b
    Wb[c:2 * c, 2 * ch:3 * ch] = w; Wb[c:2 * c, 3 * ch:4 * ch] = w; Bb[c:2 * c] = b
    put("cg", Wb); put("cg", Bb, 4 * ch)

    # cv4: block-diagonal over the two stacked images
    w, b = g("cv4_w"), g("cv4_b")
    Wb = np.zeros((2 * mid, 2 * mid), np.float32)
    Bb = np.zeros((2 * mid, 1), np.float32)
    Wb[0:mid, 0:mid] = w; Wb[mid:, mid:] = w
    Bb[0:mid] = b; Bb[mid:] = b
    put("cv4", Wb); put("cv4", Bb, 2 * mid)

    # cv2: three block-diagonal splits (y0 | y1n | y2) + bias
    w, b = g("cv2_w"), g("cv2_b")

    def bdiag(ws):
        o = np.zeros((2 * c2, 2 * ws.shape[1]), np.float32)
        o[0:c2, 0:ws.shape[1]] = ws
        o[c2:, ws.shape[1]:] = ws
        return o

    put("cv2", bdiag(w[:, 0:c]), 0)
    put("cv2", bdiag(w[:, c:c + mid]), 2 * c)
    put("cv2", bdiag(w[:, c + mid:c + 2 * mid]), 2 * c + 2 * mid)
    Bb = np.zeros((2 * c2, 1), np.float32)
    Bb[0:c2] = b; Bb[c2:] = b
    put("cv2", Bb, 2 * c + 4 * mid)

    # p8: maps squeeze-conv partial rows
    #   [c0*avg_b0, c0*avg_b1, c0*mx_b0, c0*mx_b1, c1*avg_b0, c1*avg_b1, c1*mx_b0, c1*mx_b1]
    # to gate rows [s0_b0]*ch + [s1_b0]*ch + [s0_b1]*ch + [s1_b1]*ch, plus bias.
    bsq = g("convsq_b").reshape(2)
    P8 = np.zeros((4 * ch, 8), np.float32)
    Bb = np.zeros((4 * ch, 1), np.float32)
    for r in range(ch):
        P8[r, 0] = P8[r, 2] = 1.0;                   Bb[r] = bsq[0]
        P8[ch + r, 4] = P8[ch + r, 6] = 1.0;         Bb[ch + r] = bsq[1]
        P8[2 * ch + r, 1] = P8[2 * ch + r, 3] = 1.0; Bb[2 * ch + r] = bsq[0]
        P8[3 * ch + r, 5] = P8[3 * ch + r, 7] = 1.0; Bb[3 * ch + r] = bsq[1]
    put("p8", P8); put("p8", Bb, 8)

    # depthwise 5x5 / dilated 7x7: weights & biases tiled over the 2 images
    put("dw5", np.tile(g("conv0_w"), (2, 1)))
    put("dw5", np.tile(g("conv0_b"), (2, 1)), 25)
    put("dw7", np.tile(g("convsp_w"), (2, 1)))
    put("dw7", np.tile(g("convsp_b"), (2, 1)), 49)

    # conv_squeeze per-tap weights for padded rows [avg_b0, avg_b1, mx_b0, mx_b1] x2
    wsq = g("convsq_w").reshape(2, 2, 49)
    put("sqz", np.stack([wsq[0, 0], wsq[0, 0], wsq[0, 1], wsq[0, 1],
                         wsq[1, 0], wsq[1, 0], wsq[1, 1], wsq[1, 1]], axis=0))

    # column-validity masks (suppress horizontal wrap of the flat layout)
    put("m5", _col_masks_np(W, HW, 5, 1, 2))
    put("m7", _col_masks_np(W, HW, 7, 3, 9))
    put("msq", _col_masks_np(W, HW, 7, 1, 3))
    return jnp.asarray(slab)


# ---------------------------------------------------------------------------
# jit'ed wrapper: batch padded to even, pairs stacked on the channel axis.
# ---------------------------------------------------------------------------
@functools.partial(jax.jit, static_argnames=("c1", "c", "mid", "ch", "c2", "H", "W"))
def _mea_forward_jit(x, slab, *, c1, c, mid, ch, c2, H, W):
    N = x.shape[0]
    HW = H * W
    lay, R = _slab_layout(c1, c, mid, ch, c2)
    if slab.shape != (R, HW):
        raise ValueError(f"slab shape {slab.shape} != {(R, HW)}")

    Np = N + (N % 2)                       # pad batch to even (pairs on sublanes)
    xf = x.astype(jnp.float32)
    if Np != N:
        xf = jnp.concatenate([xf, jnp.zeros_like(xf[:1])], axis=0)
    xs = xf.reshape(Np // 2, 2 * c1, HW)   # NCHW == (channels, H*W); no transpose
    n_pairs = Np // 2

    matmul_macs = ((4 * c) * (2 * c1) + (4 * ch) * (4 * c) + (2 * c) * (4 * ch)
                   + (2 * mid) * (2 * mid) + (2 * c2) * (2 * c + 4 * mid)
                   + (4 * ch) * 8)
    dw_macs = (25 + 49) * (2 * c) + 49 * 8
    cost = pl.CostEstimate(
        flops=2 * HW * (matmul_macs + dw_macs) * n_pairs,
        transcendentals=HW * (4 * c + 4 * ch + 2 * mid + 2 * c2) * n_pairs,
        bytes_accessed=4 * (xs.size + R * HW + n_pairs * 2 * c2 * HW))

    out = pl.pallas_call(
        functools.partial(_mea_kernel, lay=lay, c1=c1, c=c, mid=mid, ch=ch,
                          c2=c2, H=H, W=W),
        grid=(n_pairs,),
        in_specs=[pl.BlockSpec((1, 2 * c1, HW), lambda n: (n, 0, 0)),
                  pl.BlockSpec((R, HW), lambda n: (0, 0))],
        out_specs=pl.BlockSpec((1, 2 * c2, HW), lambda n: (n, 0, 0)),
        out_shape=jax.ShapeDtypeStruct((n_pairs, 2 * c2, HW), jnp.float32),
        compiler_params=pltpu.CompilerParams(
            dimension_semantics=("parallel",)),
        cost_estimate=cost,
    )(xs, slab)
    out = out.reshape(Np, c2, H, W)
    return out[:N]


def mea_forward(x, slab, *, c1, c, mid, ch, c2, H, W):
    return _mea_forward_jit(x, slab, c1=c1, c=c, mid=mid, ch=ch, c2=c2, H=H, W=W)


# ---------------------------------------------------------------------------
# Deterministic synthetic parameters (eval-mode BatchNorm folded into the 1x1
# conv weights of every Conv(...) block; those convs have bias=False in torch).
# Weights stored channel-major (Cout, Cin); biases (Cout, 1); depthwise
# weights (C, K*K) with tap index i*K+j.
# ---------------------------------------------------------------------------
def _bn_fold(key, conv_w, eps=1e-5):
    cout = conv_w.shape[0]
    k1, k2, k3, k4 = jax.random.split(key, 4)
    gamma = 1.0 + 0.1 * jax.random.normal(k1, (cout,), jnp.float32)
    beta = 0.1 * jax.random.normal(k2, (cout,), jnp.float32)
    mean = 0.1 * jax.random.normal(k3, (cout,), jnp.float32)
    var = jnp.abs(jax.random.normal(k4, (cout,), jnp.float32)) + 0.5
    scale = gamma / jnp.sqrt(var + eps)
    w_fold = conv_w[:, :, 0, 0] * scale[:, None]
    b_fold = (beta - mean * scale).reshape(cout, 1)
    return w_fold, b_fold


def init_mea_params(key, c1, c2, e=0.5, scale=1):
    c = int(c2 * e)
    mid = int(c * scale)
    ch = c // 2
    ks = jax.random.split(key, 18)
    nrm = lambda k, s: 0.1 * jax.random.normal(k, s, jnp.float32)
    p = {}
    p["cv1_w"], p["cv1_b"] = _bn_fold(ks[1], nrm(ks[0], (2 * c, c1, 1, 1)))
    p["conv0_w"] = nrm(ks[2], (c, 1, 5, 5))[:, 0].reshape(c, 25)
    p["conv0_b"] = nrm(ks[3], (c,)).reshape(c, 1)
    p["convsp_w"] = nrm(ks[4], (c, 1, 7, 7))[:, 0].reshape(c, 49)
    p["convsp_b"] = nrm(ks[5], (c,)).reshape(c, 1)
    p["conv1_w"] = nrm(ks[6], (ch, c, 1, 1))[:, :, 0, 0]
    p["conv1_b"] = nrm(ks[7], (ch,)).reshape(ch, 1)
    p["conv2_w"] = nrm(ks[8], (ch, c, 1, 1))[:, :, 0, 0]
    p["conv2_b"] = nrm(ks[9], (ch,)).reshape(ch, 1)
    p["convsq_w"] = nrm(ks[10], (2, 2, 7, 7)).reshape(4, 49)
    p["convsq_b"] = nrm(ks[11], (2,)).reshape(2, 1)
    p["conv_w"] = nrm(ks[12], (c, ch, 1, 1))[:, :, 0, 0]
    p["conv_b"] = nrm(ks[13], (c,)).reshape(c, 1)
    p["cv4_w"], p["cv4_b"] = _bn_fold(ks[15], nrm(ks[14], (mid, mid, 1, 1)))
    p["cv2_w"], p["cv2_b"] = _bn_fold(ks[17], nrm(ks[16], (c2, c + 2 * mid, 1, 1)))
    return p, c, mid, ch


# ---------------------------------------------------------------------------
# Pure-JAX (XLA) reference of the same folded-BN eval-mode forward.
# ---------------------------------------------------------------------------
def mea_reference(x, params, *, c, mid, ch):
    hp = jax.lax.Precision.HIGHEST

    def conv1x1(h, w, b, act=False):
        y = jnp.einsum("oc,nchw->nohw", w, h, precision=hp) + b.reshape(1, -1, 1, 1)
        return _silu(y) if act else y

    def dwconv(h, w, b, K, dil, pad):
        C = h.shape[1]
        y = jax.lax.conv_general_dilated(
            h, w.reshape(C, 1, K, K), window_strides=(1, 1),
            padding=((pad, pad), (pad, pad)), rhs_dilation=(dil, dil),
            dimension_numbers=("NCHW", "OIHW", "NCHW"),
            feature_group_count=C, precision=hp)
        return y + b.reshape(1, -1, 1, 1)

    y = conv1x1(x, params["cv1_w"], params["cv1_b"], act=True)
    y0, y1 = y[:, :c], y[:, c:]
    a1s = dwconv(y1, params["conv0_w"], params["conv0_b"], 5, 1, 2)
    a2s = dwconv(a1s, params["convsp_w"], params["convsp_b"], 7, 3, 9)
    a1 = conv1x1(a1s, params["conv1_w"], params["conv1_b"])
    a2 = conv1x1(a2s, params["conv2_w"], params["conv2_b"])
    attn = jnp.concatenate([a1, a2], axis=1)
    avg = jnp.mean(attn, axis=1, keepdims=True)
    mx = jnp.max(attn, axis=1, keepdims=True)
    agg = jnp.concatenate([avg, mx], axis=1)
    sig = jax.lax.conv_general_dilated(
        agg, params["convsq_w"].reshape(2, 2, 7, 7), (1, 1),
        ((3, 3), (3, 3)), dimension_numbers=("NCHW", "OIHW", "NCHW"),
        precision=hp)
    sig = jax.nn.sigmoid(sig + params["convsq_b"].reshape(1, 2, 1, 1))
    attn_g = a1 * sig[:, 0:1] + a2 * sig[:, 1:2]
    attn_c = conv1x1(attn_g, params["conv_w"], params["conv_b"])
    y1n = y1 * attn_c
    y2 = conv1x1(y1n, params["cv4_w"], params["cv4_b"], act=True)
    ycat = jnp.concatenate([y0, y1n, y2], axis=1)
    return conv1x1(ycat, params["cv2_w"], params["cv2_b"], act=True)


if __name__ == "__main__":
    key = jax.random.PRNGKey(0)
    kx, kp = jax.random.split(key)
    N, c1, c2, H, W = 2, 8, 8, 16, 16
    x = jax.random.normal(kx, (N, c1, H, W), jnp.float32)       # NCHW, like PyTorch
    params, c, mid, ch = init_mea_params(kp, c1, c2)
    slab = pack_mea_slab(params, c1=c1, c=c, mid=mid, ch=ch, c2=c2, H=H, W=W)

    out = mea_forward(x, slab, c1=c1, c=c, mid=mid, ch=ch, c2=c2, H=H, W=W)
    out = jax.block_until_ready(out)
    assert out.shape == (N, c2, H, W), out.shape
    assert bool(jnp.all(jnp.isfinite(out)))

    ref = jax.block_until_ready(mea_reference(x, params, c=c, mid=mid, ch=ch))
    err = float(jnp.max(jnp.abs(out - ref)))
    # Tolerance relaxed slightly vs the pure-VALU version to accommodate the
    # MXU f32 matmul path used for the 1x1 convs.
    assert err < 2e-3, f"max abs err vs reference: {err}"

    print("KERNEL_OK")
</pallas_src>

<mosaic_0001>
module attributes {stable_mosaic.version = 11 : i64} {
  func.func @_mea_kernel(%arg0: i32, %arg1: memref<1x16x256xf32, #tpu.memory_space<vmem>>, %arg2: memref<112x256xf32, #tpu.memory_space<vmem>>, %arg3: memref<1x16x256xf32, #tpu.memory_space<vmem>>) attributes {dimension_semantics = [#tpu.dimension_semantics<parallel>], iteration_bounds = array<i64: 1>, scalar_prefetch = 0 : i64, scratch_operands = 0 : i64, tpu.core_type = #tpu.core_type<tc>, window_params = [{transform_indices = @transform_0, window_bounds = array<i64: 1, 16, 256>}, {pipeline_mode = #tpu.pipeline_mode<synchronous>, transform_indices = @transform_1, window_bounds = array<i64: 112, 256>}, {transform_indices = @transform_2, window_bounds = array<i64: 1, 16, 256>}]} {
    %c0 = arith.constant 0 : index
    %c0_0 = arith.constant 0 : index
    %c0_1 = arith.constant 0 : index
    %0 = vector.load %arg1[%c0, %c0_0, %c0_1] : memref<1x16x256xf32, #tpu.memory_space<vmem>>, vector<1x16x256xf32>
    %1 = vector.shape_cast %0 : vector<1x16x256xf32> to vector<16x256xf32>
    %c0_2 = arith.constant 0 : index
    %c0_3 = arith.constant 0 : index
    %2 = vector.load %arg2[%c0_2, %c0_3] : memref<112x256xf32, #tpu.memory_space<vmem>>, vector<112x256xf32>
    %3 = vector.extract_strided_slice %2 {offsets = [0, 0], sizes = [16, 16], strides = [1, 1]} : vector<112x256xf32> to vector<16x16xf32>
    %cst = arith.constant dense<0.000000e+00> : vector<16x256xf32>
    %4 = tpu.matmul %3, %1, %cst {dimension_numbers = #tpu.dot_dimension_numbers<[1], [0], [0], [1], [0, 0, 1, 1], [], []>} : vector<16x16xf32>, vector<16x256xf32>, vector<16x256xf32> -> vector<16x256xf32>
    %5 = vector.extract_strided_slice %2 {offsets = [0, 16], sizes = [16, 1], strides = [1, 1]} : vector<112x256xf32> to vector<16x1xf32>
    %6 = vector.broadcast %5 : vector<16x1xf32> to vector<16x256xf32>
    %7 = arith.addf %4, %6 : vector<16x256xf32>
    %8 = arith.negf %7 : vector<16x256xf32>
    %9 = math.exp %8 : vector<16x256xf32>
    %cst_4 = arith.constant 1.000000e+00 : f32
    %10 = vector.broadcast %cst_4 : f32 to vector<16x256xf32>
    %11 = arith.addf %10, %9 : vector<16x256xf32>
    %12 = arith.divf %10, %11 : vector<16x256xf32>
    %13 = arith.mulf %7, %12 : vector<16x256xf32>
    %14 = vector.extract_strided_slice %13 {offsets = [0, 0], sizes = [8, 256], strides = [1, 1]} : vector<16x256xf32> to vector<8x256xf32>
    %15 = vector.extract_strided_slice %13 {offsets = [8, 0], sizes = [8, 256], strides = [1, 1]} : vector<16x256xf32> to vector<8x256xf32>
    %16 = vector.extract_strided_slice %2 {offsets = [64, 0], sizes = [8, 25], strides = [1, 1]} : vector<112x256xf32> to vector<8x25xf32>
    %17 = vector.extract_strided_slice %2 {offsets = [64, 25], sizes = [8, 1], strides = [1, 1]} : vector<112x256xf32> to vector<8x1xf32>
    %18 = vector.extract_strided_slice %2 {offsets = [88, 0], sizes = [5, 256], strides = [1, 1]} : vector<112x256xf32> to vector<5x256xf32>
    %cst_5 = arith.constant 0.000000e+00 : f32
    %19 = vector.broadcast %cst_5 : f32 to vector<8x128xf32>
    %20 = tpu.concatenate %19, %15, %19 in 1 : vector<8x128xf32>, vector<8x256xf32>, vector<8x128xf32> -> vector<8x512xf32>
    %cst_6 = arith.constant 0.000000e+00 : f32
    %21 = vector.broadcast %cst_6 : f32 to vector<8x256xf32>
    %22 = vector.broadcast %17 : vector<8x1xf32> to vector<8x256xf32>
    %23 = arith.addf %21, %22 : vector<8x256xf32>
    %24 = vector.extract_strided_slice %20 {offsets = [0, 94], sizes = [8, 256], strides = [1, 1]} : vector<8x512xf32> to vector<8x256xf32>
    %25 = vector.extract_strided_slice %16 {offsets = [0, 0], sizes = [8, 1], strides = [1, 1]} : vector<8x25xf32> to vector<8x1xf32>
    %26 = vector.broadcast %25 : vector<8x1xf32> to vector<8x256xf32>
    %27 = arith.mulf %24, %26 : vector<8x256xf32>
    %28 = vector.extract_strided_slice %20 {offsets = [0, 110], sizes = [8, 256], strides = [1, 1]} : vector<8x512xf32> to vector<8x256xf32>
    %29 = vector.extract_strided_slice %16 {offsets = [0, 5], sizes = [8, 1], strides = [1, 1]} : vector<8x25xf32> to vector<8x1xf32>
    %30 = vector.broadcast %29 : vector<8x1xf32> to vector<8x256xf32>
    %31 = arith.mulf %28, %30 : vector<8x256xf32>
    %32 = arith.addf %27, %31 : vector<8x256xf32>
    %33 = vector.extract_strided_slice %20 {offsets = [0, 126], sizes = [8, 256], strides = [1, 1]} : vector<8x512xf32> to vector<8x256xf32>
    %34 = vector.extract_strided_slice %16 {offsets = [0, 10], sizes = [8, 1], strides = [1, 1]} : vector<8x25xf32> to vector<8x1xf32>
    %35 = vector.broadcast %34 : vector<8x1xf32> to vector<8x256xf32>
    %36 = arith.mulf %33, %35 : vector<8x256xf32>
    %37 = arith.addf %32, %36 : vector<8x256xf32>
    %38 = vector.extract_strided_slice %20 {offsets = [0, 142], sizes = [8, 256], strides = [1, 1]} : vector<8x512xf32> to vector<8x256xf32>
    %39 = vector.extract_strided_slice %16 {offsets = [0, 15], sizes = [8, 1], strides = [1, 1]} : vector<8x25xf32> to vector<8x1xf32>
    %40 = vector.broadcast %39 : vector<8x1xf32> to vector<8x256xf32>
    %41 = arith.mulf %38, %40 : vector<8x256xf32>
    %42 = arith.addf %37, %41 : vector<8x256xf32>
    %43 = vector.extract_strided_slice %20 {offsets = [0, 158], sizes = [8, 256], strides = [1, 1]} : vector<8x512xf32> to vector<8x256xf32>
    %44 = vector.extract_strided_slice %16 {offsets = [0, 20], sizes = [8, 1], strides = [1, 1]} : vector<8x25xf32> to vector<8x1xf32>
    %45 = vector.broadcast %44 : vector<8x1xf32> to vector<8x256xf32>
    %46 = arith.mulf %43, %45 : vector<8x256xf32>
    %47 = arith.addf %42, %46 : vector<8x256xf32>
    %48 = vector.extract_strided_slice %18 {offsets = [0, 0], sizes = [1, 256], strides = [1, 1]} : vector<5x256xf32> to vector<1x256xf32>
    %49 = vector.broadcast %48 : vector<1x256xf32> to vector<8x256xf32>
    %50 = arith.mulf %47, %49 : vector<8x256xf32>
    %51 = arith.addf %23, %50 : vector<8x256xf32>
    %52 = vector.extract_strided_slice %20 {offsets = [0, 95], sizes = [8, 256], strides = [1, 1]} : vector<8x512xf32> to vector<8x256xf32>
    %53 = vector.extract_strided_slice %16 {offsets = [0, 1], sizes = [8, 1], strides = [1, 1]} : vector<8x25xf32> to vector<8x1xf32>
    %54 = vector.broadcast %53 : vector<8x1xf32> to vector<8x256xf32>
    %55 = arith.mulf %52, %54 : vector<8x256xf32>
    %56 = vector.extract_strided_slice %20 {offsets = [0, 111], sizes = [8, 256], strides = [1, 1]} : vector<8x512xf32> to vector<8x256xf32>
    %57 = vector.extract_strided_slice %16 {offsets = [0, 6], sizes = [8, 1], strides = [1, 1]} : vector<8x25xf32> to vector<8x1xf32>
    %58 = vector.broadcast %57 : vector<8x1xf32> to vector<8x256xf32>
    %59 = arith.mulf %56, %58 : vector<8x256xf32>
    %60 = arith.addf %55, %59 : vector<8x256xf32>
    %61 = vector.extract_strided_slice %20 {offsets = [0, 127], sizes = [8, 256], strides = [1, 1]} : vector<8x512xf32> to vector<8x256xf32>
    %62 = vector.extract_strided_slice %16 {offsets = [0, 11], sizes = [8, 1], strides = [1, 1]} : vector<8x25xf32> to vector<8x1xf32>
    %63 = vector.broadcast %62 : vector<8x1xf32> to vector<8x256xf32>
    %64 = arith.mulf %61, %63 : vector<8x256xf32>
    %65 = arith.addf %60, %64 : vector<8x256xf32>
    %66 = vector.extract_strided_slice %20 {offsets = [0, 143], sizes = [8, 256], strides = [1, 1]} : vector<8x512xf32> to vector<8x256xf32>
    %67 = vector.extract_strided_slice %16 {offsets = [0, 16], sizes = [8, 1], strides = [1, 1]} : vector<8x25xf32> to vector<8x1xf32>
    %68 = vector.broadcast %67 : vector<8x1xf32> to vector<8x256xf32>
    %69 = arith.mulf %66, %68 : vector<8x256xf32>
    %70 = arith.addf %65, %69 : vector<8x256xf32>
    %71 = vector.extract_strided_slice %20 {offsets = [0, 159], sizes = [8, 256], strides = [1, 1]} : vector<8x512xf32> to vector<8x256xf32>
    %72 = vector.extract_strided_slice %16 {offsets = [0, 21], sizes = [8, 1], strides = [1, 1]} : vector<8x25xf32> to vector<8x1xf32>
    %73 = vector.broadcast %72 : vector<8x1xf32> to vector<8x256xf32>
    %74 = arith.mulf %71, %73 : vector<8x256xf32>
    %75 = arith.addf %70, %74 : vector<8x256xf32>
    %76 = vector.extract_strided_slice %18 {offsets = [1, 0], sizes = [1, 256], strides = [1, 1]} : vector<5x256xf32> to vector<1x256xf32>
    %77 = vector.broadcast %76 : vector<1x256xf32> to vector<8x256xf32>
    %78 = arith.mulf %75, %77 : vector<8x256xf32>
    %79 = arith.addf %51, %78 : vector<8x256xf32>
    %80 = vector.extract_strided_slice %20 {offsets = [0, 96], sizes = [8, 256], strides = [1, 1]} : vector<8x512xf32> to vector<8x256xf32>
    %81 = vector.extract_strided_slice %16 {offsets = [0, 2], sizes = [8, 1], strides = [1, 1]} : vector<8x25xf32> to vector<8x1xf32>
    %82 = vector.broadcast %81 : vector<8x1xf32> to vector<8x256xf32>
    %83 = arith.mulf %80, %82 : vector<8x256xf32>
    %84 = vector.extract_strided_slice %20 {offsets = [0, 112], sizes = [8, 256], strides = [1, 1]} : vector<8x512xf32> to vector<8x256xf32>
    %85 = vector.extract_strided_slice %16 {offsets = [0, 7], sizes = [8, 1], strides = [1, 1]} : vector<8x25xf32> to vector<8x1xf32>
    %86 = vector.broadcast %85 : vector<8x1xf32> to vector<8x256xf32>
    %87 = arith.mulf %84, %86 : vector<8x256xf32>
    %88 = arith.addf %83, %87 : vector<8x256xf32>
    %89 = vector.extract_strided_slice %20 {offsets = [0, 128], sizes = [8, 256], strides = [1, 1]} : vector<8x512xf32> to vector<8x256xf32>
    %90 = vector.extract_strided_slice %16 {offsets = [0, 12], sizes = [8, 1], strides = [1, 1]} : vector<8x25xf32> to vector<8x1xf32>
    %91 = vector.broadcast %90 : vector<8x1xf32> to vector<8x256xf32>
    %92 = arith.mulf %89, %91 : vector<8x256xf32>
    %93 = arith.addf %88, %92 : vector<8x256xf32>
    %94 = vector.extract_strided_slice %20 {offsets = [0, 144], sizes = [8, 256], strides = [1, 1]} : vector<8x512xf32> to vector<8x256xf32>
    %95 = vector.extract_strided_slice %16 {offsets = [0, 17], sizes = [8, 1], strides = [1, 1]} : vector<8x25xf32> to vector<8x1xf32>
    %96 = vector.broadcast %95 : vector<8x1xf32> to vector<8x256xf32>
    %97 = arith.mulf %94, %96 : vector<8x256xf32>
    %98 = arith.addf %93, %97 : vector<8x256xf32>
    %99 = vector.extract_strided_slice %20 {offsets = [0, 160], sizes = [8, 256], strides = [1, 1]} : vector<8x512xf32> to vector<8x256xf32>
    %100 = vector.extract_strided_slice %16 {offsets = [0, 22], sizes = [8, 1], strides = [1, 1]} : vector<8x25xf32> to vector<8x1xf32>
    %101 = vector.broadcast %100 : vector<8x1xf32> to vector<8x256xf32>
    %102 = arith.mulf %99, %101 : vector<8x256xf32>
    %103 = arith.addf %98, %102 : vector<8x256xf32>
    %104 = vector.extract_strided_slice %18 {offsets = [2, 0], sizes = [1, 256], strides = [1, 1]} : vector<5x256xf32> to vector<1x256xf32>
    %105 = vector.broadcast %104 : vector<1x256xf32> to vector<8x256xf32>
    %106 = arith.mulf %103, %105 : vector<8x256xf32>
    %107 = arith.addf %79, %106 : vector<8x256xf32>
    %108 = vector.extract_strided_slice %20 {offsets = [0, 97], sizes = [8, 256], strides = [1, 1]} : vector<8x512xf32> to vector<8x256xf32>
    %109 = vector.extract_strided_slice %16 {offsets = [0, 3], sizes = [8, 1], strides = [1, 1]} : vector<8x25xf32> to vector<8x1xf32>
    %110 = vector.broadcast %109 : vector<8x1xf32> to vector<8x256xf32>
    %111 = arith.mulf %108, %110 : vector<8x256xf32>
    %112 = vector.extract_strided_slice %20 {offsets = [0, 113], sizes = [8, 256], strides = [1, 1]} : vector<8x512xf32> to vector<8x256xf32>
    %113 = vector.extract_strided_slice %16 {offsets = [0, 8], sizes = [8, 1], strides = [1, 1]} : vector<8x25xf32> to vector<8x1xf32>
    %114 = vector.broadcast %113 : vector<8x1xf32> to vector<8x256xf32>
    %115 = arith.mulf %112, %114 : vector<8x256xf32>
    %116 = arith.addf %111, %115 : vector<8x256xf32>
    %117 = vector.extract_strided_slice %20 {offsets = [0, 129], sizes = [8, 256], strides = [1, 1]} : vector<8x512xf32> to vector<8x256xf32>
    %118 = vector.extract_strided_slice %16 {offsets = [0, 13], sizes = [8, 1], strides = [1, 1]} : vector<8x25xf32> to vector<8x1xf32>
    %119 = vector.broadcast %118 : vector<8x1xf32> to vector<8x256xf32>
    %120 = arith.mulf %117, %119 : vector<8x256xf32>
    %121 = arith.addf %116, %120 : vector<8x256xf32>
    %122 = vector.extract_strided_slice %20 {offsets = [0, 145], sizes = [8, 256], strides = [1, 1]} : vector<8x512xf32> to vector<8x256xf32>
    %123 = vector.extract_strided_slice %16 {offsets = [0, 18], sizes = [8, 1], strides = [1, 1]} : vector<8x25xf32> to vector<8x1xf32>
    %124 = vector.broadcast %123 : vector<8x1xf32> to vector<8x256xf32>
    %125 = arith.mulf %122, %124 : vector<8x256xf32>
    %126 = arith.addf %121, %125 : vector<8x256xf32>
    %127 = vector.extract_strided_slice %20 {offsets = [0, 161], sizes = [8, 256], strides = [1, 1]} : vector<8x512xf32> to vector<8x256xf32>
    %128 = vector.extract_strided_slice %16 {offsets = [0, 23], sizes = [8, 1], strides = [1, 1]} : vector<8x25xf32> to vector<8x1xf32>
    %129 = vector.broadcast %128 : vector<8x1xf32> to vector<8x256xf32>
    %130 = arith.mulf %127, %129 : vector<8x256xf32>
    %131 = arith.addf %126, %130 : vector<8x256xf32>
    %132 = vector.extract_strided_slice %18 {offsets = [3, 0], sizes = [1, 256], strides = [1, 1]} : vector<5x256xf32> to vector<1x256xf32>
    %133 = vector.broadcast %132 : vector<1x256xf32> to vector<8x256xf32>
    %134 = arith.mulf %131, %133 : vector<8x256xf32>
    %135 = arith.addf %107, %134 : vector<8x256xf32>
    %136 = vector.extract_strided_slice %20 {offsets = [0, 98], sizes = [8, 256], strides = [1, 1]} : vector<8x512xf32> to vector<8x256xf32>
    %137 = vector.extract_strided_slice %16 {offsets = [0, 4], sizes = [8, 1], strides = [1, 1]} : vector<8x25xf32> to vector<8x1xf32>
    %138 = vector.broadcast %137 : vector<8x1xf32> to vector<8x256xf32>
    %139 = arith.mulf %136, %138 : vector<8x256xf32>
    %140 = vector.extract_strided_slice %20 {offsets = [0, 114], sizes = [8, 256], strides = [1, 1]} : vector<8x512xf32> to vector<8x256xf32>
    %141 = vector.extract_strided_slice %16 {offsets = [0, 9], sizes = [8, 1], strides = [1, 1]} : vector<8x25xf32> to vector<8x1xf32>
    %142 = vector.broadcast %141 : vector<8x1xf32> to vector<8x256xf32>
    %143 = arith.mulf %140, %142 : vector<8x256xf32>
    %144 = arith.addf %139, %143 : vector<8x256xf32>
    %145 = vector.extract_strided_slice %20 {offsets = [0, 130], sizes = [8, 256], strides = [1, 1]} : vector<8x512xf32> to vector<8x256xf32>
    %146 = vector.extract_strided_slice %16 {offsets = [0, 14], sizes = [8, 1], strides = [1, 1]} : vector<8x25xf32> to vector<8x1xf32>
    %147 = vector.broadcast %146 : vector<8x1xf32> to vector<8x256xf32>
    %148 = arith.mulf %145, %147 : vector<8x256xf32>
    %149 = arith.addf %144, %148 : vector<8x256xf32>
    %150 = vector.extract_strided_slice %20 {offsets = [0, 146], sizes = [8, 256], strides = [1, 1]} : vector<8x512xf32> to vector<8x256xf32>
    %151 = vector.extract_strided_slice %16 {offsets = [0, 19], sizes = [8, 1], strides = [1, 1]} : vector<8x25xf32> to vector<8x1xf32>
    %152 = vector.broadcast %151 : vector<8x1xf32> to vector<8x256xf32>
    %153 = arith.mulf %150, %152 : vector<8x256xf32>
    %154 = arith.addf %149, %153 : vector<8x256xf32>
    %155 = vector.extract_strided_slice %20 {offsets = [0, 162], sizes = [8, 256], strides = [1, 1]} : vector<8x512xf32> to vector<8x256xf32>
    %156 = vector.extract_strided_slice %16 {offsets = [0, 24], sizes = [8, 1], strides = [1, 1]} : vector<8x25xf32> to vector<8x1xf32>
    %157 = vector.broadcast %156 : vector<8x1xf32> to vector<8x256xf32>
    %158 = arith.mulf %155, %157 : vector<8x256xf32>
    %159 = arith.addf %154, %158 : vector<8x256xf32>
    %160 = vector.extract_strided_slice %18 {offsets = [4, 0], sizes = [1, 256], strides = [1, 1]} : vector<5x256xf32> to vector<1x256xf32>
    %161 = vector.broadcast %160 : vector<1x256xf32> to vector<8x256xf32>
    %162 = arith.mulf %159, %161 : vector<8x256xf32>
    %163 = arith.addf %135, %162 : vector<8x256xf32>
    %164 = vector.extract_strided_slice %2 {offsets = [72, 0], sizes = [8, 49], strides = [1, 1]} : vector<112x256xf32> to vector<8x49xf32>
    %165 = vector.extract_strided_slice %2 {offsets = [72, 49], sizes = [8, 1], strides = [1, 1]} : vector<112x256xf32> to vector<8x1xf32>
    %166 = vector.extract_strided_slice %2 {offsets = [96, 0], sizes = [7, 256], strides = [1, 1]} : vector<112x256xf32> to vector<7x256xf32>
    %cst_7 = arith.constant 0.000000e+00 : f32
    %167 = vector.broadcast %cst_7 : f32 to vector<8x256xf32>
    %168 = tpu.concatenate %167, %163, %167 in 1 : vector<8x256xf32>, vector<8x256xf32>, vector<8x256xf32> -> vector<8x768xf32>
    %cst_8 = arith.constant 0.000000e+00 : f32
    %169 = vector.broadcast %cst_8 : f32 to vector<8x256xf32>
    %170 = vector.broadcast %165 : vector<8x1xf32> to vector<8x256xf32>
    %171 = arith.addf %169, %170 : vector<8x256xf32>
    %172 = vector.extract_strided_slice %168 {offsets = [0, 103], sizes = [8, 256], strides = [1, 1]} : vector<8x768xf32> to vector<8x256xf32>
    %173 = vector.extract_strided_slice %164 {offsets = [0, 0], sizes = [8, 1], strides = [1, 1]} : vector<8x49xf32> to vector<8x1xf32>
    %174 = vector.broadcast %173 : vector<8x1xf32> to vector<8x256xf32>
    %175 = arith.mulf %172, %174 : vector<8x256xf32>
    %176 = vector.extract_strided_slice %168 {offsets = [0, 151], sizes = [8, 256], strides = [1, 1]} : vector<8x768xf32> to vector<8x256xf32>
    %177 = vector.extract_strided_slice %164 {offsets = [0, 7], sizes = [8, 1], strides = [1, 1]} : vector<8x49xf32> to vector<8x1xf32>
    %178 = vector.broadcast %177 : vector<8x1xf32> to vector<8x256xf32>
    %179 = arith.mulf %176, %178 : vector<8x256xf32>
    %180 = arith.addf %175, %179 : vector<8x256xf32>
    %181 = vector.extract_strided_slice %168 {offsets = [0, 199], sizes = [8, 256], strides = [1, 1]} : vector<8x768xf32> to vector<8x256xf32>
    %182 = vector.extract_strided_slice %164 {offsets = [0, 14], sizes = [8, 1], strides = [1, 1]} : vector<8x49xf32> to vector<8x1xf32>
    %183 = vector.broadcast %182 : vector<8x1xf32> to vector<8x256xf32>
    %184 = arith.mulf %181, %183 : vector<8x256xf32>
    %185 = arith.addf %180, %184 : vector<8x256xf32>
    %186 = vector.extract_strided_slice %168 {offsets = [0, 247], sizes = [8, 256], strides = [1, 1]} : vector<8x768xf32> to vector<8x256xf32>
    %187 = vector.extract_strided_slice %164 {offsets = [0, 21], sizes = [8, 1], strides = [1, 1]} : vector<8x49xf32> to vector<8x1xf32>
    %188 = vector.broadcast %187 : vector<8x1xf32> to vector<8x256xf32>
    %189 = arith.mulf %186, %188 : vector<8x256xf32>
    %190 = arith.addf %185, %189 : vector<8x256xf32>
    %191 = vector.extract_strided_slice %168 {offsets = [0, 295], sizes = [8, 256], strides = [1, 1]} : vector<8x768xf32> to vector<8x256xf32>
    %192 = vector.extract_strided_slice %164 {offsets = [0, 28], sizes = [8, 1], strides = [1, 1]} : vector<8x49xf32> to vector<8x1xf32>
    %193 = vector.broadcast %192 : vector<8x1xf32> to vector<8x256xf32>
    %194 = arith.mulf %191, %193 : vector<8x256xf32>
    %195 = arith.addf %190, %194 : vector<8x256xf32>
    %196 = vector.extract_strided_slice %168 {offsets = [0, 343], sizes = [8, 256], strides = [1, 1]} : vector<8x768xf32> to vector<8x256xf32>
    %197 = vector.extract_strided_slice %164 {offsets = [0, 35], sizes = [8, 1], strides = [1, 1]} : vector<8x49xf32> to vector<8x1xf32>
    %198 = vector.broadcast %197 : vector<8x1xf32> to vector<8x256xf32>
    %199 = arith.mulf %196, %198 : vector<8x256xf32>
    %200 = arith.addf %195, %199 : vector<8x256xf32>
    %201 = vector.extract_strided_slice %168 {offsets = [0, 391], sizes = [8, 256], strides = [1, 1]} : vector<8x768xf32> to vector<8x256xf32>
    %202 = vector.extract_strided_slice %164 {offsets = [0, 42], sizes = [8, 1], strides = [1, 1]} : vector<8x49xf32> to vector<8x1xf32>
    %203 = vector.broadcast %202 : vector<8x1xf32> to vector<8x256xf32>
    %204 = arith.mulf %201, %203 : vector<8x256xf32>
    %205 = arith.addf %200, %204 : vector<8x256xf32>
    %206 = vector.extract_strided_slice %166 {offsets = [0, 0], sizes = [1, 256], strides = [1, 1]} : vector<7x256xf32> to vector<1x256xf32>
    %207 = vector.broadcast %206 : vector<1x256xf32> to vector<8x256xf32>
    %208 = arith.mulf %205, %207 : vector<8x256xf32>
    %209 = arith.addf %171, %208 : vector<8x256xf32>
    %210 = vector.extract_strided_slice %168 {offsets = [0, 106], sizes = [8, 256], strides = [1, 1]} : vector<8x768xf32> to vector<8x256xf32>
    %211 = vector.extract_strided_slice %164 {offsets = [0, 1], sizes = [8, 1], strides = [1, 1]} : vector<8x49xf32> to vector<8x1xf32>
    %212 = vector.broadcast %211 : vector<8x1xf32> to vector<8x256xf32>
    %213 = arith.mulf %210, %212 : vector<8x256xf32>
    %214 = vector.extract_strided_slice %168 {offsets = [0, 154], sizes = [8, 256], strides = [1, 1]} : vector<8x768xf32> to vector<8x256xf32>
    %215 = vector.extract_strided_slice %164 {offsets = [0, 8], sizes = [8, 1], strides = [1, 1]} : vector<8x49xf32> to vector<8x1xf32>
    %216 = vector.broadcast %215 : vector<8x1xf32> to vector<8x256xf32>
    %217 = arith.mulf %214, %216 : vector<8x256xf32>
    %218 = arith.addf %213, %217 : vector<8x256xf32>
    %219 = vector.extract_strided_slice %168 {offsets = [0, 202], sizes = [8, 256], strides = [1, 1]} : vector<8x768xf32> to vector<8x256xf32>
    %220 = vector.extract_strided_slice %164 {offsets = [0, 15], sizes = [8, 1], strides = [1, 1]} : vector<8x49xf32> to vector<8x1xf32>
    %221 = vector.broadcast %220 : vector<8x1xf32> to vector<8x256xf32>
    %222 = arith.mulf %219, %221 : vector<8x256xf32>
    %223 = arith.addf %218, %222 : vector<8x256xf32>
    %224 = vector.extract_strided_slice %168 {offsets = [0, 250], sizes = [8, 256], strides = [1, 1]} : vector<8x768xf32> to vector<8x256xf32>
    %225 = vector.extract_strided_slice %164 {offsets = [0, 22], sizes = [8, 1], strides = [1, 1]} : vector<8x49xf32> to vector<8x1xf32>
    %226 = vector.broadcast %225 : vector<8x1xf32> to vector<8x256xf32>
    %227 = arith.mulf %224, %226 : vector<8x256xf32>
    %228 = arith.addf %223, %227 : vector<8x256xf32>
    %229 = vector.extract_strided_slice %168 {offsets = [0, 298], sizes = [8, 256], strides = [1, 1]} : vector<8x768xf32> to vector<8x256xf32>
    %230 = vector.extract_strided_slice %164 {offsets = [0, 29], sizes = [8, 1], strides = [1, 1]} : vector<8x49xf32> to vector<8x1xf32>
    %231 = vector.broadcast %230 : vector<8x1xf32> to vector<8x256xf32>
    %232 = arith.mulf %229, %231 : vector<8x256xf32>
    %233 = arith.addf %228, %232 : vector<8x256xf32>
    %234 = vector.extract_strided_slice %168 {offsets = [0, 346], sizes = [8, 256], strides = [1, 1]} : vector<8x768xf32> to vector<8x256xf32>
    %235 = vector.extract_strided_slice %164 {offsets = [0, 36], sizes = [8, 1], strides = [1, 1]} : vector<8x49xf32> to vector<8x1xf32>
    %236 = vector.broadcast %235 : vector<8x1xf32> to vector<8x256xf32>
    %237 = arith.mulf %234, %236 : vector<8x256xf32>
    %238 = arith.addf %233, %237 : vector<8x256xf32>
    %239 = vector.extract_strided_slice %168 {offsets = [0, 394], sizes = [8, 256], strides = [1, 1]} : vector<8x768xf32> to vector<8x256xf32>
    %240 = vector.extract_strided_slice %164 {offsets = [0, 43], sizes = [8, 1], strides = [1, 1]} : vector<8x49xf32> to vector<8x1xf32>
    %241 = vector.broadcast %240 : vector<8x1xf32> to vector<8x256xf32>
    %242 = arith.mulf %239, %241 : vector<8x256xf32>
    %243 = arith.addf %238, %242 : vector<8x256xf32>
    %244 = vector.extract_strided_slice %166 {offsets = [1, 0], sizes = [1, 256], strides = [1, 1]} : vector<7x256xf32> to vector<1x256xf32>
    %245 = vector.broadcast %244 : vector<1x256xf32> to vector<8x256xf32>
    %246 = arith.mulf %243, %245 : vector<8x256xf32>
    %247 = arith.addf %209, %246 : vector<8x256xf32>
    %248 = vector.extract_strided_slice %168 {offsets = [0, 109], sizes = [8, 256], strides = [1, 1]} : vector<8x768xf32> to vector<8x256xf32>
    %249 = vector.extract_strided_slice %164 {offsets = [0, 2], sizes = [8, 1], strides = [1, 1]} : vector<8x49xf32> to vector<8x1xf32>
    %250 = vector.broadcast %249 : vector<8x1xf32> to vector<8x256xf32>
    %251 = arith.mulf %248, %250 : vector<8x256xf32>
    %252 = vector.extract_strided_slice %168 {offsets = [0, 157], sizes = [8, 256], strides = [1, 1]} : vector<8x768xf32> to vector<8x256xf32>
    %253 = vector.extract_strided_slice %164 {offsets = [0, 9], sizes = [8, 1], strides = [1, 1]} : vector<8x49xf32> to vector<8x1xf32>
    %254 = vector.broadcast %253 : vector<8x1xf32> to vector<8x256xf32>
    %255 = arith.mulf %252, %254 : vector<8x256xf32>
    %256 = arith.addf %251, %255 : vector<8x256xf32>
    %257 = vector.extract_strided_slice %168 {offsets = [0, 205], sizes = [8, 256], strides = [1, 1]} : vector<8x768xf32> to vector<8x256xf32>
    %258 = vector.extract_strided_slice %164 {offsets = [0, 16], sizes = [8, 1], strides = [1, 1]} : vector<8x49xf32> to vector<8x1xf32>
    %259 = vector.broadcast %258 : vector<8x1xf32> to vector<8x256xf32>
    %260 = arith.mulf %257, %259 : vector<8x256xf32>
    %261 = arith.addf %256, %260 : vector<8x256xf32>
    %262 = vector.extract_strided_slice %168 {offsets = [0, 253], sizes = [8, 256], strides = [1, 1]} : vector<8x768xf32> to vector<8x256xf32>
    %263 = vector.extract_strided_slice %164 {offsets = [0, 23], sizes = [8, 1], strides = [1, 1]} : vector<8x49xf32> to vector<8x1xf32>
    %264 = vector.broadcast %263 : vector<8x1xf32> to vector<8x256xf32>
    %265 = arith.mulf %262, %264 : vector<8x256xf32>
    %266 = arith.addf %261, %265 : vector<8x256xf32>
    %267 = vector.extract_strided_slice %168 {offsets = [0, 301], sizes = [8, 256], strides = [1, 1]} : vector<8x768xf32> to vector<8x256xf32>
    %268 = vector.extract_strided_slice %164 {offsets = [0, 30], sizes = [8, 1], strides = [1, 1]} : vector<8x49xf32> to vector<8x1xf32>
    %269 = vector.broadcast %268 : vector<8x1xf32> to vector<8x256xf32>
    %270 = arith.mulf %267, %269 : vector<8x256xf32>
    %271 = arith.addf %266, %270 : vector<8x256xf32>
    %272 = vector.extract_strided_slice %168 {offsets = [0, 349], sizes = [8, 256], strides = [1, 1]} : vector<8x768xf32> to vector<8x256xf32>
    %273 = vector.extract_strided_slice %164 {offsets = [0, 37], sizes = [8, 1], strides = [1, 1]} : vector<8x49xf32> to vector<8x1xf32>
    %274 = vector.broadcast %273 : vector<8x1xf32> to vector<8x256xf32>
    %275 = arith.mulf %272, %274 : vector<8x256xf32>
    %276 = arith.addf %271, %275 : vector<8x256xf32>
    %277 = vector.extract_strided_slice %168 {offsets = [0, 397], sizes = [8, 256], strides = [1, 1]} : vector<8x768xf32> to vector<8x256xf32>
    %278 = vector.extract_strided_slice %164 {offsets = [0, 44], sizes = [8, 1], strides = [1, 1]} : vector<8x49xf32> to vector<8x1xf32>
    %279 = vector.broadcast %278 : vector<8x1xf32> to vector<8x256xf32>
    %280 = arith.mulf %277, %279 : vector<8x256xf32>
    %281 = arith.addf %276, %280 : vector<8x256xf32>
    %282 = vector.extract_strided_slice %166 {offsets = [2, 0], sizes = [1, 256], strides = [1, 1]} : vector<7x256xf32> to vector<1x256xf32>
    %283 = vector.broadcast %282 : vector<1x256xf32> to vector<8x256xf32>
    %284 = arith.mulf %281, %283 : vector<8x256xf32>
    %285 = arith.addf %247, %284 : vector<8x256xf32>
    %286 = vector.extract_strided_slice %168 {offsets = [0, 112], sizes = [8, 256], strides = [1, 1]} : vector<8x768xf32> to vector<8x256xf32>
    %287 = vector.extract_strided_slice %164 {offsets = [0, 3], sizes = [8, 1], strides = [1, 1]} : vector<8x49xf32> to vector<8x1xf32>
    %288 = vector.broadcast %287 : vector<8x1xf32> to vector<8x256xf32>
    %289 = arith.mulf %286, %288 : vector<8x256xf32>
    %290 = vector.extract_strided_slice %168 {offsets = [0, 160], sizes = [8, 256], strides = [1, 1]} : vector<8x768xf32> to vector<8x256xf32>
    %291 = vector.extract_strided_slice %164 {offsets = [0, 10], sizes = [8, 1], strides = [1, 1]} : vector<8x49xf32> to vector<8x1xf32>
    %292 = vector.broadcast %291 : vector<8x1xf32> to vector<8x256xf32>
    %293 = arith.mulf %290, %292 : vector<8x256xf32>
    %294 = arith.addf %289, %293 : vector<8x256xf32>
    %295 = vector.extract_strided_slice %168 {offsets = [0, 208], sizes = [8, 256], strides = [1, 1]} : vector<8x768xf32> to vector<8x256xf32>
    %296 = vector.extract_strided_slice %164 {offsets = [0, 17], sizes = [8, 1], strides = [1, 1]} : vector<8x49xf32> to vector<8x1xf32>
    %297 = vector.broadcast %296 : vector<8x1xf32> to vector<8x256xf32>
    %298 = arith.mulf %295, %297 : vector<8x256xf32>
    %299 = arith.addf %294, %298 : vector<8x256xf32>
    %300 = vector.extract_strided_slice %168 {offsets = [0, 256], sizes = [8, 256], strides = [1, 1]} : vector<8x768xf32> to vector<8x256xf32>
    %301 = vector.extract_strided_slice %164 {offsets = [0, 24], sizes = [8, 1], strides = [1, 1]} : vector<8x49xf32> to vector<8x1xf32>
    %302 = vector.broadcast %301 : vector<8x1xf32> to vector<8x256xf32>
    %303 = arith.mulf %300, %302 : vector<8x256xf32>
    %304 = arith.addf %299, %303 : vector<8x256xf32>
    %305 = vector.extract_strided_slice %168 {offsets = [0, 304], sizes = [8, 256], strides = [1, 1]} : vector<8x768xf32> to vector<8x256xf32>
    %306 = vector.extract_strided_slice %164 {offsets = [0, 31], sizes = [8, 1], strides = [1, 1]} : vector<8x49xf32> to vector<8x1xf32>
    %307 = vector.broadcast %306 : vector<8x1xf32> to vector<8x256xf32>
    %308 = arith.mulf %305, %307 : vector<8x256xf32>
    %309 = arith.addf %304, %308 : vector<8x256xf32>
    %310 = vector.extract_strided_slice %168 {offsets = [0, 352], sizes = [8, 256], strides = [1, 1]} : vector<8x768xf32> to vector<8x256xf32>
    %311 = vector.extract_strided_slice %164 {offsets = [0, 38], sizes = [8, 1], strides = [1, 1]} : vector<8x49xf32> to vector<8x1xf32>
    %312 = vector.broadcast %311 : vector<8x1xf32> to vector<8x256xf32>
    %313 = arith.mulf %310, %312 : vector<8x256xf32>
    %314 = arith.addf %309, %313 : vector<8x256xf32>
    %315 = vector.extract_strided_slice %168 {offsets = [0, 400], sizes = [8, 256], strides = [1, 1]} : vector<8x768xf32> to vector<8x256xf32>
    %316 = vector.extract_strided_slice %164 {offsets = [0, 45], sizes = [8, 1], strides = [1, 1]} : vector<8x49xf32> to vector<8x1xf32>
    %317 = vector.broadcast %316 : vector<8x1xf32> to vector<8x256xf32>
    %318 = arith.mulf %315, %317 : vector<8x256xf32>
    %319 = arith.addf %314, %318 : vector<8x256xf32>
    %320 = vector.extract_strided_slice %166 {offsets = [3, 0], sizes = [1, 256], strides = [1, 1]} : vector<7x256xf32> to vector<1x256xf32>
    %321 = vector.broadcast %320 : vector<1x256xf32> to vector<8x256xf32>
    %322 = arith.mulf %319, %321 : vector<8x256xf32>
    %323 = arith.addf %285, %322 : vector<8x256xf32>
    %324 = vector.extract_strided_slice %168 {offsets = [0, 115], sizes = [8, 256], strides = [1, 1]} : vector<8x768xf32> to vector<8x256xf32>
    %325 = vector.extract_strided_slice %164 {offsets = [0, 4], sizes = [8, 1], strides = [1, 1]} : vector<8x49xf32> to vector<8x1xf32>
    %326 = vector.broadcast %325 : vector<8x1xf32> to vector<8x256xf32>
    %327 = arith.mulf %324, %326 : vector<8x256xf32>
    %328 = vector.extract_strided_slice %168 {offsets = [0, 163], sizes = [8, 256], strides = [1, 1]} : vector<8x768xf32> to vector<8x256xf32>
    %329 = vector.extract_strided_slice %164 {offsets = [0, 11], sizes = [8, 1], strides = [1, 1]} : vector<8x49xf32> to vector<8x1xf32>
    %330 = vector.broadcast %329 : vector<8x1xf32> to vector<8x256xf32>
    %331 = arith.mulf %328, %330 : vector<8x256xf32>
    %332 = arith.addf %327, %331 : vector<8x256xf32>
    %333 = vector.extract_strided_slice %168 {offsets = [0, 211], sizes = [8, 256], strides = [1, 1]} : vector<8x768xf32> to vector<8x256xf32>
    %334 = vector.extract_strided_slice %164 {offsets = [0, 18], sizes = [8, 1], strides = [1, 1]} : vector<8x49xf32> to vector<8x1xf32>
    %335 = vector.broadcast %334 : vector<8x1xf32> to vector<8x256xf32>
    %336 = arith.mulf %333, %335 : vector<8x256xf32>
    %337 = arith.addf %332, %336 : vector<8x256xf32>
    %338 = vector.extract_strided_slice %168 {offsets = [0, 259], sizes = [8, 256], strides = [1, 1]} : vector<8x768xf32> to vector<8x256xf32>
    %339 = vector.extract_strided_slice %164 {offsets = [0, 25], sizes = [8, 1], strides = [1, 1]} : vector<8x49xf32> to vector<8x1xf32>
    %340 = vector.broadcast %339 : vector<8x1xf32> to vector<8x256xf32>
    %341 = arith.mulf %338, %340 : vector<8x256xf32>
    %342 = arith.addf %337, %341 : vector<8x256xf32>
    %343 = vector.extract_strided_slice %168 {offsets = [0, 307], sizes = [8, 256], strides = [1, 1]} : vector<8x768xf32> to vector<8x256xf32>
    %344 = vector.extract_strided_slice %164 {offsets = [0, 32], sizes = [8, 1], strides = [1, 1]} : vector<8x49xf32> to vector<8x1xf32>
    %345 = vector.broadcast %344 : vector<8x1xf32> to vector<8x256xf32>
    %346 = arith.mulf %343, %345 : vector<8x256xf32>
    %347 = arith.addf %342, %346 : vector<8x256xf32>
    %348 = vector.extract_strided_slice %168 {offsets = [0, 355], sizes = [8, 256], strides = [1, 1]} : vector<8x768xf32> to vector<8x256xf32>
    %349 = vector.extract_strided_slice %164 {offsets = [0, 39], sizes = [8, 1], strides = [1, 1]} : vector<8x49xf32> to vector<8x1xf32>
    %350 = vector.broadcast %349 : vector<8x1xf32> to vector<8x256xf32>
    %351 = arith.mulf %348, %350 : vector<8x256xf32>
    %352 = arith.addf %347, %351 : vector<8x256xf32>
    %353 = vector.extract_strided_slice %168 {offsets = [0, 403], sizes = [8, 256], strides = [1, 1]} : vector<8x768xf32> to vector<8x256xf32>
    %354 = vector.extract_strided_slice %164 {offsets = [0, 46], sizes = [8, 1], strides = [1, 1]} : vector<8x49xf32> to vector<8x1xf32>
    %355 = vector.broadcast %354 : vector<8x1xf32> to vector<8x256xf32>
    %356 = arith.mulf %353, %355 : vector<8x256xf32>
    %357 = arith.addf %352, %356 : vector<8x256xf32>
    %358 = vector.extract_strided_slice %166 {offsets = [4, 0], sizes = [1, 256], strides = [1, 1]} : vector<7x256xf32> to vector<1x256xf32>
    %359 = vector.broadcast %358 : vector<1x256xf32> to vector<8x256xf32>
    %360 = arith.mulf %357, %359 : vector<8x256xf32>
    %361 = arith.addf %323, %360 : vector<8x256xf32>
    %362 = vector.extract_strided_slice %168 {offsets = [0, 118], sizes = [8, 256], strides = [1, 1]} : vector<8x768xf32> to vector<8x256xf32>
    %363 = vector.extract_strided_slice %164 {offsets = [0, 5], sizes = [8, 1], strides = [1, 1]} : vector<8x49xf32> to vector<8x1xf32>
    %364 = vector.broadcast %363 : vector<8x1xf32> to vector<8x256xf32>
    %365 = arith.mulf %362, %364 : vector<8x256xf32>
    %366 = vector.extract_strided_slice %168 {offsets = [0, 166], sizes = [8, 256], strides = [1, 1]} : vector<8x768xf32> to vector<8x256xf32>
    %367 = vector.extract_strided_slice %164 {offsets = [0, 12], sizes = [8, 1], strides = [1, 1]} : vector<8x49xf32> to vector<8x1xf32>
    %368 = vector.broadcast %367 : vector<8x1xf32> to vector<8x256xf32>
    %369 = arith.mulf %366, %368 : vector<8x256xf32>
    %370 = arith.addf %365, %369 : vector<8x256xf32>
    %371 = vector.extract_strided_slice %168 {offsets = [0, 214], sizes = [8, 256], strides = [1, 1]} : vector<8x768xf32> to vector<8x256xf32>
    %372 = vector.extract_strided_slice %164 {offsets = [0, 19], sizes = [8, 1], strides = [1, 1]} : vector<8x49xf32> to vector<8x1xf32>
    %373 = vector.broadcast %372 : vector<8x1xf32> to vector<8x256xf32>
    %374 = arith.mulf %371, %373 : vector<8x256xf32>
    %375 = arith.addf %370, %374 : vector<8x256xf32>
    %376 = vector.extract_strided_slice %168 {offsets = [0, 262], sizes = [8, 256], strides = [1, 1]} : vector<8x768xf32> to vector<8x256xf32>
    %377 = vector.extract_strided_slice %164 {offsets = [0, 26], sizes = [8, 1], strides = [1, 1]} : vector<8x49xf32> to vector<8x1xf32>
    %378 = vector.broadcast %377 : vector<8x1xf32> to vector<8x256xf32>
    %379 = arith.mulf %376, %378 : vector<8x256xf32>
    %380 = arith.addf %375, %379 : vector<8x256xf32>
    %381 = vector.extract_strided_slice %168 {offsets = [0, 310], sizes = [8, 256], strides = [1, 1]} : vector<8x768xf32> to vector<8x256xf32>
    %382 = vector.extract_strided_slice %164 {offsets = [0, 33], sizes = [8, 1], strides = [1, 1]} : vector<8x49xf32> to vector<8x1xf32>
    %383 = vector.broadcast %382 : vector<8x1xf32> to vector<8x256xf32>
    %384 = arith.mulf %381, %383 : vector<8x256xf32>
    %385 = arith.addf %380, %384 : vector<8x256xf32>
    %386 = vector.extract_strided_slice %168 {offsets = [0, 358], sizes = [8, 256], strides = [1, 1]} : vector<8x768xf32> to vector<8x256xf32>
    %387 = vector.extract_strided_slice %164 {offsets = [0, 40], sizes = [8, 1], strides = [1, 1]} : vector<8x49xf32> to vector<8x1xf32>
    %388 = vector.broadcast %387 : vector<8x1xf32> to vector<8x256xf32>
    %389 = arith.mulf %386, %388 : vector<8x256xf32>
    %390 = arith.addf %385, %389 : vector<8x256xf32>
    %391 = vector.extract_strided_slice %168 {offsets = [0, 406], sizes = [8, 256], strides = [1, 1]} : vector<8x768xf32> to vector<8x256xf32>
    %392 = vector.extract_strided_slice %164 {offsets = [0, 47], sizes = [8, 1], strides = [1, 1]} : vector<8x49xf32> to vector<8x1xf32>
    %393 = vector.broadcast %392 : vector<8x1xf32> to vector<8x256xf32>
    %394 = arith.mulf %391, %393 : vector<8x256xf32>
    %395 = arith.addf %390, %394 : vector<8x256xf32>
    %396 = vector.extract_strided_slice %166 {offsets = [5, 0], sizes = [1, 256], strides = [1, 1]} : vector<7x256xf32> to vector<1x256xf32>
    %397 = vector.broadcast %396 : vector<1x256xf32> to vector<8x256xf32>
    %398 = arith.mulf %395, %397 : vector<8x256xf32>
    %399 = arith.addf %361, %398 : vector<8x256xf32>
    %400 = vector.extract_strided_slice %168 {offsets = [0, 121], sizes = [8, 256], strides = [1, 1]} : vector<8x768xf32> to vector<8x256xf32>
    %401 = vector.extract_strided_slice %164 {offsets = [0, 6], sizes = [8, 1], strides = [1, 1]} : vector<8x49xf32> to vector<8x1xf32>
    %402 = vector.broadcast %401 : vector<8x1xf32> to vector<8x256xf32>
    %403 = arith.mulf %400, %402 : vector<8x256xf32>
    %404 = vector.extract_strided_slice %168 {offsets = [0, 169], sizes = [8, 256], strides = [1, 1]} : vector<8x768xf32> to vector<8x256xf32>
    %405 = vector.extract_strided_slice %164 {offsets = [0, 13], sizes = [8, 1], strides = [1, 1]} : vector<8x49xf32> to vector<8x1xf32>
    %406 = vector.broadcast %405 : vector<8x1xf32> to vector<8x256xf32>
    %407 = arith.mulf %404, %406 : vector<8x256xf32>
    %408 = arith.addf %403, %407 : vector<8x256xf32>
    %409 = vector.extract_strided_slice %168 {offsets = [0, 217], sizes = [8, 256], strides = [1, 1]} : vector<8x768xf32> to vector<8x256xf32>
    %410 = vector.extract_strided_slice %164 {offsets = [0, 20], sizes = [8, 1], strides = [1, 1]} : vector<8x49xf32> to vector<8x1xf32>
    %411 = vector.broadcast %410 : vector<8x1xf32> to vector<8x256xf32>
    %412 = arith.mulf %409, %411 : vector<8x256xf32>
    %413 = arith.addf %408, %412 : vector<8x256xf32>
    %414 = vector.extract_strided_slice %168 {offsets = [0, 265], sizes = [8, 256], strides = [1, 1]} : vector<8x768xf32> to vector<8x256xf32>
    %415 = vector.extract_strided_slice %164 {offsets = [0, 27], sizes = [8, 1], strides = [1, 1]} : vector<8x49xf32> to vector<8x1xf32>
    %416 = vector.broadcast %415 : vector<8x1xf32> to vector<8x256xf32>
    %417 = arith.mulf %414, %416 : vector<8x256xf32>
    %418 = arith.addf %413, %417 : vector<8x256xf32>
    %419 = vector.extract_strided_slice %168 {offsets = [0, 313], sizes = [8, 256], strides = [1, 1]} : vector<8x768xf32> to vector<8x256xf32>
    %420 = vector.extract_strided_slice %164 {offsets = [0, 34], sizes = [8, 1], strides = [1, 1]} : vector<8x49xf32> to vector<8x1xf32>
    %421 = vector.broadcast %420 : vector<8x1xf32> to vector<8x256xf32>
    %422 = arith.mulf %419, %421 : vector<8x256xf32>
    %423 = arith.addf %418, %422 : vector<8x256xf32>
    %424 = vector.extract_strided_slice %168 {offsets = [0, 361], sizes = [8, 256], strides = [1, 1]} : vector<8x768xf32> to vector<8x256xf32>
    %425 = vector.extract_strided_slice %164 {offsets = [0, 41], sizes = [8, 1], strides = [1, 1]} : vector<8x49xf32> to vector<8x1xf32>
    %426 = vector.broadcast %425 : vector<8x1xf32> to vector<8x256xf32>
    %427 = arith.mulf %424, %426 : vector<8x256xf32>
    %428 = arith.addf %423, %427 : vector<8x256xf32>
    %429 = vector.extract_strided_slice %168 {offsets = [0, 409], sizes = [8, 256], strides = [1, 1]} : vector<8x768xf32> to vector<8x256xf32>
    %430 = vector.extract_strided_slice %164 {offsets = [0, 48], sizes = [8, 1], strides = [1, 1]} : vector<8x49xf32> to vector<8x1xf32>
    %431 = vector.broadcast %430 : vector<8x1xf32> to vector<8x256xf32>
    %432 = arith.mulf %429, %431 : vector<8x256xf32>
    %433 = arith.addf %428, %432 : vector<8x256xf32>
    %434 = vector.extract_strided_slice %166 {offsets = [6, 0], sizes = [1, 256], strides = [1, 1]} : vector<7x256xf32> to vector<1x256xf32>
    %435 = vector.broadcast %434 : vector<1x256xf32> to vector<8x256xf32>
    %436 = arith.mulf %433, %435 : vector<8x256xf32>
    %437 = arith.addf %399, %436 : vector<8x256xf32>
    %438 = tpu.concatenate %163, %437 in 0 : vector<8x256xf32>, vector<8x256xf32> -> vector<16x256xf32>
    %439 = vector.extract_strided_slice %2 {offsets = [16, 0], sizes = [8, 16], strides = [1, 1]} : vector<112x256xf32> to vector<8x16xf32>
    %cst_9 = arith.constant dense<0.000000e+00> : vector<8x256xf32>
    %440 = tpu.matmul %439, %438, %cst_9 {dimension_numbers = #tpu.dot_dimension_numbers<[1], [0], [0], [1], [0, 0, 1, 1], [], []>} : vector<8x16xf32>, vector<16x256xf32>, vector<8x256xf32> -> vector<8x256xf32>
    %441 = vector.extract_strided_slice %2 {offsets = [16, 16], sizes = [8, 1], strides = [1, 1]} : vector<112x256xf32> to vector<8x1xf32>
    %442 = vector.broadcast %441 : vector<8x1xf32> to vector<8x256xf32>
    %443 = arith.addf %440, %442 : vector<8x256xf32>
    %444 = vector.extract_strided_slice %443 {offsets = [0, 0], sizes = [4, 256], strides = [1, 1]} : vector<8x256xf32> to vector<4x256xf32>
    %445 = vector.extract_strided_slice %443 {offsets = [4, 0], sizes = [4, 256], strides = [1, 1]} : vector<8x256xf32> to vector<4x256xf32>
    %cst_10 = arith.constant dense<0.000000e+00> : vector<256xf32>
    %446 = vector.multi_reduction <add>, %444, %cst_10 [0] : vector<4x256xf32> to vector<256xf32>
    %447 = vector.shape_cast %446 : vector<256xf32> to vector<1x256xf32>
    %cst_11 = arith.constant 4.000000e+00 : f32
    %448 = vector.broadcast %cst_11 : f32 to vector<1x256xf32>
    %449 = arith.divf %447, %448 : vector<1x256xf32>
    %cst_12 = arith.constant dense<0.000000e+00> : vector<256xf32>
    %450 = vector.multi_reduction <add>, %445, %cst_12 [0] : vector<4x256xf32> to vector<256xf32>
    %451 = vector.shape_cast %450 : vector<256xf32> to vector<1x256xf32>
    %cst_13 = arith.constant 4.000000e+00 : f32
    %452 = vector.broadcast %cst_13 : f32 to vector<1x256xf32>
    %453 = arith.divf %451, %452 : vector<1x256xf32>
    %cst_14 = arith.constant dense<0xFF800000> : vector<256xf32>
    %454 = vector.multi_reduction <maximumf>, %444, %cst_14 [0] : vector<4x256xf32> to vector<256xf32>
    %455 = vector.shape_cast %454 : vector<256xf32> to vector<1x256xf32>
    %cst_15 = arith.constant dense<0xFF800000> : vector<256xf32>
    %456 = vector.multi_reduction <maximumf>, %445, %cst_15 [0] : vector<4x256xf32> to vector<256xf32>
    %457 = vector.shape_cast %456 : vector<256xf32> to vector<1x256xf32>
    %458 = tpu.concatenate %449, %453, %455, %457 in 0 : vector<1x256xf32>, vector<1x256xf32>, vector<1x256xf32>, vector<1x256xf32> -> vector<4x256xf32>
    %459 = tpu.concatenate %458, %458 in 0 : vector<4x256xf32>, vector<4x256xf32> -> vector<8x256xf32>
    %cst_16 = arith.constant 0.000000e+00 : f32
    %460 = vector.broadcast %cst_16 : f32 to vector<8x128xf32>
    %461 = tpu.concatenate %460, %459, %460 in 1 : vector<8x128xf32>, vector<8x256xf32>, vector<8x128xf32> -> vector<8x512xf32>
    %462 = vector.extract_strided_slice %2 {offsets = [80, 0], sizes = [8, 49], strides = [1, 1]} : vector<112x256xf32> to vector<8x49xf32>
    %463 = vector.extract_strided_slice %2 {offsets = [104, 0], sizes = [7, 256], strides = [1, 1]} : vector<112x256xf32> to vector<7x256xf32>
    %cst_17 = arith.constant 0.000000e+00 : f32
    %464 = vector.broadcast %cst_17 : f32 to vector<8x256xf32>
    %465 = vector.extract_strided_slice %461 {offsets = [0, 77], sizes = [8, 256], strides = [1, 1]} : vector<8x512xf32> to vector<8x256xf32>
    %466 = vector.extract_strided_slice %462 {offsets = [0, 0], sizes = [8, 1], strides = [1, 1]} : vector<8x49xf32> to vector<8x1xf32>
    %467 = vector.broadcast %466 : vector<8x1xf32> to vector<8x256xf32>
    %468 = arith.mulf %465, %467 : vector<8x256xf32>
    %469 = vector.extract_strided_slice %461 {offsets = [0, 93], sizes = [8, 256], strides = [1, 1]} : vector<8x512xf32> to vector<8x256xf32>
    %470 = vector.extract_strided_slice %462 {offsets = [0, 7], sizes = [8, 1], strides = [1, 1]} : vector<8x49xf32> to vector<8x1xf32>
    %471 = vector.broadcast %470 : vector<8x1xf32> to vector<8x256xf32>
    %472 = arith.mulf %469, %471 : vector<8x256xf32>
    %473 = arith.addf %468, %472 : vector<8x256xf32>
    %474 = vector.extract_strided_slice %461 {offsets = [0, 109], sizes = [8, 256], strides = [1, 1]} : vector<8x512xf32> to vector<8x256xf32>
    %475 = vector.extract_strided_slice %462 {offsets = [0, 14], sizes = [8, 1], strides = [1, 1]} : vector<8x49xf32> to vector<8x1xf32>
    %476 = vector.broadcast %475 : vector<8x1xf32> to vector<8x256xf32>
    %477 = arith.mulf %474, %476 : vector<8x256xf32>
    %478 = arith.addf %473, %477 : vector<8x256xf32>
    %479 = vector.extract_strided_slice %461 {offsets = [0, 125], sizes = [8, 256], strides = [1, 1]} : vector<8x512xf32> to vector<8x256xf32>
    %480 = vector.extract_strided_slice %462 {offsets = [0, 21], sizes = [8, 1], strides = [1, 1]} : vector<8x49xf32> to vector<8x1xf32>
    %481 = vector.broadcast %480 : vector<8x1xf32> to vector<8x256xf32>
    %482 = arith.mulf %479, %481 : vector<8x256xf32>
    %483 = arith.addf %478, %482 : vector<8x256xf32>
    %484 = vector.extract_strided_slice %461 {offsets = [0, 141], sizes = [8, 256], strides = [1, 1]} : vector<8x512xf32> to vector<8x256xf32>
    %485 = vector.extract_strided_slice %462 {offsets = [0, 28], sizes = [8, 1], strides = [1, 1]} : vector<8x49xf32> to vector<8x1xf32>
    %486 = vector.broadcast %485 : vector<8x1xf32> to vector<8x256xf32>
    %487 = arith.mulf %484, %486 : vector<8x256xf32>
    %488 = arith.addf %483, %487 : vector<8x256xf32>
    %489 = vector.extract_strided_slice %461 {offsets = [0, 157], sizes = [8, 256], strides = [1, 1]} : vector<8x512xf32> to vector<8x256xf32>
    %490 = vector.extract_strided_slice %462 {offsets = [0, 35], sizes = [8, 1], strides = [1, 1]} : vector<8x49xf32> to vector<8x1xf32>
    %491 = vector.broadcast %490 : vector<8x1xf32> to vector<8x256xf32>
    %492 = arith.mulf %489, %491 : vector<8x256xf32>
    %493 = arith.addf %488, %492 : vector<8x256xf32>
    %494 = vector.extract_strided_slice %461 {offsets = [0, 173], sizes = [8, 256], strides = [1, 1]} : vector<8x512xf32> to vector<8x256xf32>
    %495 = vector.extract_strided_slice %462 {offsets = [0, 42], sizes = [8, 1], strides = [1, 1]} : vector<8x49xf32> to vector<8x1xf32>
    %496 = vector.broadcast %495 : vector<8x1xf32> to vector<8x256xf32>
    %497 = arith.mulf %494, %496 : vector<8x256xf32>
    %498 = arith.addf %493, %497 : vector<8x256xf32>
    %499 = vector.extract_strided_slice %463 {offsets = [0, 0], sizes = [1, 256], strides = [1, 1]} : vector<7x256xf32> to vector<1x256xf32>
    %500 = vector.broadcast %499 : vector<1x256xf32> to vector<8x256xf32>
    %501 = arith.mulf %498, %500 : vector<8x256xf32>
    %502 = arith.addf %464, %501 : vector<8x256xf32>
    %503 = vector.extract_strided_slice %461 {offsets = [0, 78], sizes = [8, 256], strides = [1, 1]} : vector<8x512xf32> to vector<8x256xf32>
    %504 = vector.extract_strided_slice %462 {offsets = [0, 1], sizes = [8, 1], strides = [1, 1]} : vector<8x49xf32> to vector<8x1xf32>
    %505 = vector.broadcast %504 : vector<8x1xf32> to vector<8x256xf32>
    %506 = arith.mulf %503, %505 : vector<8x256xf32>
    %507 = vector.extract_strided_slice %461 {offsets = [0, 94], sizes = [8, 256], strides = [1, 1]} : vector<8x512xf32> to vector<8x256xf32>
    %508 = vector.extract_strided_slice %462 {offsets = [0, 8], sizes = [8, 1], strides = [1, 1]} : vector<8x49xf32> to vector<8x1xf32>
    %509 = vector.broadcast %508 : vector<8x1xf32> to vector<8x256xf32>
    %510 = arith.mulf %507, %509 : vector<8x256xf32>
    %511 = arith.addf %506, %510 : vector<8x256xf32>
    %512 = vector.extract_strided_slice %461 {offsets = [0, 110], sizes = [8, 256], strides = [1, 1]} : vector<8x512xf32> to vector<8x256xf32>
    %513 = vector.extract_strided_slice %462 {offsets = [0, 15], sizes = [8, 1], strides = [1, 1]} : vector<8x49xf32> to vector<8x1xf32>
    %514 = vector.broadcast %513 : vector<8x1xf32> to vector<8x256xf32>
    %515 = arith.mulf %512, %514 : vector<8x256xf32>
    %516 = arith.addf %511, %515 : vector<8x256xf32>
    %517 = vector.extract_strided_slice %461 {offsets = [0, 126], sizes = [8, 256], strides = [1, 1]} : vector<8x512xf32> to vector<8x256xf32>
    %518 = vector.extract_strided_slice %462 {offsets = [0, 22], sizes = [8, 1], strides = [1, 1]} : vector<8x49xf32> to vector<8x1xf32>
    %519 = vector.broadcast %518 : vector<8x1xf32> to vector<8x256xf32>
    %520 = arith.mulf %517, %519 : vector<8x256xf32>
    %521 = arith.addf %516, %520 : vector<8x256xf32>
    %522 = vector.extract_strided_slice %461 {offsets = [0, 142], sizes = [8, 256], strides = [1, 1]} : vector<8x512xf32> to vector<8x256xf32>
    %523 = vector.extract_strided_slice %462 {offsets = [0, 29], sizes = [8, 1], strides = [1, 1]} : vector<8x49xf32> to vector<8x1xf32>
    %524 = vector.broadcast %523 : vector<8x1xf32> to vector<8x256xf32>
    %525 = arith.mulf %522, %524 : vector<8x256xf32>
    %526 = arith.addf %521, %525 : vector<8x256xf32>
    %527 = vector.extract_strided_slice %461 {offsets = [0, 158], sizes = [8, 256], strides = [1, 1]} : vector<8x512xf32> to vector<8x256xf32>
    %528 = vector.extract_strided_slice %462 {offsets = [0, 36], sizes = [8, 1], strides = [1, 1]} : vector<8x49xf32> to vector<8x1xf32>
    %529 = vector.broadcast %528 : vector<8x1xf32> to vector<8x256xf32>
    %530 = arith.mulf %527, %529 : vector<8x256xf32>
    %531 = arith.addf %526, %530 : vector<8x256xf32>
    %532 = vector.extract_strided_slice %461 {offsets = [0, 174], sizes = [8, 256], strides = [1, 1]} : vector<8x512xf32> to vector<8x256xf32>
    %533 = vector.extract_strided_slice %462 {offsets = [0, 43], sizes = [8, 1], strides = [1, 1]} : vector<8x49xf32> to vector<8x1xf32>
    %534 = vector.broadcast %533 : vector<8x1xf32> to vector<8x256xf32>
    %535 = arith.mulf %532, %534 : vector<8x256xf32>
    %536 = arith.addf %531, %535 : vector<8x256xf32>
    %537 = vector.extract_strided_slice %463 {offsets = [1, 0], sizes = [1, 256], strides = [1, 1]} : vector<7x256xf32> to vector<1x256xf32>
    %538 = vector.broadcast %537 : vector<1x256xf32> to vector<8x256xf32>
    %539 = arith.mulf %536, %538 : vector<8x256xf32>
    %540 = arith.addf %502, %539 : vector<8x256xf32>
    %541 = vector.extract_strided_slice %461 {offsets = [0, 79], sizes = [8, 256], strides = [1, 1]} : vector<8x512xf32> to vector<8x256xf32>
    %542 = vector.extract_strided_slice %462 {offsets = [0, 2], sizes = [8, 1], strides = [1, 1]} : vector<8x49xf32> to vector<8x1xf32>
    %543 = vector.broadcast %542 : vector<8x1xf32> to vector<8x256xf32>
    %544 = arith.mulf %541, %543 : vector<8x256xf32>
    %545 = vector.extract_strided_slice %461 {offsets = [0, 95], sizes = [8, 256], strides = [1, 1]} : vector<8x512xf32> to vector<8x256xf32>
    %546 = vector.extract_strided_slice %462 {offsets = [0, 9], sizes = [8, 1], strides = [1, 1]} : vector<8x49xf32> to vector<8x1xf32>
    %547 = vector.broadcast %546 : vector<8x1xf32> to vector<8x256xf32>
    %548 = arith.mulf %545, %547 : vector<8x256xf32>
    %549 = arith.addf %544, %548 : vector<8x256xf32>
    %550 = vector.extract_strided_slice %461 {offsets = [0, 111], sizes = [8, 256], strides = [1, 1]} : vector<8x512xf32> to vector<8x256xf32>
    %551 = vector.extract_strided_slice %462 {offsets = [0, 16], sizes = [8, 1], strides = [1, 1]} : vector<8x49xf32> to vector<8x1xf32>
    %552 = vector.broadcast %551 : vector<8x1xf32> to vector<8x256xf32>
    %553 = arith.mulf %550, %552 : vector<8x256xf32>
    %554 = arith.addf %549, %553 : vector<8x256xf32>
    %555 = vector.extract_strided_slice %461 {offsets = [0, 127], sizes = [8, 256], strides = [1, 1]} : vector<8x512xf32> to vector<8x256xf32>
    %556 = vector.extract_strided_slice %462 {offsets = [0, 23], sizes = [8, 1], strides = [1, 1]} : vector<8x49xf32> to vector<8x1xf32>
    %557 = vector.broadcast %556 : vector<8x1xf32> to vector<8x256xf32>
    %558 = arith.mulf %555, %557 : vector<8x256xf32>
    %559 = arith.addf %554, %558 : vector<8x256xf32>
    %560 = vector.extract_strided_slice %461 {offsets = [0, 143], sizes = [8, 256], strides = [1, 1]} : vector<8x512xf32> to vector<8x256xf32>
    %561 = vector.extract_strided_slice %462 {offsets = [0, 30], sizes = [8, 1], strides = [1, 1]} : vector<8x49xf32> to vector<8x1xf32>
    %562 = vector.broadcast %561 : vector<8x1xf32> to vector<8x256xf32>
    %563 = arith.mulf %560, %562 : vector<8x256xf32>
    %564 = arith.addf %559, %563 : vector<8x256xf32>
    %565 = vector.extract_strided_slice %461 {offsets = [0, 159], sizes = [8, 256], strides = [1, 1]} : vector<8x512xf32> to vector<8x256xf32>
    %566 = vector.extract_strided_slice %462 {offsets = [0, 37], sizes = [8, 1], strides = [1, 1]} : vector<8x49xf32> to vector<8x1xf32>
    %567 = vector.broadcast %566 : vector<8x1xf32> to vector<8x256xf32>
    %568 = arith.mulf %565, %567 : vector<8x256xf32>
    %569 = arith.addf %564, %568 : vector<8x256xf32>
    %570 = vector.extract_strided_slice %461 {offsets = [0, 175], sizes = [8, 256], strides = [1, 1]} : vector<8x512xf32> to vector<8x256xf32>
    %571 = vector.extract_strided_slice %462 {offsets = [0, 44], sizes = [8, 1], strides = [1, 1]} : vector<8x49xf32> to vector<8x1xf32>
    %572 = vector.broadcast %571 : vector<8x1xf32> to vector<8x256xf32>
    %573 = arith.mulf %570, %572 : vector<8x256xf32>
    %574 = arith.addf %569, %573 : vector<8x256xf32>
    %575 = vector.extract_strided_slice %463 {offsets = [2, 0], sizes = [1, 256], strides = [1, 1]} : vector<7x256xf32> to vector<1x256xf32>
    %576 = vector.broadcast %575 : vector<1x256xf32> to vector<8x256xf32>
    %577 = arith.mulf %574, %576 : vector<8x256xf32>
    %578 = arith.addf %540, %577 : vector<8x256xf32>
    %579 = vector.extract_strided_slice %461 {offsets = [0, 80], sizes = [8, 256], strides = [1, 1]} : vector<8x512xf32> to vector<8x256xf32>
    %580 = vector.extract_strided_slice %462 {offsets = [0, 3], sizes = [8, 1], strides = [1, 1]} : vector<8x49xf32> to vector<8x1xf32>
    %581 = vector.broadcast %580 : vector<8x1xf32> to vector<8x256xf32>
    %582 = arith.mulf %579, %581 : vector<8x256xf32>
    %583 = vector.extract_strided_slice %461 {offsets = [0, 96], sizes = [8, 256], strides = [1, 1]} : vector<8x512xf32> to vector<8x256xf32>
    %584 = vector.extract_strided_slice %462 {offsets = [0, 10], sizes = [8, 1], strides = [1, 1]} : vector<8x49xf32> to vector<8x1xf32>
    %585 = vector.broadcast %584 : vector<8x1xf32> to vector<8x256xf32>
    %586 = arith.mulf %583, %585 : vector<8x256xf32>
    %587 = arith.addf %582, %586 : vector<8x256xf32>
    %588 = vector.extract_strided_slice %461 {offsets = [0, 112], sizes = [8, 256], strides = [1, 1]} : vector<8x512xf32> to vector<8x256xf32>
    %589 = vector.extract_strided_slice %462 {offsets = [0, 17], sizes = [8, 1], strides = [1, 1]} : vector<8x49xf32> to vector<8x1xf32>
    %590 = vector.broadcast %589 : vector<8x1xf32> to vector<8x256xf32>
    %591 = arith.mulf %588, %590 : vector<8x256xf32>
    %592 = arith.addf %587, %591 : vector<8x256xf32>
    %593 = vector.extract_strided_slice %461 {offsets = [0, 128], sizes = [8, 256], strides = [1, 1]} : vector<8x512xf32> to vector<8x256xf32>
    %594 = vector.extract_strided_slice %462 {offsets = [0, 24], sizes = [8, 1], strides = [1, 1]} : vector<8x49xf32> to vector<8x1xf32>
    %595 = vector.broadcast %594 : vector<8x1xf32> to vector<8x256xf32>
    %596 = arith.mulf %593, %595 : vector<8x256xf32>
    %597 = arith.addf %592, %596 : vector<8x256xf32>
    %598 = vector.extract_strided_slice %461 {offsets = [0, 144], sizes = [8, 256], strides = [1, 1]} : vector<8x512xf32> to vector<8x256xf32>
    %599 = vector.extract_strided_slice %462 {offsets = [0, 31], sizes = [8, 1], strides = [1, 1]} : vector<8x49xf32> to vector<8x1xf32>
    %600 = vector.broadcast %599 : vector<8x1xf32> to vector<8x256xf32>
    %601 = arith.mulf %598, %600 : vector<8x256xf32>
    %602 = arith.addf %597, %601 : vector<8x256xf32>
    %603 = vector.extract_strided_slice %461 {offsets = [0, 160], sizes = [8, 256], strides = [1, 1]} : vector<8x512xf32> to vector<8x256xf32>
    %604 = vector.extract_strided_slice %462 {offsets = [0, 38], sizes = [8, 1], strides = [1, 1]} : vector<8x49xf32> to vector<8x1xf32>
    %605 = vector.broadcast %604 : vector<8x1xf32> to vector<8x256xf32>
    %606 = arith.mulf %603, %605 : vector<8x256xf32>
    %607 = arith.addf %602, %606 : vector<8x256xf32>
    %608 = vector.extract_strided_slice %461 {offsets = [0, 176], sizes = [8, 256], strides = [1, 1]} : vector<8x512xf32> to vector<8x256xf32>
    %609 = vector.extract_strided_slice %462 {offsets = [0, 45], sizes = [8, 1], strides = [1, 1]} : vector<8x49xf32> to vector<8x1xf32>
    %610 = vector.broadcast %609 : vector<8x1xf32> to vector<8x256xf32>
    %611 = arith.mulf %608, %610 : vector<8x256xf32>
    %612 = arith.addf %607, %611 : vector<8x256xf32>
    %613 = vector.extract_strided_slice %463 {offsets = [3, 0], sizes = [1, 256], strides = [1, 1]} : vector<7x256xf32> to vector<1x256xf32>
    %614 = vector.broadcast %613 : vector<1x256xf32> to vector<8x256xf32>
    %615 = arith.mulf %612, %614 : vector<8x256xf32>
    %616 = arith.addf %578, %615 : vector<8x256xf32>
    %617 = vector.extract_strided_slice %461 {offsets = [0, 81], sizes = [8, 256], strides = [1, 1]} : vector<8x512xf32> to vector<8x256xf32>
    %618 = vector.extract_strided_slice %462 {offsets = [0, 4], sizes = [8, 1], strides = [1, 1]} : vector<8x49xf32> to vector<8x1xf32>
    %619 = vector.broadcast %618 : vector<8x1xf32> to vector<8x256xf32>
    %620 = arith.mulf %617, %619 : vector<8x256xf32>
    %621 = vector.extract_strided_slice %461 {offsets = [0, 97], sizes = [8, 256], strides = [1, 1]} : vector<8x512xf32> to vector<8x256xf32>
    %622 = vector.extract_strided_slice %462 {offsets = [0, 11], sizes = [8, 1], strides = [1, 1]} : vector<8x49xf32> to vector<8x1xf32>
    %623 = vector.broadcast %622 : vector<8x1xf32> to vector<8x256xf32>
    %624 = arith.mulf %621, %623 : vector<8x256xf32>
    %625 = arith.addf %620, %624 : vector<8x256xf32>
    %626 = vector.extract_strided_slice %461 {offsets = [0, 113], sizes = [8, 256], strides = [1, 1]} : vector<8x512xf32> to vector<8x256xf32>
    %627 = vector.extract_strided_slice %462 {offsets = [0, 18], sizes = [8, 1], strides = [1, 1]} : vector<8x49xf32> to vector<8x1xf32>
    %628 = vector.broadcast %627 : vector<8x1xf32> to vector<8x256xf32>
    %629 = arith.mulf %626, %628 : vector<8x256xf32>
    %630 = arith.addf %625, %629 : vector<8x256xf32>
    %631 = vector.extract_strided_slice %461 {offsets = [0, 129], sizes = [8, 256], strides = [1, 1]} : vector<8x512xf32> to vector<8x256xf32>
    %632 = vector.extract_strided_slice %462 {offsets = [0, 25], sizes = [8, 1], strides = [1, 1]} : vector<8x49xf32> to vector<8x1xf32>
    %633 = vector.broadcast %632 : vector<8x1xf32> to vector<8x256xf32>
    %634 = arith.mulf %631, %633 : vector<8x256xf32>
    %635 = arith.addf %630, %634 : vector<8x256xf32>
    %636 = vector.extract_strided_slice %461 {offsets = [0, 145], sizes = [8, 256], strides = [1, 1]} : vector<8x512xf32> to vector<8x256xf32>
    %637 = vector.extract_strided_slice %462 {offsets = [0, 32], sizes = [8, 1], strides = [1, 1]} : vector<8x49xf32> to vector<8x1xf32>
    %638 = vector.broadcast %637 : vector<8x1xf32> to vector<8x256xf32>
    %639 = arith.mulf %636, %638 : vector<8x256xf32>
    %640 = arith.addf %635, %639 : vector<8x256xf32>
    %641 = vector.extract_strided_slice %461 {offsets = [0, 161], sizes = [8, 256], strides = [1, 1]} : vector<8x512xf32> to vector<8x256xf32>
    %642 = vector.extract_strided_slice %462 {offsets = [0, 39], sizes = [8, 1], strides = [1, 1]} : vector<8x49xf32> to vector<8x1xf32>
    %643 = vector.broadcast %642 : vector<8x1xf32> to vector<8x256xf32>
    %644 = arith.mulf %641, %643 : vector<8x256xf32>
    %645 = arith.addf %640, %644 : vector<8x256xf32>
    %646 = vector.extract_strided_slice %461 {offsets = [0, 177], sizes = [8, 256], strides = [1, 1]} : vector<8x512xf32> to vector<8x256xf32>
    %647 = vector.extract_strided_slice %462 {offsets = [0, 46], sizes = [8, 1], strides = [1, 1]} : vector<8x49xf32> to vector<8x1xf32>
    %648 = vector.broadcast %647 : vector<8x1xf32> to vector<8x256xf32>
    %649 = arith.mulf %646, %648 : vector<8x256xf32>
    %650 = arith.addf %645, %649 : vector<8x256xf32>
    %651 = vector.extract_strided_slice %463 {offsets = [4, 0], sizes = [1, 256], strides = [1, 1]} : vector<7x256xf32> to vector<1x256xf32>
    %652 = vector.broadcast %651 : vector<1x256xf32> to vector<8x256xf32>
    %653 = arith.mulf %650, %652 : vector<8x256xf32>
    %654 = arith.addf %616, %653 : vector<8x256xf32>
    %655 = vector.extract_strided_slice %461 {offsets = [0, 82], sizes = [8, 256], strides = [1, 1]} : vector<8x512xf32> to vector<8x256xf32>
    %656 = vector.extract_strided_slice %462 {offsets = [0, 5], sizes = [8, 1], strides = [1, 1]} : vector<8x49xf32> to vector<8x1xf32>
    %657 = vector.broadcast %656 : vector<8x1xf32> to vector<8x256xf32>
    %658 = arith.mulf %655, %657 : vector<8x256xf32>
    %659 = vector.extract_strided_slice %461 {offsets = [0, 98], sizes = [8, 256], strides = [1, 1]} : vector<8x512xf32> to vector<8x256xf32>
    %660 = vector.extract_strided_slice %462 {offsets = [0, 12], sizes = [8, 1], strides = [1, 1]} : vector<8x49xf32> to vector<8x1xf32>
    %661 = vector.broadcast %660 : vector<8x1xf32> to vector<8x256xf32>
    %662 = arith.mulf %659, %661 : vector<8x256xf32>
    %663 = arith.addf %658, %662 : vector<8x256xf32>
    %664 = vector.extract_strided_slice %461 {offsets = [0, 114], sizes = [8, 256], strides = [1, 1]} : vector<8x512xf32> to vector<8x256xf32>
    %665 = vector.extract_strided_slice %462 {offsets = [0, 19], sizes = [8, 1], strides = [1, 1]} : vector<8x49xf32> to vector<8x1xf32>
    %666 = vector.broadcast %665 : vector<8x1xf32> to vector<8x256xf32>
    %667 = arith.mulf %664, %666 : vector<8x256xf32>
    %668 = arith.addf %663, %667 : vector<8x256xf32>
    %669 = vector.extract_strided_slice %461 {offsets = [0, 130], sizes = [8, 256], strides = [1, 1]} : vector<8x512xf32> to vector<8x256xf32>
    %670 = vector.extract_strided_slice %462 {offsets = [0, 26], sizes = [8, 1], strides = [1, 1]} : vector<8x49xf32> to vector<8x1xf32>
    %671 = vector.broadcast %670 : vector<8x1xf32> to vector<8x256xf32>
    %672 = arith.mulf %669, %671 : vector<8x256xf32>
    %673 = arith.addf %668, %672 : vector<8x256xf32>
    %674 = vector.extract_strided_slice %461 {offsets = [0, 146], sizes = [8, 256], strides = [1, 1]} : vector<8x512xf32> to vector<8x256xf32>
    %675 = vector.extract_strided_slice %462 {offsets = [0, 33], sizes = [8, 1], strides = [1, 1]} : vector<8x49xf32> to vector<8x1xf32>
    %676 = vector.broadcast %675 : vector<8x1xf32> to vector<8x256xf32>
    %677 = arith.mulf %674, %676 : vector<8x256xf32>
    %678 = arith.addf %673, %677 : vector<8x256xf32>
    %679 = vector.extract_strided_slice %461 {offsets = [0, 162], sizes = [8, 256], strides = [1, 1]} : vector<8x512xf32> to vector<8x256xf32>
    %680 = vector.extract_strided_slice %462 {offsets = [0, 40], sizes = [8, 1], strides = [1, 1]} : vector<8x49xf32> to vector<8x1xf32>
    %681 = vector.broadcast %680 : vector<8x1xf32> to vector<8x256xf32>
    %682 = arith.mulf %679, %681 : vector<8x256xf32>
    %683 = arith.addf %678, %682 : vector<8x256xf32>
    %684 = vector.extract_strided_slice %461 {offsets = [0, 178], sizes = [8, 256], strides = [1, 1]} : vector<8x512xf32> to vector<8x256xf32>
    %685 = vector.extract_strided_slice %462 {offsets = [0, 47], sizes = [8, 1], strides = [1, 1]} : vector<8x49xf32> to vector<8x1xf32>
    %686 = vector.broadcast %685 : vector<8x1xf32> to vector<8x256xf32>
    %687 = arith.mulf %684, %686 : vector<8x256xf32>
    %688 = arith.addf %683, %687 : vector<8x256xf32>
    %689 = vector.extract_strided_slice %463 {offsets = [5, 0], sizes = [1, 256], strides = [1, 1]} : vector<7x256xf32> to vector<1x256xf32>
    %690 = vector.broadcast %689 : vector<1x256xf32> to vector<8x256xf32>
    %691 = arith.mulf %688, %690 : vector<8x256xf32>
    %692 = arith.addf %654, %691 : vector<8x256xf32>
    %693 = vector.extract_strided_slice %461 {offsets = [0, 83], sizes = [8, 256], strides = [1, 1]} : vector<8x512xf32> to vector<8x256xf32>
    %694 = vector.extract_strided_slice %462 {offsets = [0, 6], sizes = [8, 1], strides = [1, 1]} : vector<8x49xf32> to vector<8x1xf32>
    %695 = vector.broadcast %694 : vector<8x1xf32> to vector<8x256xf32>
    %696 = arith.mulf %693, %695 : vector<8x256xf32>
    %697 = vector.extract_strided_slice %461 {offsets = [0, 99], sizes = [8, 256], strides = [1, 1]} : vector<8x512xf32> to vector<8x256xf32>
    %698 = vector.extract_strided_slice %462 {offsets = [0, 13], sizes = [8, 1], strides = [1, 1]} : vector<8x49xf32> to vector<8x1xf32>
    %699 = vector.broadcast %698 : vector<8x1xf32> to vector<8x256xf32>
    %700 = arith.mulf %697, %699 : vector<8x256xf32>
    %701 = arith.addf %696, %700 : vector<8x256xf32>
    %702 = vector.extract_strided_slice %461 {offsets = [0, 115], sizes = [8, 256], strides = [1, 1]} : vector<8x512xf32> to vector<8x256xf32>
    %703 = vector.extract_strided_slice %462 {offsets = [0, 20], sizes = [8, 1], strides = [1, 1]} : vector<8x49xf32> to vector<8x1xf32>
    %704 = vector.broadcast %703 : vector<8x1xf32> to vector<8x256xf32>
    %705 = arith.mulf %702, %704 : vector<8x256xf32>
    %706 = arith.addf %701, %705 : vector<8x256xf32>
    %707 = vector.extract_strided_slice %461 {offsets = [0, 131], sizes = [8, 256], strides = [1, 1]} : vector<8x512xf32> to vector<8x256xf32>
    %708 = vector.extract_strided_slice %462 {offsets = [0, 27], sizes = [8, 1], strides = [1, 1]} : vector<8x49xf32> to vector<8x1xf32>
    %709 = vector.broadcast %708 : vector<8x1xf32> to vector<8x256xf32>
    %710 = arith.mulf %707, %709 : vector<8x256xf32>
    %711 = arith.addf %706, %710 : vector<8x256xf32>
    %712 = vector.extract_strided_slice %461 {offsets = [0, 147], sizes = [8, 256], strides = [1, 1]} : vector<8x512xf32> to vector<8x256xf32>
    %713 = vector.extract_strided_slice %462 {offsets = [0, 34], sizes = [8, 1], strides = [1, 1]} : vector<8x49xf32> to vector<8x1xf32>
    %714 = vector.broadcast %713 : vector<8x1xf32> to vector<8x256xf32>
    %715 = arith.mulf %712, %714 : vector<8x256xf32>
    %716 = arith.addf %711, %715 : vector<8x256xf32>
    %717 = vector.extract_strided_slice %461 {offsets = [0, 163], sizes = [8, 256], strides = [1, 1]} : vector<8x512xf32> to vector<8x256xf32>
    %718 = vector.extract_strided_slice %462 {offsets = [0, 41], sizes = [8, 1], strides = [1, 1]} : vector<8x49xf32> to vector<8x1xf32>
    %719 = vector.broadcast %718 : vector<8x1xf32> to vector<8x256xf32>
    %720 = arith.mulf %717, %719 : vector<8x256xf32>
    %721 = arith.addf %716, %720 : vector<8x256xf32>
    %722 = vector.extract_strided_slice %461 {offsets = [0, 179], sizes = [8, 256], strides = [1, 1]} : vector<8x512xf32> to vector<8x256xf32>
    %723 = vector.extract_strided_slice %462 {offsets = [0, 48], sizes = [8, 1], strides = [1, 1]} : vector<8x49xf32> to vector<8x1xf32>
    %724 = vector.broadcast %723 : vector<8x1xf32> to vector<8x256xf32>
    %725 = arith.mulf %722, %724 : vector<8x256xf32>
    %726 = arith.addf %721, %725 : vector<8x256xf32>
    %727 = vector.extract_strided_slice %463 {offsets = [6, 0], sizes = [1, 256], strides = [1, 1]} : vector<7x256xf32> to vector<1x256xf32>
    %728 = vector.broadcast %727 : vector<1x256xf32> to vector<8x256xf32>
    %729 = arith.mulf %726, %728 : vector<8x256xf32>
    %730 = arith.addf %692, %729 : vector<8x256xf32>
    %731 = vector.extract_strided_slice %2 {offsets = [56, 0], sizes = [8, 8], strides = [1, 1]} : vector<112x256xf32> to vector<8x8xf32>
    %cst_18 = arith.constant dense<0.000000e+00> : vector<8x256xf32>
    %732 = tpu.matmul %731, %730, %cst_18 {dimension_numbers = #tpu.dot_dimension_numbers<[1], [0], [0], [1], [0, 0, 1, 1], [], []>} : vector<8x8xf32>, vector<8x256xf32>, vector<8x256xf32> -> vector<8x256xf32>
    %733 = vector.extract_strided_slice %2 {offsets = [56, 8], sizes = [8, 1], strides = [1, 1]} : vector<112x256xf32> to vector<8x1xf32>
    %734 = vector.broadcast %733 : vector<8x1xf32> to vector<8x256xf32>
    %735 = arith.addf %732, %734 : vector<8x256xf32>
    %736 = arith.negf %735 : vector<8x256xf32>
    %737 = math.exp %736 : vector<8x256xf32>
    %cst_19 = arith.constant 1.000000e+00 : f32
    %738 = vector.broadcast %cst_19 : f32 to vector<8x256xf32>
    %739 = arith.addf %738, %737 : vector<8x256xf32>
    %740 = arith.divf %738, %739 : vector<8x256xf32>
    %741 = arith.mulf %443, %740 : vector<8x256xf32>
    %742 = vector.extract_strided_slice %2 {offsets = [24, 0], sizes = [8, 8], strides = [1, 1]} : vector<112x256xf32> to vector<8x8xf32>
    %cst_20 = arith.constant dense<0.000000e+00> : vector<8x256xf32>
    %743 = tpu.matmul %742, %741, %cst_20 {dimension_numbers = #tpu.dot_dimension_numbers<[1], [0], [0], [1], [0, 0, 1, 1], [], []>} : vector<8x8xf32>, vector<8x256xf32>, vector<8x256xf32> -> vector<8x256xf32>
    %744 = vector.extract_strided_slice %2 {offsets = [24, 8], sizes = [8, 1], strides = [1, 1]} : vector<112x256xf32> to vector<8x1xf32>
    %745 = vector.broadcast %744 : vector<8x1xf32> to vector<8x256xf32>
    %746 = arith.addf %743, %745 : vector<8x256xf32>
    %747 = arith.mulf %15, %746 : vector<8x256xf32>
    %748 = vector.extract_strided_slice %2 {offsets = [32, 0], sizes = [8, 8], strides = [1, 1]} : vector<112x256xf32> to vector<8x8xf32>
    %cst_21 = arith.constant dense<0.000000e+00> : vector<8x256xf32>
    %749 = tpu.matmul %748, %747, %cst_21 {dimension_numbers = #tpu.dot_dimension_numbers<[1], [0], [0], [1], [0, 0, 1, 1], [], []>} : vector<8x8xf32>, vector<8x256xf32>, vector<8x256xf32> -> vector<8x256xf32>
    %750 = vector.extract_strided_slice %2 {offsets = [32, 8], sizes = [8, 1], strides = [1, 1]} : vector<112x256xf32> to vector<8x1xf32>
    %751 = vector.broadcast %750 : vector<8x1xf32> to vector<8x256xf32>
    %752 = arith.addf %749, %751 : vector<8x256xf32>
    %753 = arith.negf %752 : vector<8x256xf32>
    %754 = math.exp %753 : vector<8x256xf32>
    %cst_22 = arith.constant 1.000000e+00 : f32
    %755 = vector.broadcast %cst_22 : f32 to vector<8x256xf32>
    %756 = arith.addf %755, %754 : vector<8x256xf32>
    %757 = arith.divf %755, %756 : vector<8x256xf32>
    %758 = arith.mulf %752, %757 : vector<8x256xf32>
    %759 = vector.extract_strided_slice %2 {offsets = [40, 0], sizes = [16, 8], strides = [1, 1]} : vector<112x256xf32> to vector<16x8xf32>
    %cst_23 = arith.constant dense<0.000000e+00> : vector<16x256xf32>
    %760 = tpu.matmul %759, %14, %cst_23 {dimension_numbers = #tpu.dot_dimension_numbers<[1], [0], [0], [1], [0, 0, 1, 1], [], []>} : vector<16x8xf32>, vector<8x256xf32>, vector<16x256xf32> -> vector<16x256xf32>
    %761 = vector.extract_strided_slice %2 {offsets = [40, 8], sizes = [16, 8], strides = [1, 1]} : vector<112x256xf32> to vector<16x8xf32>
    %cst_24 = arith.constant dense<0.000000e+00> : vector<16x256xf32>
    %762 = tpu.matmul %761, %747, %cst_24 {dimension_numbers = #tpu.dot_dimension_numbers<[1], [0], [0], [1], [0, 0, 1, 1], [], []>} : vector<16x8xf32>, vector<8x256xf32>, vector<16x256xf32> -> vector<16x256xf32>
    %763 = arith.addf %760, %762 : vector<16x256xf32>
    %764 = vector.extract_strided_slice %2 {offsets = [40, 16], sizes = [16, 8], strides = [1, 1]} : vector<112x256xf32> to vector<16x8xf32>
    %cst_25 = arith.constant dense<0.000000e+00> : vector<16x256xf32>
    %765 = tpu.matmul %764, %758, %cst_25 {dimension_numbers = #tpu.dot_dimension_numbers<[1], [0], [0], [1], [0, 0, 1, 1], [], []>} : vector<16x8xf32>, vector<8x256xf32>, vector<16x256xf32> -> vector<16x256xf32>
    %766 = arith.addf %763, %765 : vector<16x256xf32>
    %767 = vector.extract_strided_slice %2 {offsets = [40, 24], sizes = [16, 1], strides = [1, 1]} : vector<112x256xf32> to vector<16x1xf32>
    %768 = vector.broadcast %767 : vector<16x1xf32> to vector<16x256xf32>
    %769 = arith.addf %766, %768 : vector<16x256xf32>
    %770 = arith.negf %769 : vector<16x256xf32>
    %771 = math.exp %770 : vector<16x256xf32>
    %cst_26 = arith.constant 1.000000e+00 : f32
    %772 = vector.broadcast %cst_26 : f32 to vector<16x256xf32>
    %773 = arith.addf %772, %771 : vector<16x256xf32>
    %774 = arith.divf %772, %773 : vector<16x256xf32>
    %775 = arith.mulf %769, %774 : vector<16x256xf32>
    %c0_27 = arith.constant 0 : index
    %c0_28 = arith.constant 0 : index
    %c0_29 = arith.constant 0 : index
    %776 = vector.load %arg3[%c0_27, %c0_28, %c0_29] : memref<1x16x256xf32, #tpu.memory_space<vmem>>, vector<1x16x256xf32>
    %777 = vector.shape_cast %776 : vector<1x16x256xf32> to vector<16x256xf32>
    %778 = vector.shape_cast %775 : vector<16x256xf32> to vector<1x16x256xf32>
    tpu.vector_store %arg3[%c0_27, %c0_28, %c0_29], %778 {strides = array<i32>} : memref<1x16x256xf32, #tpu.memory_space<vmem>>, vector<1x16x256xf32>,
    return
  }
  func.func @transform_0(%arg0: i32) -> (i32, i32, i32) {
    %c0_i32 = arith.constant 0 : i32
    %c0_i32_0 = arith.constant 0 : i32
    %c0_i32_1 = arith.constant 0 : i32
    return %arg0, %c0_i32, %c0_i32_0 : i32, i32, i32
  }
  func.func @transform_1(%arg0: i32) -> (i32, i32) {
    %c0_i32 = arith.constant 0 : i32
    %c0_i32_0 = arith.constant 0 : i32
    %c0_i32_1 = arith.constant 0 : i32
    return %c0_i32, %c0_i32_0 : i32, i32
  }
  func.func @transform_2(%arg0: i32) -> (i32, i32, i32) {
    %c0_i32 = arith.constant 0 : i32
    %c0_i32_0 = arith.constant 0 : i32
    %c0_i32_1 = arith.constant 0 : i32
    return %arg0, %c0_i32, %c0_i32_0 : i32, i32, i32
  }
}

</mosaic_0001>

<llo_original>
// kernel: _mea_forward_jit.1
$region0: #{_mea_forward_jit.1}
  #allocation0 [shape = 'u32[]', space=smem, size = 0x4, offset = 0x4, fixed_abs, tag = 'smem constant byte address 0x4 - core index']
  #allocation1 [shape = 'u32[72,128]{1,0:T(1,128)}', space=vmem, size = 0x9000, scoped, tag = 'internal scratch']
  %s0 = inlined_call_operand.vmem [shape: f32[1,16,256], index: 0, kind: input, shape index: {}]
  %s1 = inlined_call_operand.vmem [shape: f32[112,256], index: 1, kind: input, shape index: {}]
  %s2 = inlined_call_operand.vmem [shape: f32[1,16,256], index: 2, kind: output, shape index: {}]
  %s3 = sld [smem:[#allocation0]]
  $region18: #{_mea_forward_jit.1} parent=0
    _
  %s5 = ssub.s32 1, %s3
  %s6 = scalar_select 0, %s5, %s3
  // Predicated region
  $region2: #{_mea_forward_jit.1} parent=0 // pred_check
    _
  $region3: #{_mea_forward_jit.1} parent=0 // pred_check_branch
    %8 = sbr.rel (0) target = $region5
  $region4: #{_mea_forward_jit.1} parent=0 // pred_region
    _
  $region5: #{_mea_forward_jit.1} parent=0 // pred_fallthru
    _
  // Predicated region
  $region6: #{_mea_forward_jit.1} parent=0 // pred_check
    _
  $region7: #{_mea_forward_jit.1} parent=0 // pred_check_branch
    %10 = sbr.rel (0) target = $region9
  $region8: #{_mea_forward_jit.1} parent=0 // pred_region
    _
  $region9: #{_mea_forward_jit.1} parent=0 // pred_fallthru
    _
  %v11 = vld [vmem:[%s0] sm:$0xff]
  %v12 = vld [vmem:[%s0 + $0x8] sm:$0xff]
  %v13 = vld [vmem:[%s0 + $0x10] sm:$0xff]
  %v14 = vld [vmem:[%s0 + $0x18] sm:$0xff]
  %v15 = vld [vmem:[%s1] sm:$0xff]
  %v16 = vld [vmem:[%s1 + $0x10] sm:$0xff]
  %v17 = vld [vmem:[%s1 + $0x20] sm:$0xff]
  %v18 = vld [vmem:[%s1 + $0x30] sm:$0xff]
  %v19 = vld [vmem:[%s1 + $0x40] sm:$0xff]
  %v20 = vld [vmem:[%s1 + $0x50] sm:$0xff]
  %v21 = vld [vmem:[%s1 + $0x60] sm:$0xff]
  %v22 = vld [vmem:[%s1 + $0x70] sm:$0xff]
  %v23 = vld [vmem:[%s1 + $0x80] sm:$0xff]
  %v24 = vld [vmem:[%s1 + $0x90] sm:$0xff]
  %v25 = vld [vmem:[%s1 + $0xa0] sm:$0xff]
  %v26 = vld [vmem:[%s1 + $0xb0] sm:$0xff]
  %v27 = vld [vmem:[%s1 + $0xb8] sm:$0xff]
  %v28 = vld [vmem:[%s1 + $0xc0] sm:$0xff]
  %v29 = vld [vmem:[%s1 + $0xc8] sm:$0xff]
  %v30 = vld [vmem:[%s1 + $0xd0] sm:$0xff]
  %v31 = vld [vmem:[%s1 + $0xd8] sm:$0xff]
  %33 = vset.pattern.permute.xlu0 16
  %34 = vperm.xlu0 %33, %v15
  %v35 = vpop.permute.xlu0 %34
  %38 = vset.pattern.permute.xlu0 16
  %39 = vperm.xlu0 %38, %v16
  %v40 = vpop.permute.xlu0 %39
  %vm42 = vcmask 130048
  %v43 = vsel %vm42, %v15, 0
  %v45 = vsel %vm42, %v16, 0
  %47 = vmatpush.msra.mxu0 0.0
  %48 = vmatpush.msra.mxu0 0.0
  %49 = vmatpush.msra.mxu0 0.0
  %50 = vmatpush.msra.mxu0 0.0
  %51 = vmatpush.msra.mxu0 0.0
  %52 = vmatpush.msra.mxu0 0.0
  %53 = vmatpush.msra.mxu0 0.0
  %54 = vmatpush.msra.mxu0 0.0
  %55 = vmatpush.msra.mxu0 0.0
  %56 = vmatpush.msra.mxu0 0.0
  %57 = vmatpush.msra.mxu0 0.0
  %58 = vmatpush.msra.mxu0 0.0
  %59 = vmatpush.msra.mxu0 0.0
  %60 = vmatpush.msra.mxu0 0.0
  %61 = vmatpush.msra.mxu0 %v13
  %62 = vmatpush.msra.mxu0 %v11
  %63 = vmatmul.f32.gmra.mxu0 %v43
  %v64 = vpop.f32.mrf.mxu0
  %v65 = vadd.f32 %v35, %v64
  %66 = vmatmul.f32.gmra.mxu0 %v45
  %v67 = vpop.f32.mrf.mxu0
  %v68 = vadd.f32 %v40, %v67
  %69 = vdwg.mxu0
  %70 = vmatpush.msra.mxu0 0.0
  %71 = vmatpush.msra.mxu0 0.0
  %72 = vmatpush.msra.mxu0 0.0
  %73 = vmatpush.msra.mxu0 0.0
  %74 = vmatpush.msra.mxu0 0.0
  %75 = vmatpush.msra.mxu0 0.0
  %76 = vmatpush.msra.mxu0 0.0
  %77 = vmatpush.msra.mxu0 0.0
  %78 = vmatpush.msra.mxu0 0.0
  %79 = vmatpush.msra.mxu0 0.0
  %80 = vmatpush.msra.mxu0 0.0
  %81 = vmatpush.msra.mxu0 0.0
  %82 = vmatpush.msra.mxu0 0.0
  %83 = vmatpush.msra.mxu0 0.0
  %84 = vmatpush.msra.mxu0 %v14
  %85 = vmatpush.msra.mxu0 %v12
  %86 = vmatmul.f32.gmra.mxu0 %v43
  %v87 = vpop.f32.mrf.mxu0
  %v88 = vadd.f32 %v35, %v87
  %89 = vmatmul.f32.gmra.mxu0 %v45
  %v90 = vpop.f32.mrf.mxu0
  %v91 = vadd.f32 %v40, %v90
  %92 = vdwg.mxu0
  %v93 = vxor.u32 %v65, 2147483648
  %v94 = vxor.u32 %v88, 2147483648
  %v95 = vxor.u32 %v68, 2147483648
  %v96 = vxor.u32 %v91, 2147483648
  %v97 = vmul.f32 %v93, 1.442695
  %v98 = vpow.pop %v97
  %v99 = vmul.f32 %v94, 1.442695
  %v100 = vpow.pop %v99
  %v101 = vmul.f32 %v95, 1.442695
  %v102 = vpow.pop %v101
  %v103 = vmul.f32 %v96, 1.442695
  %v104 = vpow.pop %v103
  %v105 = vadd.f32 %v98, 1.0
  %v106 = vadd.f32 %v100, 1.0
  %v107 = vadd.f32 %v102, 1.0
  %v108 = vadd.f32 %v104, 1.0
  %v109 = vrcp.pop %v105
  %v110 = vmul.f32 %v105, %v109
  %v111 = vsub.f32 1.0, %v110
  %v112 = vmul.f32 %v109, %v111
  %v113 = vadd.f32 %v109, %v112
  %vm114 = vweird.f32 %v105
  %vm115 = vweird.f32 %v109
  %vm116 = vmor %vm114, %vm115
  %v117 = vsel %vm116, %v109, %v113
  %v118 = vand.u32 2147483647, %v105
  %vm119 = vcmp.eq.f32.partialorder %v118, 8.507059e+37
  %v120 = vand.u32 %v105, 2147483648
  %v121 = vor.u32 1.1754944e-38, %v120
  %v122 = vsel %vm119, %v121, %v117
  %v123 = vmul.f32 1.0, %v122
  %v124 = vrcp.pop %v106
  %v125 = vmul.f32 %v106, %v124
  %v126 = vsub.f32 1.0, %v125
  %v127 = vmul.f32 %v124, %v126
  %v128 = vadd.f32 %v124, %v127
  %vm129 = vweird.f32 %v106
  %vm130 = vweird.f32 %v124
  %vm131 = vmor %vm129, %vm130
  %v132 = vsel %vm131, %v124, %v128
  %v133 = vand.u32 2147483647, %v106
  %vm134 = vcmp.eq.f32.partialorder %v133, 8.507059e+37
  %v135 = vand.u32 %v106, 2147483648
  %v136 = vor.u32 1.1754944e-38, %v135
  %v137 = vsel %vm134, %v136, %v132
  %v138 = vmul.f32 1.0, %v137
  %v139 = vrcp.pop %v107
  %v140 = vmul.f32 %v107, %v139
  %v141 = vsub.f32 1.0, %v140
  %v142 = vmul.f32 %v139, %v141
  %v143 = vadd.f32 %v139, %v142
  %vm144 = vweird.f32 %v107
  %vm145 = vweird.f32 %v139
  %vm146 = vmor %vm144, %vm145
  %v147 = vsel %vm146, %v139, %v143
  %v148 = vand.u32 2147483647, %v107
  %vm149 = vcmp.eq.f32.partialorder %v148, 8.507059e+37
  %v150 = vand.u32 %v107, 2147483648
  %v151 = vor.u32 1.1754944e-38, %v150
  %v152 = vsel %vm149, %v151, %v147
  %v153 = vmul.f32 1.0, %v152
  %v154 = vrcp.pop %v108
  %v155 = vmul.f32 %v108, %v154
  %v156 = vsub.f32 1.0, %v155
  %v157 = vmul.f32 %v154, %v156
  %v158 = vadd.f32 %v154, %v157
  %vm159 = vweird.f32 %v108
  %vm160 = vweird.f32 %v154
  %vm161 = vmor %vm159, %vm160
  %v162 = vsel %vm161, %v154, %v158
  %v163 = vand.u32 2147483647, %v108
  %vm164 = vcmp.eq.f32.partialorder %v163, 8.507059e+37
  %v165 = vand.u32 %v108, 2147483648
  %v166 = vor.u32 1.1754944e-38, %v165
  %v167 = vsel %vm164, %v166, %v162
  %v168 = vmul.f32 1.0, %v167
  %v169 = vmul.f32 %v65, %v123
  %v170 = vmul.f32 %v88, %v138
  %v171 = vmul.f32 %v68, %v153
  %v172 = vmul.f32 %v91, %v168
  %174 = vset.pattern.permute.xlu0 25
  %175 = vperm.xlu0 %174, %v23
  %v176 = vpop.permute.xlu0 %175
  %v178 = vadd.f32 %v176, 0.0
  %179 = vset.pattern.permute.xlu0 0
  %180 = vperm.xlu0 %179, %v23
  %v181 = vpop.permute.xlu0 %180
  %v183 = vmul.f32 %v181, 0.0
  %v184 = vmul.f32 %v171, %v181
  %v185 = vmul.f32 %v172, %v181
  %186 = vset.pattern.permute.xlu0 5
  %187 = vperm.xlu0 %186, %v23
  %v188 = vpop.permute.xlu0 %187
  %v190 = vmul.f32 %v188, 0.0
  %v191 = vmul.f32 %v171, %v188
  %v192 = vmul.f32 %v172, %v188
  %196 = vrot.lane.b32.xlu0 %v190, 112
  %v197 = vpop.permute.xlu0 %196
  %198 = vrot.lane.b32.xlu0 %v191, 112
  %v199 = vpop.permute.xlu0 %198
  %200 = vrot.lane.b32.xlu0 %v192, 112
  %v201 = vpop.permute.xlu0 %200
  %vm202 = vcmask 916480
  %v203 = vsel %vm202, %v197, %v199
  %v204 = vsel %vm202, %v199, %v201
  %v208 = vadd.f32 %v183, %v203
  %v209 = vadd.f32 %v184, %v204
  %v210 = vadd.f32 %v185, %v201
  %211 = vset.pattern.permute.xlu0 10
  %212 = vperm.xlu0 %211, %v23
  %v213 = vpop.permute.xlu0 %212
  %v215 = vmul.f32 %v213, 0.0
  %v216 = vmul.f32 %v171, %v213
  %v217 = vmul.f32 %v172, %v213
  %221 = vrot.lane.b32.xlu0 %v215, 96
  %v222 = vpop.permute.xlu0 %221
  %223 = vrot.lane.b32.xlu0 %v216, 96
  %v224 = vpop.permute.xlu0 %223
  %225 = vrot.lane.b32.xlu0 %v217, 96
  %v226 = vpop.permute.xlu0 %225
  %vm227 = vcmask 785408
  %v228 = vsel %vm227, %v222, %v224
  %v229 = vsel %vm227, %v224, %v226
  %v233 = vadd.f32 %v208, %v228
  %v234 = vadd.f32 %v209, %v229
  %v235 = vadd.f32 %v210, %v226
  %236 = vset.pattern.permute.xlu0 15
  %237 = vperm.xlu0 %236, %v23
  %v238 = vpop.permute.xlu0 %237
  %v240 = vmul.f32 %v171, %v238
  %v241 = vmul.f32 %v172, %v238
  %v242 = vmul.f32 %v238, 0.0
  %246 = vrot.lane.b32.xlu0 %v240, 80
  %v247 = vpop.permute.xlu0 %246
  %248 = vrot.lane.b32.xlu0 %v241, 80
  %v249 = vpop.permute.xlu0 %248
  %250 = vrot.lane.b32.xlu0 %v242, 80
  %v251 = vpop.permute.xlu0 %250
  %vm252 = vcmask 654336
  %v253 = vsel %vm252, %v247, %v249
  %v254 = vsel %vm252, %v249, %v251
  %v258 = vadd.f32 %v233, %v247
  %v259 = vadd.f32 %v234, %v253
  %v260 = vadd.f32 %v235, %v254
  %261 = vset.pattern.permute.xlu0 20
  %262 = vperm.xlu0 %261, %v23
  %v263 = vpop.permute.xlu0 %262
  %v265 = vmul.f32 %v171, %v263
  %v266 = vmul.f32 %v172, %v263
  %v267 = vmul.f32 %v263, 0.0
  %271 = vrot.lane.b32.xlu0 %v265, 64
  %v272 = vpop.permute.xlu0 %271
  %273 = vrot.lane.b32.xlu0 %v266, 64
  %v274 = vpop.permute.xlu0 %273
  %275 = vrot.lane.b32.xlu0 %v267, 64
  %v276 = vpop.permute.xlu0 %275
  %vm277 = vcmask 523264
  %v278 = vsel %vm277, %v272, %v274
  %v279 = vsel %vm277, %v274, %v276
  %v283 = vadd.f32 %v258, %v272
  %v284 = vadd.f32 %v259, %v278
  %v285 = vadd.f32 %v260, %v279
  %v286 = vperm.slane %v26, 0
  %v287 = vperm.slane %v27, 0
  %290 = vrot.lane.b32.xlu0 %v286, 94
  %v291 = vpop.permute.xlu0 %290
  %292 = vrot.lane.b32.xlu0 %v287, 94
  %v293 = vpop.permute.xlu0 %292
  %vm294 = vcmask 769024
  %v295 = vsel %vm294, %v291, %v293
  %v299 = vmul.f32 %v283, %v291
  %v300 = vmul.f32 %v284, %v295
  %v301 = vmul.f32 %v285, %v293
  %v302 = vadd.f32 %v178, %v299
  %v303 = vadd.f32 %v178, %v300
  %v304 = vadd.f32 %v178, %v301
  %305 = vset.pattern.permute.xlu0 1
  %306 = vperm.xlu0 %305, %v23
  %v307 = vpop.permute.xlu0 %306
  %v309 = vmul.f32 %v307, 0.0
  %v310 = vmul.f32 %v171, %v307
  %v311 = vmul.f32 %v172, %v307
  %312 = vset.pattern.permute.xlu0 6
  %313 = vperm.xlu0 %312, %v23
  %v314 = vpop.permute.xlu0 %313
  %v316 = vmul.f32 %v314, 0.0
  %v317 = vmul.f32 %v171, %v314
  %v318 = vmul.f32 %v172, %v314
  %322 = vrot.lane.b32.xlu0 %v316, 112
  %v323 = vpop.permute.xlu0 %322
  %324 = vrot.lane.b32.xlu0 %v317, 112
  %v325 = vpop.permute.xlu0 %324
  %326 = vrot.lane.b32.xlu0 %v318, 112
  %v327 = vpop.permute.xlu0 %326
  %v328 = vsel %vm202, %v323, %v325
  %v329 = vsel %vm202, %v325, %v327
  %v333 = vadd.f32 %v309, %v328
  %v334 = vadd.f32 %v310, %v329
  %v335 = vadd.f32 %v311, %v327
  %336 = vset.pattern.permute.xlu0 11
  %337 = vperm.xlu0 %336, %v23
  %v338 = vpop.permute.xlu0 %337
  %v340 = vmul.f32 %v338, 0.0
  %v341 = vmul.f32 %v171, %v338
  %v342 = vmul.f32 %v172, %v338
  %346 = vrot.lane.b32.xlu0 %v340, 96
  %v347 = vpop.permute.xlu0 %346
  %348 = vrot.lane.b32.xlu0 %v341, 96
  %v349 = vpop.permute.xlu0 %348
  %350 = vrot.lane.b32.xlu0 %v342, 96
  %v351 = vpop.permute.xlu0 %350
  %v352 = vsel %vm227, %v347, %v349
  %v353 = vsel %vm227, %v349, %v351
  %v357 = vadd.f32 %v333, %v352
  %v358 = vadd.f32 %v334, %v353
  %v359 = vadd.f32 %v335, %v351
  %360 = vset.pattern.permute.xlu0 16
  %361 = vperm.xlu0 %360, %v23
  %v362 = vpop.permute.xlu0 %361
  %v364 = vmul.f32 %v171, %v362
  %v365 = vmul.f32 %v172, %v362
  %v366 = vmul.f32 %v362, 0.0
  %370 = vrot.lane.b32.xlu0 %v364, 80
  %v371 = vpop.permute.xlu0 %370
  %372 = vrot.lane.b32.xlu0 %v365, 80
  %v373 = vpop.permute.xlu0 %372
  %374 = vrot.lane.b32.xlu0 %v366, 80
  %v375 = vpop.permute.xlu0 %374
  %v376 = vsel %vm252, %v371, %v373
  %v377 = vsel %vm252, %v373, %v375
  %v381 = vadd.f32 %v357, %v371
  %v382 = vadd.f32 %v358, %v376
  %v383 = vadd.f32 %v359, %v377
  %384 = vset.pattern.permute.xlu0 21
  %385 = vperm.xlu0 %384, %v23
  %v386 = vpop.permute.xlu0 %385
  %v388 = vmul.f32 %v171, %v386
  %v389 = vmul.f32 %v172, %v386
  %v390 = vmul.f32 %v386, 0.0
  %394 = vrot.lane.b32.xlu0 %v388, 64
  %v395 = vpop.permute.xlu0 %394
  %396 = vrot.lane.b32.xlu0 %v389, 64
  %v397 = vpop.permute.xlu0 %396
  %398 = vrot.lane.b32.xlu0 %v390, 64
  %v399 = vpop.permute.xlu0 %398
  %v400 = vsel %vm277, %v395, %v397
  %v401 = vsel %vm277, %v397, %v399
  %v405 = vadd.f32 %v381, %v395
  %v406 = vadd.f32 %v382, %v400
  %v407 = vadd.f32 %v383, %v401
  %v408 = vperm.slane %v26, 1
  %v409 = vperm.slane %v27, 1
  %412 = vrot.lane.b32.xlu0 %v408, 95
  %v413 = vpop.permute.xlu0 %412
  %414 = vrot.lane.b32.xlu0 %v409, 95
  %v415 = vpop.permute.xlu0 %414
  %vm416 = vcmask 777216
  %v417 = vsel %vm416, %v413, %v415
  %v421 = vmul.f32 %v405, %v413
  %v422 = vmul.f32 %v406, %v417
  %v423 = vmul.f32 %v407, %v415
  %427 = vrot.lane.b32.xlu0 %v421, 127
  %v428 = vpop.permute.xlu0 %427
  %429 = vrot.lane.b32.xlu0 %v422, 127
  %v430 = vpop.permute.xlu0 %429
  %431 = vrot.lane.b32.xlu0 %v423, 127
  %v432 = vpop.permute.xlu0 %431
  %vm433 = vcmask 1039360
  %v434 = vsel %vm433, %v428, %v430
  %v435 = vsel %vm433, %v430, %v432
  %v439 = vadd.f32 %v302, %v434
  %v440 = vadd.f32 %v303, %v435
  %v441 = vadd.f32 %v304, %v432
  %442 = vset.pattern.permute.xlu0 2
  %443 = vperm.xlu0 %442, %v23
  %v444 = vpop.permute.xlu0 %443
  %v446 = vmul.f32 %v444, 0.0
  %v447 = vmul.f32 %v171, %v444
  %v448 = vmul.f32 %v172, %v444
  %449 = vset.pattern.permute.xlu0 7
  %450 = vperm.xlu0 %449, %v23
  %v451 = vpop.permute.xlu0 %450
  %v453 = vmul.f32 %v451, 0.0
  %v454 = vmul.f32 %v171, %v451
  %v455 = vmul.f32 %v172, %v451
  %459 = vrot.lane.b32.xlu0 %v453, 112
  %v460 = vpop.permute.xlu0 %459
  %461 = vrot.lane.b32.xlu0 %v454, 112
  %v462 = vpop.permute.xlu0 %461
  %463 = vrot.lane.b32.xlu0 %v455, 112
  %v464 = vpop.permute.xlu0 %463
  %v465 = vsel %vm202, %v460, %v462
  %v466 = vsel %vm202, %v462, %v464
  %v470 = vadd.f32 %v446, %v465
  %v471 = vadd.f32 %v447, %v466
  %v472 = vadd.f32 %v448, %v464
  %473 = vset.pattern.permute.xlu0 12
  %474 = vperm.xlu0 %473, %v23
  %v475 = vpop.permute.xlu0 %474
  %v477 = vmul.f32 %v171, %v475
  %v478 = vmul.f32 %v172, %v475
  %481 = vrot.lane.b32.xlu0 %v477, 96
  %v482 = vpop.permute.xlu0 %481
  %483 = vrot.lane.b32.xlu0 %v478, 96
  %v484 = vpop.permute.xlu0 %483
  %v485 = vsel %vm227, %v482, %v484
  %v489 = vadd.f32 %v470, %v482
  %v490 = vadd.f32 %v471, %v485
  %v491 = vadd.f32 %v472, %v484
  %492 = vset.pattern.permute.xlu0 17
  %493 = vperm.xlu0 %492, %v23
  %v494 = vpop.permute.xlu0 %493
  %v496 = vmul.f32 %v171, %v494
  %v497 = vmul.f32 %v172, %v494
  %v498 = vmul.f32 %v494, 0.0
  %502 = vrot.lane.b32.xlu0 %v496, 80
  %v503 = vpop.permute.xlu0 %502
  %504 = vrot.lane.b32.xlu0 %v497, 80
  %v505 = vpop.permute.xlu0 %504
  %506 = vrot.lane.b32.xlu0 %v498, 80
  %v507 = vpop.permute.xlu0 %506
  %v508 = vsel %vm252, %v503, %v505
  %v509 = vsel %vm252, %v505, %v507
  %v513 = vadd.f32 %v489, %v503
  %v514 = vadd.f32 %v490, %v508
  %v515 = vadd.f32 %v491, %v509
  %516 = vset.pattern.permute.xlu0 22
  %517 = vperm.xlu0 %516, %v23
  %v518 = vpop.permute.xlu0 %517
  %v520 = vmul.f32 %v171, %v518
  %v521 = vmul.f32 %v172, %v518
  %v522 = vmul.f32 %v518, 0.0
  %526 = vrot.lane.b32.xlu0 %v520, 64
  %v527 = vpop.permute.xlu0 %526
  %528 = vrot.lane.b32.xlu0 %v521, 64
  %v529 = vpop.permute.xlu0 %528
  %530 = vrot.lane.b32.xlu0 %v522, 64
  %v531 = vpop.permute.xlu0 %530
  %v532 = vsel %vm277, %v527, %v529
  %v533 = vsel %vm277, %v529, %v531
  %v537 = vadd.f32 %v513, %v527
  %v538 = vadd.f32 %v514, %v532
  %v539 = vadd.f32 %v515, %v533
  %v540 = vperm.slane %v26, 2
  %v541 = vperm.slane %v27, 2
  %544 = vrot.lane.b32.xlu0 %v540, 96
  %v545 = vpop.permute.xlu0 %544
  %546 = vrot.lane.b32.xlu0 %v541, 96
  %v547 = vpop.permute.xlu0 %546
  %v548 = vsel %vm227, %v545, %v547
  %v552 = vmul.f32 %v537, %v545
  %v553 = vmul.f32 %v538, %v548
  %v554 = vmul.f32 %v539, %v547
  %558 = vrot.lane.b32.xlu0 %v552, 126
  %v559 = vpop.permute.xlu0 %558
  %560 = vrot.lane.b32.xlu0 %v553, 126
  %v561 = vpop.permute.xlu0 %560
  %562 = vrot.lane.b32.xlu0 %v554, 126
  %v563 = vpop.permute.xlu0 %562
  %vm564 = vcmask 1031168
  %v565 = vsel %vm564, %v559, %v561
  %v566 = vsel %vm564, %v561, %v563
  %v570 = vadd.f32 %v439, %v565
  %v571 = vadd.f32 %v440, %v566
  %v572 = vadd.f32 %v441, %v563
  %573 = vset.pattern.permute.xlu0 3
  %574 = vperm.xlu0 %573, %v23
  %v575 = vpop.permute.xlu0 %574
  %v577 = vmul.f32 %v575, 0.0
  %v578 = vmul.f32 %v171, %v575
  %v579 = vmul.f32 %v172, %v575
  %580 = vset.pattern.permute.xlu0 8
  %581 = vperm.xlu0 %580, %v23
  %v582 = vpop.permute.xlu0 %581
  %v584 = vmul.f32 %v582, 0.0
  %v585 = vmul.f32 %v171, %v582
  %v586 = vmul.f32 %v172, %v582
  %590 = vrot.lane.b32.xlu0 %v584, 112
  %v591 = vpop.permute.xlu0 %590
  %592 = vrot.lane.b32.xlu0 %v585, 112
  %v593 = vpop.permute.xlu0 %592
  %594 = vrot.lane.b32.xlu0 %v586, 112
  %v595 = vpop.permute.xlu0 %594
  %v596 = vsel %vm202, %v591, %v593
  %v597 = vsel %vm202, %v593, %v595
  %v601 = vadd.f32 %v577, %v596
  %v602 = vadd.f32 %v578, %v597
  %v603 = vadd.f32 %v579, %v595
  %604 = vset.pattern.permute.xlu0 13
  %605 = vperm.xlu0 %604, %v23
  %v606 = vpop.permute.xlu0 %605
  %v608 = vmul.f32 %v171, %v606
  %v609 = vmul.f32 %v172, %v606
  %v610 = vmul.f32 %v606, 0.0
  %614 = vrot.lane.b32.xlu0 %v608, 96
  %v615 = vpop.permute.xlu0 %614
  %616 = vrot.lane.b32.xlu0 %v609, 96
  %v617 = vpop.permute.xlu0 %616
  %618 = vrot.lane.b32.xlu0 %v610, 96
  %v619 = vpop.permute.xlu0 %618
  %v620 = vsel %vm227, %v615, %v617
  %v621 = vsel %vm227, %v617, %v619
  %v625 = vadd.f32 %v601, %v615
  %v626 = vadd.f32 %v602, %v620
  %v627 = vadd.f32 %v603, %v621
  %628 = vset.pattern.permute.xlu0 18
  %629 = vperm.xlu0 %628, %v23
  %v630 = vpop.permute.xlu0 %629
  %v632 = vmul.f32 %v171, %v630
  %v633 = vmul.f32 %v172, %v630
  %v634 = vmul.f32 %v630, 0.0
  %638 = vrot.lane.b32.xlu0 %v632, 80
  %v639 = vpop.permute.xlu0 %638
  %640 = vrot.lane.b32.xlu0 %v633, 80
  %v641 = vpop.permute.xlu0 %640
  %642 = vrot.lane.b32.xlu0 %v634, 80
  %v643 = vpop.permute.xlu0 %642
  %v644 = vsel %vm252, %v639, %v641
  %v645 = vsel %vm252, %v641, %v643
  %v649 = vadd.f32 %v625, %v639
  %v650 = vadd.f32 %v626, %v644
  %v651 = vadd.f32 %v627, %v645
  %652 = vset.pattern.permute.xlu0 23
  %653 = vperm.xlu0 %652, %v23
  %v654 = vpop.permute.xlu0 %653
  %v656 = vmul.f32 %v171, %v654
  %v657 = vmul.f32 %v172, %v654
  %v658 = vmul.f32 %v654, 0.0
  %662 = vrot.lane.b32.xlu0 %v656, 64
  %v663 = vpop.permute.xlu0 %662
  %664 = vrot.lane.b32.xlu0 %v657, 64
  %v665 = vpop.permute.xlu0 %664
  %666 = vrot.lane.b32.xlu0 %v658, 64
  %v667 = vpop.permute.xlu0 %666
  %v668 = vsel %vm277, %v663, %v665
  %v669 = vsel %vm277, %v665, %v667
  %v673 = vadd.f32 %v649, %v663
  %v674 = vadd.f32 %v650, %v668
  %v675 = vadd.f32 %v651, %v669
  %v676 = vperm.slane %v26, 3
  %v677 = vperm.slane %v27, 3
  %680 = vrot.lane.b32.xlu0 %v676, 97
  %v681 = vpop.permute.xlu0 %680
  %682 = vrot.lane.b32.xlu0 %v677, 97
  %v683 = vpop.permute.xlu0 %682
  %vm684 = vcmask 793600
  %v685 = vsel %vm684, %v681, %v683
  %v689 = vmul.f32 %v673, %v681
  %v690 = vmul.f32 %v674, %v685
  %v691 = vmul.f32 %v675, %v683
  %695 = vrot.lane.b32.xlu0 %v689, 125
  %v696 = vpop.permute.xlu0 %695
  %697 = vrot.lane.b32.xlu0 %v690, 125
  %v698 = vpop.permute.xlu0 %697
  %699 = vrot.lane.b32.xlu0 %v691, 125
  %v700 = vpop.permute.xlu0 %699
  %vm701 = vcmask 1022976
  %v702 = vsel %vm701, %v696, %v698
  %v703 = vsel %vm701, %v698, %v700
  %v707 = vadd.f32 %v570, %v702
  %v708 = vadd.f32 %v571, %v703
  %v709 = vadd.f32 %v572, %v700
  %710 = vset.pattern.permute.xlu0 4
  %711 = vperm.xlu0 %710, %v23
  %v712 = vpop.permute.xlu0 %711
  %v714 = vmul.f32 %v712, 0.0
  %v715 = vmul.f32 %v171, %v712
  %v716 = vmul.f32 %v172, %v712
  %717 = vset.pattern.permute.xlu0 9
  %718 = vperm.xlu0 %717, %v23
  %v719 = vpop.permute.xlu0 %718
  %v721 = vmul.f32 %v719, 0.0
  %v722 = vmul.f32 %v171, %v719
  %v723 = vmul.f32 %v172, %v719
  %727 = vrot.lane.b32.xlu0 %v721, 112
  %v728 = vpop.permute.xlu0 %727
  %729 = vrot.lane.b32.xlu0 %v722, 112
  %v730 = vpop.permute.xlu0 %729
  %731 = vrot.lane.b32.xlu0 %v723, 112
  %v732 = vpop.permute.xlu0 %731
  %v733 = vsel %vm202, %v728, %v730
  %v734 = vsel %vm202, %v730, %v732
  %v738 = vadd.f32 %v714, %v733
  %v739 = vadd.f32 %v715, %v734
  %v740 = vadd.f32 %v716, %v732
  %741 = vset.pattern.permute.xlu0 14
  %742 = vperm.xlu0 %741, %v23
  %v743 = vpop.permute.xlu0 %742
  %v745 = vmul.f32 %v171, %v743
  %v746 = vmul.f32 %v172, %v743
  %v747 = vmul.f32 %v743, 0.0
  %751 = vrot.lane.b32.xlu0 %v745, 96
  %v752 = vpop.permute.xlu0 %751
  %753 = vrot.lane.b32.xlu0 %v746, 96
  %v754 = vpop.permute.xlu0 %753
  %755 = vrot.lane.b32.xlu0 %v747, 96
  %v756 = vpop.permute.xlu0 %755
  %v757 = vsel %vm227, %v752, %v754
  %v758 = vsel %vm227, %v754, %v756
  %v762 = vadd.f32 %v738, %v752
  %v763 = vadd.f32 %v739, %v757
  %v764 = vadd.f32 %v740, %v758
  %765 = vset.pattern.permute.xlu0 19
  %766 = vperm.xlu0 %765, %v23
  %v767 = vpop.permute.xlu0 %766
  %v769 = vmul.f32 %v171, %v767
  %v770 = vmul.f32 %v172, %v767
  %v771 = vmul.f32 %v767, 0.0
  %775 = vrot.lane.b32.xlu0 %v769, 80
  %v776 = vpop.permute.xlu0 %775
  %777 = vrot.lane.b32.xlu0 %v770, 80
  %v778 = vpop.permute.xlu0 %777
  %779 = vrot.lane.b32.xlu0 %v771, 80
  %v780 = vpop.permute.xlu0 %779
  %v781 = vsel %vm252, %v776, %v778
  %v782 = vsel %vm252, %v778, %v780
  %v786 = vadd.f32 %v762, %v776
  %v787 = vadd.f32 %v763, %v781
  %v788 = vadd.f32 %v764, %v782
  %789 = vset.pattern.permute.xlu0 24
  %790 = vperm.xlu0 %789, %v23
  %v791 = vpop.permute.xlu0 %790
  %v793 = vmul.f32 %v171, %v791
  %v794 = vmul.f32 %v172, %v791
  %v795 = vmul.f32 %v791, 0.0
  %799 = vrot.lane.b32.xlu0 %v793, 64
  %v800 = vpop.permute.xlu0 %799
  %801 = vrot.lane.b32.xlu0 %v794, 64
  %v802 = vpop.permute.xlu0 %801
  %803 = vrot.lane.b32.xlu0 %v795, 64
  %v804 = vpop.permute.xlu0 %803
  %v805 = vsel %vm277, %v800, %v802
  %v806 = vsel %vm277, %v802, %v804
  %v810 = vadd.f32 %v786, %v800
  %v811 = vadd.f32 %v787, %v805
  %v812 = vadd.f32 %v788, %v806
  %v813 = vperm.slane %v26, 4
  %v814 = vperm.slane %v27, 4
  %817 = vrot.lane.b32.xlu0 %v813, 98
  %v818 = vpop.permute.xlu0 %817
  %819 = vrot.lane.b32.xlu0 %v814, 98
  %v820 = vpop.permute.xlu0 %819
  %vm821 = vcmask 801792
  %v822 = vsel %vm821, %v818, %v820
  %v826 = vmul.f32 %v810, %v818
  %v827 = vmul.f32 %v811, %v822
  %v828 = vmul.f32 %v812, %v820
  %832 = vrot.lane.b32.xlu0 %v826, 124
  %v833 = vpop.permute.xlu0 %832
  %834 = vrot.lane.b32.xlu0 %v827, 124
  %v835 = vpop.permute.xlu0 %834
  %836 = vrot.lane.b32.xlu0 %v828, 124
  %v837 = vpop.permute.xlu0 %836
  %vm838 = vcmask 1014784
  %v839 = vsel %vm838, %v833, %v835
  %v840 = vsel %vm838, %v835, %v837
  %v844 = vadd.f32 %v707, %v839
  %v845 = vadd.f32 %v708, %v840
  %v846 = vadd.f32 %v709, %v837
  %850 = vrot.lane.b32.xlu0 %v844, 34
  %v851 = vpop.permute.xlu0 %850
  %852 = vrot.lane.b32.xlu0 %v845, 34
  %v853 = vpop.permute.xlu0 %852
  %854 = vrot.lane.b32.xlu0 %v846, 34
  %v855 = vpop.permute.xlu0 %854
  %vm856 = vcmask 277504
  %v857 = vsel %vm856, %v851, %v853
  %v858 = vsel %vm856, %v853, %v855
  %862 = vset.pattern.permute.xlu0 49
  %863 = vperm.xlu0 %862, %v24
  %v864 = vpop.permute.xlu0 %863
  %v866 = vadd.f32 %v864, 0.0
  %867 = vset.pattern.permute.xlu0 0
  %868 = vperm.xlu0 %867, %v24
  %v869 = vpop.permute.xlu0 %868
  %v871 = vmul.f32 %v869, 0.0
  %v872 = vmul.f32 %v857, %v869
  %873 = vset.pattern.permute.xlu0 7
  %874 = vperm.xlu0 %873, %v24
  %v875 = vpop.permute.xlu0 %874
  %v877 = vmul.f32 %v875, 0.0
  %v878 = vmul.f32 %v857, %v875
  %v879 = vmul.f32 %v858, %v875
  %883 = vrot.lane.b32.xlu0 %v877, 80
  %v884 = vpop.permute.xlu0 %883
  %885 = vrot.lane.b32.xlu0 %v878, 80
  %v886 = vpop.permute.xlu0 %885
  %887 = vrot.lane.b32.xlu0 %v879, 80
  %v888 = vpop.permute.xlu0 %887
  %v889 = vsel %vm252, %v884, %v886
  %v890 = vsel %vm252, %v886, %v888
  %v894 = vadd.f32 %v871, %v884
  %v895 = vadd.f32 %v871, %v889
  %v896 = vadd.f32 %v872, %v890
  %897 = vset.pattern.permute.xlu0 14
  %898 = vperm.xlu0 %897, %v24
  %v899 = vpop.permute.xlu0 %898
  %v901 = vmul.f32 %v899, 0.0
  %v902 = vmul.f32 %v857, %v899
  %v903 = vmul.f32 %v858, %v899
  %907 = vrot.lane.b32.xlu0 %v901, 32
  %v908 = vpop.permute.xlu0 %907
  %909 = vrot.lane.b32.xlu0 %v902, 32
  %v910 = vpop.permute.xlu0 %909
  %911 = vrot.lane.b32.xlu0 %v903, 32
  %v912 = vpop.permute.xlu0 %911
  %vm913 = vcmask 261120
  %v914 = vsel %vm913, %v908, %v910
  %v915 = vsel %vm913, %v910, %v912
  %v919 = vadd.f32 %v894, %v908
  %v920 = vadd.f32 %v895, %v914
  %v921 = vadd.f32 %v896, %v915
  %922 = vset.pattern.permute.xlu0 21
  %923 = vperm.xlu0 %922, %v24
  %v924 = vpop.permute.xlu0 %923
  %v926 = vmul.f32 %v924, 0.0
  %v927 = vmul.f32 %v857, %v924
  %v928 = vmul.f32 %v858, %v924
  %932 = vrot.lane.b32.xlu0 %v926, 112
  %v933 = vpop.permute.xlu0 %932
  %934 = vrot.lane.b32.xlu0 %v927, 112
  %v935 = vpop.permute.xlu0 %934
  %936 = vrot.lane.b32.xlu0 %v928, 112
  %v937 = vpop.permute.xlu0 %936
  %v938 = vsel %vm202, %v933, %v935
  %v939 = vsel %vm202, %v935, %v937
  %v943 = vadd.f32 %v919, %v938
  %v944 = vadd.f32 %v920, %v939
  %v945 = vadd.f32 %v921, %v937
  %946 = vset.pattern.permute.xlu0 28
  %947 = vperm.xlu0 %946, %v24
  %v948 = vpop.permute.xlu0 %947
  %v950 = vmul.f32 %v857, %v948
  %v951 = vmul.f32 %v858, %v948
  %v952 = vmul.f32 %v948, 0.0
  %956 = vrot.lane.b32.xlu0 %v950, 64
  %v957 = vpop.permute.xlu0 %956
  %958 = vrot.lane.b32.xlu0 %v951, 64
  %v959 = vpop.permute.xlu0 %958
  %960 = vrot.lane.b32.xlu0 %v952, 64
  %v961 = vpop.permute.xlu0 %960
  %v962 = vsel %vm277, %v957, %v959
  %v963 = vsel %vm277, %v959, %v961
  %v967 = vadd.f32 %v943, %v957
  %v968 = vadd.f32 %v944, %v962
  %v969 = vadd.f32 %v945, %v963
  %970 = vset.pattern.permute.xlu0 35
  %971 = vperm.xlu0 %970, %v24
  %v972 = vpop.permute.xlu0 %971
  %v974 = vmul.f32 %v857, %v972
  %v975 = vmul.f32 %v858, %v972
  %v976 = vmul.f32 %v972, 0.0
  %980 = vrot.lane.b32.xlu0 %v974, 16
  %v981 = vpop.permute.xlu0 %980
  %982 = vrot.lane.b32.xlu0 %v975, 16
  %v983 = vpop.permute.xlu0 %982
  %984 = vrot.lane.b32.xlu0 %v976, 16
  %v985 = vpop.permute.xlu0 %984
  %v986 = vsel %vm42, %v981, %v983
  %v987 = vsel %vm42, %v983, %v985
  %v991 = vadd.f32 %v967, %v981
  %v992 = vadd.f32 %v968, %v986
  %v993 = vadd.f32 %v969, %v987
  %994 = vset.pattern.permute.xlu0 42
  %995 = vperm.xlu0 %994, %v24
  %v996 = vpop.permute.xlu0 %995
  %v998 = vmul.f32 %v858, %v996
  %v999 = vmul.f32 %v996, 0.0
  %1002 = vrot.lane.b32.xlu0 %v998, 96
  %v1003 = vpop.permute.xlu0 %1002
  %1004 = vrot.lane.b32.xlu0 %v999, 96
  %v1005 = vpop.permute.xlu0 %1004
  %v1006 = vsel %vm227, %v1003, %v1005
  %v1010 = vadd.f32 %v991, %v1003
  %v1011 = vadd.f32 %v992, %v1006
  %v1012 = vadd.f32 %v993, %v1005
  %v1013 = vperm.slane %v28, 0
  %v1014 = vperm.slane %v29, 0
  %1017 = vrot.lane.b32.xlu0 %v1013, 103
  %v1018 = vpop.permute.xlu0 %1017
  %1019 = vrot.lane.b32.xlu0 %v1014, 103
  %v1020 = vpop.permute.xlu0 %1019
  %vm1021 = vcmask 842752
  %v1022 = vsel %vm1021, %v1018, %v1020
  %v1026 = vmul.f32 %v1010, %v1018
  %v1027 = vmul.f32 %v1011, %v1022
  %v1028 = vmul.f32 %v1012, %v1020
  %v1029 = vadd.f32 %v866, %v1026
  %v1030 = vadd.f32 %v866, %v1027
  %v1031 = vadd.f32 %v866, %v1028
  %1032 = vset.pattern.permute.xlu0 1
  %1033 = vperm.xlu0 %1032, %v24
  %v1034 = vpop.permute.xlu0 %1033
  %v1036 = vmul.f32 %v1034, 0.0
  %v1037 = vmul.f32 %v857, %v1034
  %1038 = vset.pattern.permute.xlu0 8
  %1039 = vperm.xlu0 %1038, %v24
  %v1040 = vpop.permute.xlu0 %1039
  %v1042 = vmul.f32 %v1040, 0.0
  %v1043 = vmul.f32 %v857, %v1040
  %v1044 = vmul.f32 %v858, %v1040
  %1048 = vrot.lane.b32.xlu0 %v1042, 80
  %v1049 = vpop.permute.xlu0 %1048
  %1050 = vrot.lane.b32.xlu0 %v1043, 80
  %v1051 = vpop.permute.xlu0 %1050
  %1052 = vrot.lane.b32.xlu0 %v1044, 80
  %v1053 = vpop.permute.xlu0 %1052
  %v1054 = vsel %vm252, %v1049, %v1051
  %v1055 = vsel %vm252, %v1051, %v1053
  %v1059 = vadd.f32 %v1036, %v1049
  %v1060 = vadd.f32 %v1036, %v1054
  %v1061 = vadd.f32 %v1037, %v1055
  %1062 = vset.pattern.permute.xlu0 15
  %1063 = vperm.xlu0 %1062, %v24
  %v1064 = vpop.permute.xlu0 %1063
  %v1066 = vmul.f32 %v1064, 0.0
  %v1067 = vmul.f32 %v857, %v1064
  %v1068 = vmul.f32 %v858, %v1064
  %1072 = vrot.lane.b32.xlu0 %v1066, 32
  %v1073 = vpop.permute.xlu0 %1072
  %1074 = vrot.lane.b32.xlu0 %v1067, 32
  %v1075 = vpop.permute.xlu0 %1074
  %1076 = vrot.lane.b32.xlu0 %v1068, 32
  %v1077 = vpop.permute.xlu0 %1076
  %v1078 = vsel %vm913, %v1073, %v1075
  %v1079 = vsel %vm913, %v1075, %v1077
  %v1083 = vadd.f32 %v1059, %v1073
  %v1084 = vadd.f32 %v1060, %v1078
  %v1085 = vadd.f32 %v1061, %v1079
  %1086 = vset.pattern.permute.xlu0 22
  %1087 = vperm.xlu0 %1086, %v24
  %v1088 = vpop.permute.xlu0 %1087
  %v1090 = vmul.f32 %v1088, 0.0
  %v1091 = vmul.f32 %v857, %v1088
  %v1092 = vmul.f32 %v858, %v1088
  %1096 = vrot.lane.b32.xlu0 %v1090, 112
  %v1097 = vpop.permute.xlu0 %1096
  %1098 = vrot.lane.b32.xlu0 %v1091, 112
  %v1099 = vpop.permute.xlu0 %1098
  %1100 = vrot.lane.b32.xlu0 %v1092, 112
  %v1101 = vpop.permute.xlu0 %1100
  %v1102 = vsel %vm202, %v1097, %v1099
  %v1103 = vsel %vm202, %v1099, %v1101
  %v1107 = vadd.f32 %v1083, %v1102
  %v1108 = vadd.f32 %v1084, %v1103
  %v1109 = vadd.f32 %v1085, %v1101
  %1110 = vset.pattern.permute.xlu0 29
  %1111 = vperm.xlu0 %1110, %v24
  %v1112 = vpop.permute.xlu0 %1111
  %v1114 = vmul.f32 %v857, %v1112
  %v1115 = vmul.f32 %v858, %v1112
  %v1116 = vmul.f32 %v1112, 0.0
  %1120 = vrot.lane.b32.xlu0 %v1114, 64
  %v1121 = vpop.permute.xlu0 %1120
  %1122 = vrot.lane.b32.xlu0 %v1115, 64
  %v1123 = vpop.permute.xlu0 %1122
  %1124 = vrot.lane.b32.xlu0 %v1116, 64
  %v1125 = vpop.permute.xlu0 %1124
  %v1126 = vsel %vm277, %v1121, %v1123
  %v1127 = vsel %vm277, %v1123, %v1125
  %v1131 = vadd.f32 %v1107, %v1121
  %v1132 = vadd.f32 %v1108, %v1126
  %v1133 = vadd.f32 %v1109, %v1127
  %1134 = vset.pattern.permute.xlu0 36
  %1135 = vperm.xlu0 %1134, %v24
  %v1136 = vpop.permute.xlu0 %1135
  %v1138 = vmul.f32 %v857, %v1136
  %v1139 = vmul.f32 %v858, %v1136
  %v1140 = vmul.f32 %v1136, 0.0
  %1144 = vrot.lane.b32.xlu0 %v1138, 16
  %v1145 = vpop.permute.xlu0 %1144
  %1146 = vrot.lane.b32.xlu0 %v1139, 16
  %v1147 = vpop.permute.xlu0 %1146
  %1148 = vrot.lane.b32.xlu0 %v1140, 16
  %v1149 = vpop.permute.xlu0 %1148
  %v1150 = vsel %vm42, %v1145, %v1147
  %v1151 = vsel %vm42, %v1147, %v1149
  %v1155 = vadd.f32 %v1131, %v1145
  %v1156 = vadd.f32 %v1132, %v1150
  %v1157 = vadd.f32 %v1133, %v1151
  %1158 = vset.pattern.permute.xlu0 43
  %1159 = vperm.xlu0 %1158, %v24
  %v1160 = vpop.permute.xlu0 %1159
  %v1162 = vmul.f32 %v858, %v1160
  %v1163 = vmul.f32 %v1160, 0.0
  %1166 = vrot.lane.b32.xlu0 %v1162, 96
  %v1167 = vpop.permute.xlu0 %1166
  %1168 = vrot.lane.b32.xlu0 %v1163, 96
  %v1169 = vpop.permute.xlu0 %1168
  %v1170 = vsel %vm227, %v1167, %v1169
  %v1174 = vadd.f32 %v1155, %v1167
  %v1175 = vadd.f32 %v1156, %v1170
  %v1176 = vadd.f32 %v1157, %v1169
  %v1177 = vperm.slane %v28, 1
  %v1178 = vperm.slane %v29, 1
  %1181 = vrot.lane.b32.xlu0 %v1177, 106
  %v1182 = vpop.permute.xlu0 %1181
  %1183 = vrot.lane.b32.xlu0 %v1178, 106
  %v1184 = vpop.permute.xlu0 %1183
  %vm1185 = vcmask 867328
  %v1186 = vsel %vm1185, %v1182, %v1184
  %v1190 = vmul.f32 %v1174, %v1182
  %v1191 = vmul.f32 %v1175, %v1186
  %v1192 = vmul.f32 %v1176, %v1184
  %1196 = vrot.lane.b32.xlu0 %v1190, 125
  %v1197 = vpop.permute.xlu0 %1196
  %1198 = vrot.lane.b32.xlu0 %v1191, 125
  %v1199 = vpop.permute.xlu0 %1198
  %1200 = vrot.lane.b32.xlu0 %v1192, 125
  %v1201 = vpop.permute.xlu0 %1200
  %v1202 = vsel %vm701, %v1197, %v1199
  %v1203 = vsel %vm701, %v1199, %v1201
  %v1207 = vadd.f32 %v1029, %v1202
  %v1208 = vadd.f32 %v1030, %v1203
  %v1209 = vadd.f32 %v1031, %v1201
  %1210 = vset.pattern.permute.xlu0 2
  %1211 = vperm.xlu0 %1210, %v24
  %v1212 = vpop.permute.xlu0 %1211
  %v1214 = vmul.f32 %v1212, 0.0
  %v1215 = vmul.f32 %v857, %v1212
  %1216 = vset.pattern.permute.xlu0 9
  %1217 = vperm.xlu0 %1216, %v24
  %v1218 = vpop.permute.xlu0 %1217
  %v1220 = vmul.f32 %v1218, 0.0
  %v1221 = vmul.f32 %v857, %v1218
  %v1222 = vmul.f32 %v858, %v1218
  %1226 = vrot.lane.b32.xlu0 %v1220, 80
  %v1227 = vpop.permute.xlu0 %1226
  %1228 = vrot.lane.b32.xlu0 %v1221, 80
  %v1229 = vpop.permute.xlu0 %1228
  %1230 = vrot.lane.b32.xlu0 %v1222, 80
  %v1231 = vpop.permute.xlu0 %1230
  %v1232 = vsel %vm252, %v1227, %v1229
  %v1233 = vsel %vm252, %v1229, %v1231
  %v1237 = vadd.f32 %v1214, %v1227
  %v1238 = vadd.f32 %v1214, %v1232
  %v1239 = vadd.f32 %v1215, %v1233
  %1240 = vset.pattern.permute.xlu0 16
  %1241 = vperm.xlu0 %1240, %v24
  %v1242 = vpop.permute.xlu0 %1241
  %v1244 = vmul.f32 %v1242, 0.0
  %v1245 = vmul.f32 %v857, %v1242
  %v1246 = vmul.f32 %v858, %v1242
  %1250 = vrot.lane.b32.xlu0 %v1244, 32
  %v1251 = vpop.permute.xlu0 %1250
  %1252 = vrot.lane.b32.xlu0 %v1245, 32
  %v1253 = vpop.permute.xlu0 %1252
  %1254 = vrot.lane.b32.xlu0 %v1246, 32
  %v1255 = vpop.permute.xlu0 %1254
  %v1256 = vsel %vm913, %v1251, %v1253
  %v1257 = vsel %vm913, %v1253, %v1255
  %v1261 = vadd.f32 %v1237, %v1251
  %v1262 = vadd.f32 %v1238, %v1256
  %v1263 = vadd.f32 %v1239, %v1257
  %1264 = vset.pattern.permute.xlu0 23
  %1265 = vperm.xlu0 %1264, %v24
  %v1266 = vpop.permute.xlu0 %1265
  %v1268 = vmul.f32 %v1266, 0.0
  %v1269 = vmul.f32 %v857, %v1266
  %v1270 = vmul.f32 %v858, %v1266
  %1274 = vrot.lane.b32.xlu0 %v1268, 112
  %v1275 = vpop.permute.xlu0 %1274
  %1276 = vrot.lane.b32.xlu0 %v1269, 112
  %v1277 = vpop.permute.xlu0 %1276
  %1278 = vrot.lane.b32.xlu0 %v1270, 112
  %v1279 = vpop.permute.xlu0 %1278
  %v1280 = vsel %vm202, %v1275, %v1277
  %v1281 = vsel %vm202, %v1277, %v1279
  %v1285 = vadd.f32 %v1261, %v1280
  %v1286 = vadd.f32 %v1262, %v1281
  %v1287 = vadd.f32 %v1263, %v1279
  %1288 = vset.pattern.permute.xlu0 30
  %1289 = vperm.xlu0 %1288, %v24
  %v1290 = vpop.permute.xlu0 %1289
  %v1292 = vmul.f32 %v857, %v1290
  %v1293 = vmul.f32 %v858, %v1290
  %v1294 = vmul.f32 %v1290, 0.0
  %1298 = vrot.lane.b32.xlu0 %v1292, 64
  %v1299 = vpop.permute.xlu0 %1298
  %1300 = vrot.lane.b32.xlu0 %v1293, 64
  %v1301 = vpop.permute.xlu0 %1300
  %1302 = vrot.lane.b32.xlu0 %v1294, 64
  %v1303 = vpop.permute.xlu0 %1302
  %v1304 = vsel %vm277, %v1299, %v1301
  %v1305 = vsel %vm277, %v1301, %v1303
  %v1309 = vadd.f32 %v1285, %v1299
  %v1310 = vadd.f32 %v1286, %v1304
  %v1311 = vadd.f32 %v1287, %v1305
  %1312 = vset.pattern.permute.xlu0 37
  %1313 = vperm.xlu0 %1312, %v24
  %v1314 = vpop.permute.xlu0 %1313
  %v1316 = vmul.f32 %v857, %v1314
  %v1317 = vmul.f32 %v858, %v1314
  %v1318 = vmul.f32 %v1314, 0.0
  %1322 = vrot.lane.b32.xlu0 %v1316, 16
  %v1323 = vpop.permute.xlu0 %1322
  %1324 = vrot.lane.b32.xlu0 %v1317, 16
  %v1325 = vpop.permute.xlu0 %1324
  %1326 = vrot.lane.b32.xlu0 %v1318, 16
  %v1327 = vpop.permute.xlu0 %1326
  %v1328 = vsel %vm42, %v1323, %v1325
  %v1329 = vsel %vm42, %v1325, %v1327
  %v1333 = vadd.f32 %v1309, %v1323
  %v1334 = vadd.f32 %v1310, %v1328
  %v1335 = vadd.f32 %v1311, %v1329
  %1336 = vset.pattern.permute.xlu0 44
  %1337 = vperm.xlu0 %1336, %v24
  %v1338 = vpop.permute.xlu0 %1337
  %v1340 = vmul.f32 %v858, %v1338
  %v1341 = vmul.f32 %v1338, 0.0
  %1344 = vrot.lane.b32.xlu0 %v1340, 96
  %v1345 = vpop.permute.xlu0 %1344
  %1346 = vrot.lane.b32.xlu0 %v1341, 96
  %v1347 = vpop.permute.xlu0 %1346
  %v1348 = vsel %vm227, %v1345, %v1347
  %v1352 = vadd.f32 %v1333, %v1345
  %v1353 = vadd.f32 %v1334, %v1348
  %v1354 = vadd.f32 %v1335, %v1347
  %v1355 = vperm.slane %v28, 2
  %v1356 = vperm.slane %v29, 2
  %1359 = vrot.lane.b32.xlu0 %v1355, 109
  %v1360 = vpop.permute.xlu0 %1359
  %1361 = vrot.lane.b32.xlu0 %v1356, 109
  %v1362 = vpop.permute.xlu0 %1361
  %vm1363 = vcmask 891904
  %v1364 = vsel %vm1363, %v1360, %v1362
  %v1368 = vmul.f32 %v1352, %v1360
  %v1369 = vmul.f32 %v1353, %v1364
  %v1370 = vmul.f32 %v1354, %v1362
  %1374 = vrot.lane.b32.xlu0 %v1368, 122
  %v1375 = vpop.permute.xlu0 %1374
  %1376 = vrot.lane.b32.xlu0 %v1369, 122
  %v1377 = vpop.permute.xlu0 %1376
  %1378 = vrot.lane.b32.xlu0 %v1370, 122
  %v1379 = vpop.permute.xlu0 %1378
  %vm1380 = vcmask 998400
  %v1381 = vsel %vm1380, %v1375, %v1377
  %v1382 = vsel %vm1380, %v1377, %v1379
  %v1386 = vadd.f32 %v1207, %v1381
  %v1387 = vadd.f32 %v1208, %v1382
  %v1388 = vadd.f32 %v1209, %v1379
  %1389 = vset.pattern.permute.xlu0 3
  %1390 = vperm.xlu0 %1389, %v24
  %v1391 = vpop.permute.xlu0 %1390
  %v1393 = vmul.f32 %v1391, 0.0
  %v1394 = vmul.f32 %v857, %v1391
  %1395 = vset.pattern.permute.xlu0 10
  %1396 = vperm.xlu0 %1395, %v24
  %v1397 = vpop.permute.xlu0 %1396
  %v1399 = vmul.f32 %v1397, 0.0
  %v1400 = vmul.f32 %v857, %v1397
  %v1401 = vmul.f32 %v858, %v1397
  %1405 = vrot.lane.b32.xlu0 %v1399, 80
  %v1406 = vpop.permute.xlu0 %1405
  %1407 = vrot.lane.b32.xlu0 %v1400, 80
  %v1408 = vpop.permute.xlu0 %1407
  %1409 = vrot.lane.b32.xlu0 %v1401, 80
  %v1410 = vpop.permute.xlu0 %1409
  %v1411 = vsel %vm252, %v1406, %v1408
  %v1412 = vsel %vm252, %v1408, %v1410
  %v1416 = vadd.f32 %v1393, %v1406
  %v1417 = vadd.f32 %v1393, %v1411
  %v1418 = vadd.f32 %v1394, %v1412
  %1419 = vset.pattern.permute.xlu0 17
  %1420 = vperm.xlu0 %1419, %v24
  %v1421 = vpop.permute.xlu0 %1420
  %v1423 = vmul.f32 %v1421, 0.0
  %v1424 = vmul.f32 %v857, %v1421
  %v1425 = vmul.f32 %v858, %v1421
  %1429 = vrot.lane.b32.xlu0 %v1423, 32
  %v1430 = vpop.permute.xlu0 %1429
  %1431 = vrot.lane.b32.xlu0 %v1424, 32
  %v1432 = vpop.permute.xlu0 %1431
  %1433 = vrot.lane.b32.xlu0 %v1425, 32
  %v1434 = vpop.permute.xlu0 %1433
  %v1435 = vsel %vm913, %v1430, %v1432
  %v1436 = vsel %vm913, %v1432, %v1434
  %v1440 = vadd.f32 %v1416, %v1430
  %v1441 = vadd.f32 %v1417, %v1435
  %v1442 = vadd.f32 %v1418, %v1436
  %1443 = vset.pattern.permute.xlu0 24
  %1444 = vperm.xlu0 %1443, %v24
  %v1445 = vpop.permute.xlu0 %1444
  %v1447 = vmul.f32 %v857, %v1445
  %v1448 = vmul.f32 %v858, %v1445
  %1451 = vrot.lane.b32.xlu0 %v1447, 112
  %v1452 = vpop.permute.xlu0 %1451
  %1453 = vrot.lane.b32.xlu0 %v1448, 112
  %v1454 = vpop.permute.xlu0 %1453
  %v1455 = vsel %vm202, %v1452, %v1454
  %v1459 = vadd.f32 %v1440, %v1452
  %v1460 = vadd.f32 %v1441, %v1455
  %v1461 = vadd.f32 %v1442, %v1454
  %1462 = vset.pattern.permute.xlu0 31
  %1463 = vperm.xlu0 %1462, %v24
  %v1464 = vpop.permute.xlu0 %1463
  %v1466 = vmul.f32 %v857, %v1464
  %v1467 = vmul.f32 %v858, %v1464
  %v1468 = vmul.f32 %v1464, 0.0
  %1472 = vrot.lane.b32.xlu0 %v1466, 64
  %v1473 = vpop.permute.xlu0 %1472
  %1474 = vrot.lane.b32.xlu0 %v1467, 64
  %v1475 = vpop.permute.xlu0 %1474
  %1476 = vrot.lane.b32.xlu0 %v1468, 64
  %v1477 = vpop.permute.xlu0 %1476
  %v1478 = vsel %vm277, %v1473, %v1475
  %v1479 = vsel %vm277, %v1475, %v1477
  %v1483 = vadd.f32 %v1459, %v1473
  %v1484 = vadd.f32 %v1460, %v1478
  %v1485 = vadd.f32 %v1461, %v1479
  %1486 = vset.pattern.permute.xlu0 38
  %1487 = vperm.xlu0 %1486, %v24
  %v1488 = vpop.permute.xlu0 %1487
  %v1490 = vmul.f32 %v857, %v1488
  %v1491 = vmul.f32 %v858, %v1488
  %v1492 = vmul.f32 %v1488, 0.0
  %1496 = vrot.lane.b32.xlu0 %v1490, 16
  %v1497 = vpop.permute.xlu0 %1496
  %1498 = vrot.lane.b32.xlu0 %v1491, 16
  %v1499 = vpop.permute.xlu0 %1498
  %1500 = vrot.lane.b32.xlu0 %v1492, 16
  %v1501 = vpop.permute.xlu0 %1500
  %v1502 = vsel %vm42, %v1497, %v1499
  %v1503 = vsel %vm42, %v1499, %v1501
  %v1507 = vadd.f32 %v1483, %v1497
  %v1508 = vadd.f32 %v1484, %v1502
  %v1509 = vadd.f32 %v1485, %v1503
  %1510 = vset.pattern.permute.xlu0 45
  %1511 = vperm.xlu0 %1510, %v24
  %v1512 = vpop.permute.xlu0 %1511
  %v1514 = vmul.f32 %v858, %v1512
  %v1515 = vmul.f32 %v1512, 0.0
  %1518 = vrot.lane.b32.xlu0 %v1514, 96
  %v1519 = vpop.permute.xlu0 %1518
  %1520 = vrot.lane.b32.xlu0 %v1515, 96
  %v1521 = vpop.permute.xlu0 %1520
  %v1522 = vsel %vm227, %v1519, %v1521
  %v1526 = vadd.f32 %v1507, %v1519
  %v1527 = vadd.f32 %v1508, %v1522
  %v1528 = vadd.f32 %v1509, %v1521
  %v1529 = vperm.slane %v28, 3
  %v1530 = vperm.slane %v29, 3
  %1533 = vrot.lane.b32.xlu0 %v1529, 112
  %v1534 = vpop.permute.xlu0 %1533
  %1535 = vrot.lane.b32.xlu0 %v1530, 112
  %v1536 = vpop.permute.xlu0 %1535
  %v1537 = vsel %vm202, %v1534, %v1536
  %v1541 = vmul.f32 %v1526, %v1534
  %v1542 = vmul.f32 %v1527, %v1537
  %v1543 = vmul.f32 %v1528, %v1536
  %1547 = vrot.lane.b32.xlu0 %v1541, 119
  %v1548 = vpop.permute.xlu0 %1547
  %1549 = vrot.lane.b32.xlu0 %v1542, 119
  %v1550 = vpop.permute.xlu0 %1549
  %1551 = vrot.lane.b32.xlu0 %v1543, 119
  %v1552 = vpop.permute.xlu0 %1551
  %vm1553 = vcmask 973824
  %v1554 = vsel %vm1553, %v1548, %v1550
  %v1555 = vsel %vm1553, %v1550, %v1552
  %v1559 = vadd.f32 %v1386, %v1554
  %v1560 = vadd.f32 %v1387, %v1555
  %v1561 = vadd.f32 %v1388, %v1552
  %1562 = vset.pattern.permute.xlu0 4
  %1563 = vperm.xlu0 %1562, %v24
  %v1564 = vpop.permute.xlu0 %1563
  %v1566 = vmul.f32 %v1564, 0.0
  %v1567 = vmul.f32 %v857, %v1564
  %1568 = vset.pattern.permute.xlu0 11
  %1569 = vperm.xlu0 %1568, %v24
  %v1570 = vpop.permute.xlu0 %1569
  %v1572 = vmul.f32 %v1570, 0.0
  %v1573 = vmul.f32 %v857, %v1570
  %v1574 = vmul.f32 %v858, %v1570
  %1578 = vrot.lane.b32.xlu0 %v1572, 80
  %v1579 = vpop.permute.xlu0 %1578
  %1580 = vrot.lane.b32.xlu0 %v1573, 80
  %v1581 = vpop.permute.xlu0 %1580
  %1582 = vrot.lane.b32.xlu0 %v1574, 80
  %v1583 = vpop.permute.xlu0 %1582
  %v1584 = vsel %vm252, %v1579, %v1581
  %v1585 = vsel %vm252, %v1581, %v1583
  %v1589 = vadd.f32 %v1566, %v1579
  %v1590 = vadd.f32 %v1566, %v1584
  %v1591 = vadd.f32 %v1567, %v1585
  %1592 = vset.pattern.permute.xlu0 18
  %1593 = vperm.xlu0 %1592, %v24
  %v1594 = vpop.permute.xlu0 %1593
  %v1596 = vmul.f32 %v1594, 0.0
  %v1597 = vmul.f32 %v857, %v1594
  %v1598 = vmul.f32 %v858, %v1594
  %1602 = vrot.lane.b32.xlu0 %v1596, 32
  %v1603 = vpop.permute.xlu0 %1602
  %1604 = vrot.lane.b32.xlu0 %v1597, 32
  %v1605 = vpop.permute.xlu0 %1604
  %1606 = vrot.lane.b32.xlu0 %v1598, 32
  %v1607 = vpop.permute.xlu0 %1606
  %v1608 = vsel %vm913, %v1603, %v1605
  %v1609 = vsel %vm913, %v1605, %v1607
  %v1613 = vadd.f32 %v1589, %v1603
  %v1614 = vadd.f32 %v1590, %v1608
  %v1615 = vadd.f32 %v1591, %v1609
  %1616 = vset.pattern.permute.xlu0 25
  %1617 = vperm.xlu0 %1616, %v24
  %v1618 = vpop.permute.xlu0 %1617
  %v1620 = vmul.f32 %v857, %v1618
  %v1621 = vmul.f32 %v858, %v1618
  %v1622 = vmul.f32 %v1618, 0.0
  %1626 = vrot.lane.b32.xlu0 %v1620, 112
  %v1627 = vpop.permute.xlu0 %1626
  %1628 = vrot.lane.b32.xlu0 %v1621, 112
  %v1629 = vpop.permute.xlu0 %1628
  %1630 = vrot.lane.b32.xlu0 %v1622, 112
  %v1631 = vpop.permute.xlu0 %1630
  %v1632 = vsel %vm202, %v1627, %v1629
  %v1633 = vsel %vm202, %v1629, %v1631
  %v1637 = vadd.f32 %v1613, %v1627
  %v1638 = vadd.f32 %v1614, %v1632
  %v1639 = vadd.f32 %v1615, %v1633
  %1640 = vset.pattern.permute.xlu0 32
  %1641 = vperm.xlu0 %1640, %v24
  %v1642 = vpop.permute.xlu0 %1641
  %v1644 = vmul.f32 %v857, %v1642
  %v1645 = vmul.f32 %v858, %v1642
  %v1646 = vmul.f32 %v1642, 0.0
  %1650 = vrot.lane.b32.xlu0 %v1644, 64
  %v1651 = vpop.permute.xlu0 %1650
  %1652 = vrot.lane.b32.xlu0 %v1645, 64
  %v1653 = vpop.permute.xlu0 %1652
  %1654 = vrot.lane.b32.xlu0 %v1646, 64
  %v1655 = vpop.permute.xlu0 %1654
  %v1656 = vsel %vm277, %v1651, %v1653
  %v1657 = vsel %vm277, %v1653, %v1655
  %v1661 = vadd.f32 %v1637, %v1651
  %v1662 = vadd.f32 %v1638, %v1656
  %v1663 = vadd.f32 %v1639, %v1657
  %1664 = vset.pattern.permute.xlu0 39
  %1665 = vperm.xlu0 %1664, %v24
  %v1666 = vpop.permute.xlu0 %1665
  %v1668 = vmul.f32 %v857, %v1666
  %v1669 = vmul.f32 %v858, %v1666
  %v1670 = vmul.f32 %v1666, 0.0
  %1674 = vrot.lane.b32.xlu0 %v1668, 16
  %v1675 = vpop.permute.xlu0 %1674
  %1676 = vrot.lane.b32.xlu0 %v1669, 16
  %v1677 = vpop.permute.xlu0 %1676
  %1678 = vrot.lane.b32.xlu0 %v1670, 16
  %v1679 = vpop.permute.xlu0 %1678
  %v1680 = vsel %vm42, %v1675, %v1677
  %v1681 = vsel %vm42, %v1677, %v1679
  %v1685 = vadd.f32 %v1661, %v1675
  %v1686 = vadd.f32 %v1662, %v1680
  %v1687 = vadd.f32 %v1663, %v1681
  %1688 = vset.pattern.permute.xlu0 46
  %1689 = vperm.xlu0 %1688, %v24
  %v1690 = vpop.permute.xlu0 %1689
  %v1692 = vmul.f32 %v858, %v1690
  %v1693 = vmul.f32 %v1690, 0.0
  %1696 = vrot.lane.b32.xlu0 %v1692, 96
  %v1697 = vpop.permute.xlu0 %1696
  %1698 = vrot.lane.b32.xlu0 %v1693, 96
  %v1699 = vpop.permute.xlu0 %1698
  %v1700 = vsel %vm227, %v1697, %v1699
  %v1704 = vadd.f32 %v1685, %v1697
  %v1705 = vadd.f32 %v1686, %v1700
  %v1706 = vadd.f32 %v1687, %v1699
  %v1707 = vperm.slane %v28, 4
  %v1708 = vperm.slane %v29, 4
  %1711 = vrot.lane.b32.xlu0 %v1707, 115
  %v1712 = vpop.permute.xlu0 %1711
  %1713 = vrot.lane.b32.xlu0 %v1708, 115
  %v1714 = vpop.permute.xlu0 %1713
  %vm1715 = vcmask 941056
  %v1716 = vsel %vm1715, %v1712, %v1714
  %v1720 = vmul.f32 %v1704, %v1712
  %v1721 = vmul.f32 %v1705, %v1716
  %v1722 = vmul.f32 %v1706, %v1714
  %1726 = vrot.lane.b32.xlu0 %v1720, 116
  %v1727 = vpop.permute.xlu0 %1726
  %1728 = vrot.lane.b32.xlu0 %v1721, 116
  %v1729 = vpop.permute.xlu0 %1728
  %1730 = vrot.lane.b32.xlu0 %v1722, 116
  %v1731 = vpop.permute.xlu0 %1730
  %vm1732 = vcmask 949248
  %v1733 = vsel %vm1732, %v1727, %v1729
  %v1734 = vsel %vm1732, %v1729, %v1731
  %v1738 = vadd.f32 %v1559, %v1733
  %v1739 = vadd.f32 %v1560, %v1734
  %v1740 = vadd.f32 %v1561, %v1731
  %1741 = vset.pattern.permute.xlu0 5
  %1742 = vperm.xlu0 %1741, %v24
  %v1743 = vpop.permute.xlu0 %1742
  %v1745 = vmul.f32 %v1743, 0.0
  %v1746 = vmul.f32 %v857, %v1743
  %1747 = vset.pattern.permute.xlu0 12
  %1748 = vperm.xlu0 %1747, %v24
  %v1749 = vpop.permute.xlu0 %1748
  %v1751 = vmul.f32 %v1749, 0.0
  %v1752 = vmul.f32 %v857, %v1749
  %v1753 = vmul.f32 %v858, %v1749
  %1757 = vrot.lane.b32.xlu0 %v1751, 80
  %v1758 = vpop.permute.xlu0 %1757
  %1759 = vrot.lane.b32.xlu0 %v1752, 80
  %v1760 = vpop.permute.xlu0 %1759
  %1761 = vrot.lane.b32.xlu0 %v1753, 80
  %v1762 = vpop.permute.xlu0 %1761
  %v1763 = vsel %vm252, %v1758, %v1760
  %v1764 = vsel %vm252, %v1760, %v1762
  %v1768 = vadd.f32 %v1745, %v1758
  %v1769 = vadd.f32 %v1745, %v1763
  %v1770 = vadd.f32 %v1746, %v1764
  %1771 = vset.pattern.permute.xlu0 19
  %1772 = vperm.xlu0 %1771, %v24
  %v1773 = vpop.permute.xlu0 %1772
  %v1775 = vmul.f32 %v1773, 0.0
  %v1776 = vmul.f32 %v857, %v1773
  %v1777 = vmul.f32 %v858, %v1773
  %1781 = vrot.lane.b32.xlu0 %v1775, 32
  %v1782 = vpop.permute.xlu0 %1781
  %1783 = vrot.lane.b32.xlu0 %v1776, 32
  %v1784 = vpop.permute.xlu0 %1783
  %1785 = vrot.lane.b32.xlu0 %v1777, 32
  %v1786 = vpop.permute.xlu0 %1785
  %v1787 = vsel %vm913, %v1782, %v1784
  %v1788 = vsel %vm913, %v1784, %v1786
  %v1792 = vadd.f32 %v1768, %v1782
  %v1793 = vadd.f32 %v1769, %v1787
  %v1794 = vadd.f32 %v1770, %v1788
  %1795 = vset.pattern.permute.xlu0 26
  %1796 = vperm.xlu0 %1795, %v24
  %v1797 = vpop.permute.xlu0 %1796
  %v1799 = vmul.f32 %v857, %v1797
  %v1800 = vmul.f32 %v858, %v1797
  %v1801 = vmul.f32 %v1797, 0.0
  %1805 = vrot.lane.b32.xlu0 %v1799, 112
  %v1806 = vpop.permute.xlu0 %1805
  %1807 = vrot.lane.b32.xlu0 %v1800, 112
  %v1808 = vpop.permute.xlu0 %1807
  %1809 = vrot.lane.b32.xlu0 %v1801, 112
  %v1810 = vpop.permute.xlu0 %1809
  %v1811 = vsel %vm202, %v1806, %v1808
  %v1812 = vsel %vm202, %v1808, %v1810
  %v1816 = vadd.f32 %v1792, %v1806
  %v1817 = vadd.f32 %v1793, %v1811
  %v1818 = vadd.f32 %v1794, %v1812
  %1819 = vset.pattern.permute.xlu0 33
  %1820 = vperm.xlu0 %1819, %v24
  %v1821 = vpop.permute.xlu0 %1820
  %v1823 = vmul.f32 %v857, %v1821
  %v1824 = vmul.f32 %v858, %v1821
  %v1825 = vmul.f32 %v1821, 0.0
  %1829 = vrot.lane.b32.xlu0 %v1823, 64
  %v1830 = vpop.permute.xlu0 %1829
  %1831 = vrot.lane.b32.xlu0 %v1824, 64
  %v1832 = vpop.permute.xlu0 %1831
  %1833 = vrot.lane.b32.xlu0 %v1825, 64
  %v1834 = vpop.permute.xlu0 %1833
  %v1835 = vsel %vm277, %v1830, %v1832
  %v1836 = vsel %vm277, %v1832, %v1834
  %v1840 = vadd.f32 %v1816, %v1830
  %v1841 = vadd.f32 %v1817, %v1835
  %v1842 = vadd.f32 %v1818, %v1836
  %1843 = vset.pattern.permute.xlu0 40
  %1844 = vperm.xlu0 %1843, %v24
  %v1845 = vpop.permute.xlu0 %1844
  %v1847 = vmul.f32 %v857, %v1845
  %v1848 = vmul.f32 %v858, %v1845
  %v1849 = vmul.f32 %v1845, 0.0
  %1853 = vrot.lane.b32.xlu0 %v1847, 16
  %v1854 = vpop.permute.xlu0 %1853
  %1855 = vrot.lane.b32.xlu0 %v1848, 16
  %v1856 = vpop.permute.xlu0 %1855
  %1857 = vrot.lane.b32.xlu0 %v1849, 16
  %v1858 = vpop.permute.xlu0 %1857
  %v1859 = vsel %vm42, %v1854, %v1856
  %v1860 = vsel %vm42, %v1856, %v1858
  %v1864 = vadd.f32 %v1840, %v1854
  %v1865 = vadd.f32 %v1841, %v1859
  %v1866 = vadd.f32 %v1842, %v1860
  %1867 = vset.pattern.permute.xlu0 47
  %1868 = vperm.xlu0 %1867, %v24
  %v1869 = vpop.permute.xlu0 %1868
  %v1871 = vmul.f32 %v858, %v1869
  %v1872 = vmul.f32 %v1869, 0.0
  %1875 = vrot.lane.b32.xlu0 %v1871, 96
  %v1876 = vpop.permute.xlu0 %1875
  %1877 = vrot.lane.b32.xlu0 %v1872, 96
  %v1878 = vpop.permute.xlu0 %1877
  %v1879 = vsel %vm227, %v1876, %v1878
  %v1883 = vadd.f32 %v1864, %v1876
  %v1884 = vadd.f32 %v1865, %v1879
  %v1885 = vadd.f32 %v1866, %v1878
  %v1886 = vperm.slane %v28, 5
  %v1887 = vperm.slane %v29, 5
  %1890 = vrot.lane.b32.xlu0 %v1886, 118
  %v1891 = vpop.permute.xlu0 %1890
  %1892 = vrot.lane.b32.xlu0 %v1887, 118
  %v1893 = vpop.permute.xlu0 %1892
  %vm1894 = vcmask 965632
  %v1895 = vsel %vm1894, %v1891, %v1893
  %v1899 = vmul.f32 %v1883, %v1891
  %v1900 = vmul.f32 %v1884, %v1895
  %v1901 = vmul.f32 %v1885, %v1893
  %1905 = vrot.lane.b32.xlu0 %v1899, 113
  %v1906 = vpop.permute.xlu0 %1905
  %1907 = vrot.lane.b32.xlu0 %v1900, 113
  %v1908 = vpop.permute.xlu0 %1907
  %1909 = vrot.lane.b32.xlu0 %v1901, 113
  %v1910 = vpop.permute.xlu0 %1909
  %vm1911 = vcmask 924672
  %v1912 = vsel %vm1911, %v1906, %v1908
  %v1913 = vsel %vm1911, %v1908, %v1910
  %v1917 = vadd.f32 %v1738, %v1912
  %v1918 = vadd.f32 %v1739, %v1913
  %v1919 = vadd.f32 %v1740, %v1910
  %1920 = vset.pattern.permute.xlu0 6
  %1921 = vperm.xlu0 %1920, %v24
  %v1922 = vpop.permute.xlu0 %1921
  %v1924 = vmul.f32 %v1922, 0.0
  %v1925 = vmul.f32 %v857, %v1922
  %1926 = vset.pattern.permute.xlu0 13
  %1927 = vperm.xlu0 %1926, %v24
  %v1928 = vpop.permute.xlu0 %1927
  %v1930 = vmul.f32 %v1928, 0.0
  %v1931 = vmul.f32 %v857, %v1928
  %v1932 = vmul.f32 %v858, %v1928
  %1936 = vrot.lane.b32.xlu0 %v1930, 80
  %v1937 = vpop.permute.xlu0 %1936
  %1938 = vrot.lane.b32.xlu0 %v1931, 80
  %v1939 = vpop.permute.xlu0 %1938
  %1940 = vrot.lane.b32.xlu0 %v1932, 80
  %v1941 = vpop.permute.xlu0 %1940
  %v1942 = vsel %vm252, %v1937, %v1939
  %v1943 = vsel %vm252, %v1939, %v1941
  %v1947 = vadd.f32 %v1924, %v1937
  %v1948 = vadd.f32 %v1924, %v1942
  %v1949 = vadd.f32 %v1925, %v1943
  %1950 = vset.pattern.permute.xlu0 20
  %1951 = vperm.xlu0 %1950, %v24
  %v1952 = vpop.permute.xlu0 %1951
  %v1954 = vmul.f32 %v1952, 0.0
  %v1955 = vmul.f32 %v857, %v1952
  %v1956 = vmul.f32 %v858, %v1952
  %1960 = vrot.lane.b32.xlu0 %v1954, 32
  %v1961 = vpop.permute.xlu0 %1960
  %1962 = vrot.lane.b32.xlu0 %v1955, 32
  %v1963 = vpop.permute.xlu0 %1962
  %1964 = vrot.lane.b32.xlu0 %v1956, 32
  %v1965 = vpop.permute.xlu0 %1964
  %v1966 = vsel %vm913, %v1961, %v1963
  %v1967 = vsel %vm913, %v1963, %v1965
  %v1971 = vadd.f32 %v1947, %v1961
  %v1972 = vadd.f32 %v1948, %v1966
  %v1973 = vadd.f32 %v1949, %v1967
  %1974 = vset.pattern.permute.xlu0 27
  %1975 = vperm.xlu0 %1974, %v24
  %v1976 = vpop.permute.xlu0 %1975
  %v1978 = vmul.f32 %v857, %v1976
  %v1979 = vmul.f32 %v858, %v1976
  %v1980 = vmul.f32 %v1976, 0.0
  %1984 = vrot.lane.b32.xlu0 %v1978, 112
  %v1985 = vpop.permute.xlu0 %1984
  %1986 = vrot.lane.b32.xlu0 %v1979, 112
  %v1987 = vpop.permute.xlu0 %1986
  %1988 = vrot.lane.b32.xlu0 %v1980, 112
  %v1989 = vpop.permute.xlu0 %1988
  %v1990 = vsel %vm202, %v1985, %v1987
  %v1991 = vsel %vm202, %v1987, %v1989
  %v1995 = vadd.f32 %v1971, %v1985
  %v1996 = vadd.f32 %v1972, %v1990
  %v1997 = vadd.f32 %v1973, %v1991
  %1998 = vset.pattern.permute.xlu0 34
  %1999 = vperm.xlu0 %1998, %v24
  %v2000 = vpop.permute.xlu0 %1999
  %v2002 = vmul.f32 %v857, %v2000
  %v2003 = vmul.f32 %v858, %v2000
  %v2004 = vmul.f32 %v2000, 0.0
  %2008 = vrot.lane.b32.xlu0 %v2002, 64
  %v2009 = vpop.permute.xlu0 %2008
  %2010 = vrot.lane.b32.xlu0 %v2003, 64
  %v2011 = vpop.permute.xlu0 %2010
  %2012 = vrot.lane.b32.xlu0 %v2004, 64
  %v2013 = vpop.permute.xlu0 %2012
  %v2014 = vsel %vm277, %v2009, %v2011
  %v2015 = vsel %vm277, %v2011, %v2013
  %v2019 = vadd.f32 %v1995, %v2009
  %v2020 = vadd.f32 %v1996, %v2014
  %v2021 = vadd.f32 %v1997, %v2015
  %2022 = vset.pattern.permute.xlu0 41
  %2023 = vperm.xlu0 %2022, %v24
  %v2024 = vpop.permute.xlu0 %2023
  %v2026 = vmul.f32 %v857, %v2024
  %v2027 = vmul.f32 %v858, %v2024
  %v2028 = vmul.f32 %v2024, 0.0
  %2032 = vrot.lane.b32.xlu0 %v2026, 16
  %v2033 = vpop.permute.xlu0 %2032
  %2034 = vrot.lane.b32.xlu0 %v2027, 16
  %v2035 = vpop.permute.xlu0 %2034
  %2036 = vrot.lane.b32.xlu0 %v2028, 16
  %v2037 = vpop.permute.xlu0 %2036
  %v2038 = vsel %vm42, %v2033, %v2035
  %v2039 = vsel %vm42, %v2035, %v2037
  %v2043 = vadd.f32 %v2019, %v2033
  %v2044 = vadd.f32 %v2020, %v2038
  %v2045 = vadd.f32 %v2021, %v2039
  %2046 = vset.pattern.permute.xlu0 48
  %2047 = vperm.xlu0 %2046, %v24
  %v2048 = vpop.permute.xlu0 %2047
  %v2050 = vmul.f32 %v858, %v2048
  %v2051 = vmul.f32 %v2048, 0.0
  %2054 = vrot.lane.b32.xlu0 %v2050, 96
  %v2055 = vpop.permute.xlu0 %2054
  %2056 = vrot.lane.b32.xlu0 %v2051, 96
  %v2057 = vpop.permute.xlu0 %2056
  %v2058 = vsel %vm227, %v2055, %v2057
  %v2062 = vadd.f32 %v2043, %v2055
  %v2063 = vadd.f32 %v2044, %v2058
  %v2064 = vadd.f32 %v2045, %v2057
  %v2065 = vperm.slane %v28, 6
  %v2066 = vperm.slane %v29, 6
  %2069 = vrot.lane.b32.xlu0 %v2065, 121
  %v2070 = vpop.permute.xlu0 %2069
  %2071 = vrot.lane.b32.xlu0 %v2066, 121
  %v2072 = vpop.permute.xlu0 %2071
  %vm2073 = vcmask 990208
  %v2074 = vsel %vm2073, %v2070, %v2072
  %v2078 = vmul.f32 %v2062, %v2070
  %v2079 = vmul.f32 %v2063, %v2074
  %v2080 = vmul.f32 %v2064, %v2072
  %2084 = vrot.lane.b32.xlu0 %v2078, 110
  %v2085 = vpop.permute.xlu0 %2084
  %2086 = vrot.lane.b32.xlu0 %v2079, 110
  %v2087 = vpop.permute.xlu0 %2086
  %2088 = vrot.lane.b32.xlu0 %v2080, 110
  %v2089 = vpop.permute.xlu0 %2088
  %vm2090 = vcmask 900096
  %v2091 = vsel %vm2090, %v2085, %v2087
  %v2092 = vsel %vm2090, %v2087, %v2089
  %v2096 = vadd.f32 %v1917, %v2091
  %v2097 = vadd.f32 %v1918, %v2092
  %v2098 = vadd.f32 %v1919, %v2089
  %2102 = vrot.lane.b32.xlu0 %v2096, 119
  %v2103 = vpop.permute.xlu0 %2102
  %2104 = vrot.lane.b32.xlu0 %v2097, 119
  %v2105 = vpop.permute.xlu0 %2104
  %2106 = vrot.lane.b32.xlu0 %v2098, 119
  %v2107 = vpop.permute.xlu0 %2106
  %v2108 = vsel %vm1553, %v2103, %v2105
  %v2109 = vsel %vm1553, %v2105, %v2107
  %2111 = vset.pattern.permute.xlu0 16
  %2112 = vperm.xlu0 %2111, %v17
  %v2113 = vpop.permute.xlu0 %2112
  %2115 = vrot.lane.b32.xlu0 %v2108, 34
  %v2116 = vpop.permute.xlu0 %2115
  %2117 = vrot.lane.b32.xlu0 %v2109, 34
  %v2118 = vpop.permute.xlu0 %2117
  %2119 = vrot.lane.b32.xlu0 %v2107, 34
  %v2120 = vpop.permute.xlu0 %2119
  %v2121 = vsel %vm856, %v2116, %v2118
  %v2122 = vsel %vm856, %v2118, %v2120
  %v2125 = vsel %vm42, %v17, 0
  %2127 = vmatpush.msra.mxu0 0.0
  %2128 = vmatpush.msra.mxu0 0.0
  %2129 = vmatpush.msra.mxu0 0.0
  %2130 = vmatpush.msra.mxu0 0.0
  %2131 = vmatpush.msra.mxu0 0.0
  %2132 = vmatpush.msra.mxu0 0.0
  %2133 = vmatpush.msra.mxu0 0.0
  %2134 = vmatpush.msra.mxu0 0.0
  %2135 = vmatpush.msra.mxu0 0.0
  %2136 = vmatpush.msra.mxu0 0.0
  %2137 = vmatpush.msra.mxu0 0.0
  %2138 = vmatpush.msra.mxu0 0.0
  %2139 = vmatpush.msra.mxu0 0.0
  %2140 = vmatpush.msra.mxu0 0.0
  %2141 = vmatpush.msra.mxu0 %v2121
  %2142 = vmatpush.msra.mxu0 %v857
  %2143 = vmatmul.f32.gmra.mxu0 %v2125
  %v2144 = vpop.f32.mrf.mxu0
  %v2145 = vadd.f32 %v2113, %v2144
  %2146 = vdwg.mxu0
  %2147 = vmatpush.msra.mxu0 0.0
  %2148 = vmatpush.msra.mxu0 0.0
  %2149 = vmatpush.msra.mxu0 0.0
  %2150 = vmatpush.msra.mxu0 0.0
  %2151 = vmatpush.msra.mxu0 0.0
  %2152 = vmatpush.msra.mxu0 0.0
  %2153 = vmatpush.msra.mxu0 0.0
  %2154 = vmatpush.msra.mxu0 0.0
  %2155 = vmatpush.msra.mxu0 0.0
  %2156 = vmatpush.msra.mxu0 0.0
  %2157 = vmatpush.msra.mxu0 0.0
  %2158 = vmatpush.msra.mxu0 0.0
  %2159 = vmatpush.msra.mxu0 0.0
  %2160 = vmatpush.msra.mxu0 0.0
  %2161 = vmatpush.msra.mxu0 %v2122
  %2162 = vmatpush.msra.mxu0 %v858
  %2163 = vmatmul.f32.gmra.mxu0 %v2125
  %v2164 = vpop.f32.mrf.mxu0
  %v2165 = vadd.f32 %v2113, %v2164
  %2166 = vdwg.mxu0
  %vm2167 = vcmask 1043456
  %v2168 = vsel %vm2167, %v2145, 0.0
  %v2169 = vrot.slane %v2168, 4
  %v2170 = vadd.f32 %v2168, %v2169
  %v2171 = vrot.slane %v2170, 2
  %v2172 = vadd.f32 %v2170, %v2171
  %v2173 = vrot.slane %v2172, 1
  %v2174 = vadd.f32 %v2172, %v2173
  %v2175 = vsel %vm2167, %v2165, 0.0
  %v2176 = vrot.slane %v2175, 4
  %v2177 = vadd.f32 %v2175, %v2176
  %v2178 = vrot.slane %v2177, 2
  %v2179 = vadd.f32 %v2177, %v2178
  %v2180 = vrot.slane %v2179, 1
  %v2181 = vadd.f32 %v2179, %v2180
  %v2182 = vrcp.pop 4.0
  %v2183 = vmul.f32 4.0, %v2182
  %v2184 = vsub.f32 1.0, %v2183
  %v2185 = vmul.f32 %v2182, %v2184
  %v2186 = vadd.f32 %v2182, %v2185
  %vm2187 = vweird.f32 %v2182
  %v2188 = vsel %vm2187, %v2182, %v2186
  %v2189 = vmul.f32 %v2174, %v2188
  %v2190 = vmul.f32 %v2181, %v2188
  %v2193 = vrot.slane %v2145, 4
  %v2194 = vrot.slane %v2165, 4
  %v2197 = vsel %vm2167, %v2193, 0.0
  %v2198 = vrot.slane %v2197, 4
  %v2199 = vadd.f32 %v2197, %v2198
  %v2200 = vrot.slane %v2199, 2
  %v2201 = vadd.f32 %v2199, %v2200
  %v2202 = vrot.slane %v2201, 1
  %v2203 = vadd.f32 %v2201, %v2202
  %v2204 = vsel %vm2167, %v2194, 0.0
  %v2205 = vrot.slane %v2204, 4
  %v2206 = vadd.f32 %v2204, %v2205
  %v2207 = vrot.slane %v2206, 2
  %v2208 = vadd.f32 %v2206, %v2207
  %v2209 = vrot.slane %v2208, 1
  %v2210 = vadd.f32 %v2208, %v2209
  %v2211 = vmul.f32 %v2203, %v2188
  %v2212 = vmul.f32 %v2210, %v2188
  %v2213 = vsel %vm2167, %v2145, -inf
  %v2214 = vrot.slane %v2213, 4
  %v2215 = vmax.f32 %v2213, %v2214
  %v2216 = vrot.slane %v2215, 2
  %v2217 = vmax.f32 %v2215, %v2216
  %v2218 = vrot.slane %v2217, 1
  %v2219 = vmax.f32 %v2217, %v2218
  %v2220 = vsel %vm2167, %v2165, -inf
  %v2221 = vrot.slane %v2220, 4
  %v2222 = vmax.f32 %v2220, %v2221
  %v2223 = vrot.slane %v2222, 2
  %v2224 = vmax.f32 %v2222, %v2223
  %v2225 = vrot.slane %v2224, 1
  %v2226 = vmax.f32 %v2224, %v2225
  %vm2227 = vcmask 1047556
  %v2228 = vsel %vm2227, %v2145, -inf
  %v2229 = vrot.slane %v2228, 4
  %v2230 = vmax.f32 %v2228, %v2229
  %v2231 = vrot.slane %v2230, 2
  %v2232 = vmax.f32 %v2230, %v2231
  %v2233 = vrot.slane %v2232, 1
  %v2234 = vmax.f32 %v2232, %v2233
  %v2235 = vsel %vm2227, %v2165, -inf
  %v2236 = vrot.slane %v2235, 4
  %v2237 = vmax.f32 %v2235, %v2236
  %v2238 = vrot.slane %v2237, 2
  %v2239 = vmax.f32 %v2237, %v2238
  %v2240 = vrot.slane %v2239, 1
  %v2241 = vmax.f32 %v2239, %v2240
  %vm2242 = vcmask 1040384
  %v2243 = vsel %vm2242, %v2189, %v2211
  %v2244 = vsel %vm2242, %v2190, %v2212
  %vm2245 = vcmask 1041408
  %v2246 = vsel %vm2245, %v2243, %v2219
  %v2247 = vsel %vm2245, %v2244, %v2226
  %vm2248 = vcmask 1042432
  %v2249 = vsel %vm2248, %v2246, %v2234
  %v2250 = vsel %vm2248, %v2247, %v2241
  %v2253 = vrot.slane %v2249, 4
  %v2254 = vrot.slane %v2250, 4
  %v2257 = vsel %vm2167, %v2249, %v2253
  %v2258 = vsel %vm2167, %v2250, %v2254
  %2260 = vset.pattern.permute.xlu0 0
  %2261 = vperm.xlu0 %2260, %v25
  %v2262 = vpop.permute.xlu0 %2261
  %v2264 = vmul.f32 %v2262, 0.0
  %v2265 = vmul.f32 %v2257, %v2262
  %v2266 = vmul.f32 %v2258, %v2262
  %2267 = vset.pattern.permute.xlu0 7
  %2268 = vperm.xlu0 %2267, %v25
  %v2269 = vpop.permute.xlu0 %2268
  %v2271 = vmul.f32 %v2269, 0.0
  %v2272 = vmul.f32 %v2257, %v2269
  %v2273 = vmul.f32 %v2258, %v2269
  %2277 = vrot.lane.b32.xlu0 %v2271, 112
  %v2278 = vpop.permute.xlu0 %2277
  %2279 = vrot.lane.b32.xlu0 %v2272, 112
  %v2280 = vpop.permute.xlu0 %2279
  %2281 = vrot.lane.b32.xlu0 %v2273, 112
  %v2282 = vpop.permute.xlu0 %2281
  %v2283 = vsel %vm202, %v2278, %v2280
  %v2284 = vsel %vm202, %v2280, %v2282
  %v2288 = vadd.f32 %v2264, %v2283
  %v2289 = vadd.f32 %v2265, %v2284
  %v2290 = vadd.f32 %v2266, %v2282
  %2291 = vset.pattern.permute.xlu0 14
  %2292 = vperm.xlu0 %2291, %v25
  %v2293 = vpop.permute.xlu0 %2292
  %v2295 = vmul.f32 %v2293, 0.0
  %v2296 = vmul.f32 %v2257, %v2293
  %v2297 = vmul.f32 %v2258, %v2293
  %2301 = vrot.lane.b32.xlu0 %v2295, 96
  %v2302 = vpop.permute.xlu0 %2301
  %2303 = vrot.lane.b32.xlu0 %v2296, 96
  %v2304 = vpop.permute.xlu0 %2303
  %2305 = vrot.lane.b32.xlu0 %v2297, 96
  %v2306 = vpop.permute.xlu0 %2305
  %v2307 = vsel %vm227, %v2302, %v2304
  %v2308 = vsel %vm227, %v2304, %v2306
  %v2312 = vadd.f32 %v2288, %v2307
  %v2313 = vadd.f32 %v2289, %v2308
  %v2314 = vadd.f32 %v2290, %v2306
  %2315 = vset.pattern.permute.xlu0 21
  %2316 = vperm.xlu0 %2315, %v25
  %v2317 = vpop.permute.xlu0 %2316
  %v2319 = vmul.f32 %v2317, 0.0
  %v2320 = vmul.f32 %v2257, %v2317
  %v2321 = vmul.f32 %v2258, %v2317
  %2325 = vrot.lane.b32.xlu0 %v2319, 80
  %v2326 = vpop.permute.xlu0 %2325
  %2327 = vrot.lane.b32.xlu0 %v2320, 80
  %v2328 = vpop.permute.xlu0 %2327
  %2329 = vrot.lane.b32.xlu0 %v2321, 80
  %v2330 = vpop.permute.xlu0 %2329
  %v2331 = vsel %vm252, %v2326, %v2328
  %v2332 = vsel %vm252, %v2328, %v2330
  %v2336 = vadd.f32 %v2312, %v2331
  %v2337 = vadd.f32 %v2313, %v2332
  %v2338 = vadd.f32 %v2314, %v2330
  %2339 = vset.pattern.permute.xlu0 28
  %2340 = vperm.xlu0 %2339, %v25
  %v2341 = vpop.permute.xlu0 %2340
  %v2343 = vmul.f32 %v2257, %v2341
  %v2344 = vmul.f32 %v2258, %v2341
  %v2345 = vmul.f32 %v2341, 0.0
  %2349 = vrot.lane.b32.xlu0 %v2343, 64
  %v2350 = vpop.permute.xlu0 %2349
  %2351 = vrot.lane.b32.xlu0 %v2344, 64
  %v2352 = vpop.permute.xlu0 %2351
  %2353 = vrot.lane.b32.xlu0 %v2345, 64
  %v2354 = vpop.permute.xlu0 %2353
  %v2355 = vsel %vm277, %v2350, %v2352
  %v2356 = vsel %vm277, %v2352, %v2354
  %v2360 = vadd.f32 %v2336, %v2350
  %v2361 = vadd.f32 %v2337, %v2355
  %v2362 = vadd.f32 %v2338, %v2356
  %2363 = vset.pattern.permute.xlu0 35
  %2364 = vperm.xlu0 %2363, %v25
  %v2365 = vpop.permute.xlu0 %2364
  %v2367 = vmul.f32 %v2257, %v2365
  %v2368 = vmul.f32 %v2258, %v2365
  %v2369 = vmul.f32 %v2365, 0.0
  %2373 = vrot.lane.b32.xlu0 %v2367, 48
  %v2374 = vpop.permute.xlu0 %2373
  %2375 = vrot.lane.b32.xlu0 %v2368, 48
  %v2376 = vpop.permute.xlu0 %2375
  %2377 = vrot.lane.b32.xlu0 %v2369, 48
  %v2378 = vpop.permute.xlu0 %2377
  %vm2379 = vcmask 392192
  %v2380 = vsel %vm2379, %v2374, %v2376
  %v2381 = vsel %vm2379, %v2376, %v2378
  %v2385 = vadd.f32 %v2360, %v2374
  %v2386 = vadd.f32 %v2361, %v2380
  %v2387 = vadd.f32 %v2362, %v2381
  %2388 = vset.pattern.permute.xlu0 42
  %2389 = vperm.xlu0 %2388, %v25
  %v2390 = vpop.permute.xlu0 %2389
  %v2392 = vmul.f32 %v2257, %v2390
  %v2393 = vmul.f32 %v2258, %v2390
  %v2394 = vmul.f32 %v2390, 0.0
  %2398 = vrot.lane.b32.xlu0 %v2392, 32
  %v2399 = vpop.permute.xlu0 %2398
  %2400 = vrot.lane.b32.xlu0 %v2393, 32
  %v2401 = vpop.permute.xlu0 %2400
  %2402 = vrot.lane.b32.xlu0 %v2394, 32
  %v2403 = vpop.permute.xlu0 %2402
  %v2404 = vsel %vm913, %v2399, %v2401
  %v2405 = vsel %vm913, %v2401, %v2403
  %v2409 = vadd.f32 %v2385, %v2399
  %v2410 = vadd.f32 %v2386, %v2404
  %v2411 = vadd.f32 %v2387, %v2405
  %v2412 = vperm.slane %v30, 0
  %v2413 = vperm.slane %v31, 0
  %2416 = vrot.lane.b32.xlu0 %v2412, 77
  %v2417 = vpop.permute.xlu0 %2416
  %2418 = vrot.lane.b32.xlu0 %v2413, 77
  %v2419 = vpop.permute.xlu0 %2418
  %vm2420 = vcmask 629760
  %v2421 = vsel %vm2420, %v2417, %v2419
  %v2425 = vmul.f32 %v2409, %v2417
  %v2426 = vmul.f32 %v2410, %v2421
  %v2427 = vmul.f32 %v2411, %v2419
  %v2428 = vadd.f32 %v2425, 0.0
  %v2429 = vadd.f32 %v2426, 0.0
  %v2430 = vadd.f32 %v2427, 0.0
  %2431 = vset.pattern.permute.xlu0 1
  %2432 = vperm.xlu0 %2431, %v25
  %v2433 = vpop.permute.xlu0 %2432
  %v2435 = vmul.f32 %v2433, 0.0
  %v2436 = vmul.f32 %v2257, %v2433
  %v2437 = vmul.f32 %v2258, %v2433
  %2438 = vset.pattern.permute.xlu0 8
  %2439 = vperm.xlu0 %2438, %v25
  %v2440 = vpop.permute.xlu0 %2439
  %v2442 = vmul.f32 %v2440, 0.0
  %v2443 = vmul.f32 %v2257, %v2440
  %v2444 = vmul.f32 %v2258, %v2440
  %2448 = vrot.lane.b32.xlu0 %v2442, 112
  %v2449 = vpop.permute.xlu0 %2448
  %2450 = vrot.lane.b32.xlu0 %v2443, 112
  %v2451 = vpop.permute.xlu0 %2450
  %2452 = vrot.lane.b32.xlu0 %v2444, 112
  %v2453 = vpop.permute.xlu0 %2452
  %v2454 = vsel %vm202, %v2449, %v2451
  %v2455 = vsel %vm202, %v2451, %v2453
  %v2459 = vadd.f32 %v2435, %v2454
  %v2460 = vadd.f32 %v2436, %v2455
  %v2461 = vadd.f32 %v2437, %v2453
  %2462 = vset.pattern.permute.xlu0 15
  %2463 = vperm.xlu0 %2462, %v25
  %v2464 = vpop.permute.xlu0 %2463
  %v2466 = vmul.f32 %v2464, 0.0
  %v2467 = vmul.f32 %v2257, %v2464
  %v2468 = vmul.f32 %v2258, %v2464
  %2472 = vrot.lane.b32.xlu0 %v2466, 96
  %v2473 = vpop.permute.xlu0 %2472
  %2474 = vrot.lane.b32.xlu0 %v2467, 96
  %v2475 = vpop.permute.xlu0 %2474
  %2476 = vrot.lane.b32.xlu0 %v2468, 96
  %v2477 = vpop.permute.xlu0 %2476
  %v2478 = vsel %vm227, %v2473, %v2475
  %v2479 = vsel %vm227, %v2475, %v2477
  %v2483 = vadd.f32 %v2459, %v2478
  %v2484 = vadd.f32 %v2460, %v2479
  %v2485 = vadd.f32 %v2461, %v2477
  %2486 = vset.pattern.permute.xlu0 22
  %2487 = vperm.xlu0 %2486, %v25
  %v2488 = vpop.permute.xlu0 %2487
  %v2490 = vmul.f32 %v2488, 0.0
  %v2491 = vmul.f32 %v2257, %v2488
  %v2492 = vmul.f32 %v2258, %v2488
  %2496 = vrot.lane.b32.xlu0 %v2490, 80
  %v2497 = vpop.permute.xlu0 %2496
  %2498 = vrot.lane.b32.xlu0 %v2491, 80
  %v2499 = vpop.permute.xlu0 %2498
  %2500 = vrot.lane.b32.xlu0 %v2492, 80
  %v2501 = vpop.permute.xlu0 %2500
  %v2502 = vsel %vm252, %v2497, %v2499
  %v2503 = vsel %vm252, %v2499, %v2501
  %v2507 = vadd.f32 %v2483, %v2502
  %v2508 = vadd.f32 %v2484, %v2503
  %v2509 = vadd.f32 %v2485, %v2501
  %2510 = vset.pattern.permute.xlu0 29
  %2511 = vperm.xlu0 %2510, %v25
  %v2512 = vpop.permute.xlu0 %2511
  %v2514 = vmul.f32 %v2257, %v2512
  %v2515 = vmul.f32 %v2258, %v2512
  %v2516 = vmul.f32 %v2512, 0.0
  %2520 = vrot.lane.b32.xlu0 %v2514, 64
  %v2521 = vpop.permute.xlu0 %2520
  %2522 = vrot.lane.b32.xlu0 %v2515, 64
  %v2523 = vpop.permute.xlu0 %2522
  %2524 = vrot.lane.b32.xlu0 %v2516, 64
  %v2525 = vpop.permute.xlu0 %2524
  %v2526 = vsel %vm277, %v2521, %v2523
  %v2527 = vsel %vm277, %v2523, %v2525
  %v2531 = vadd.f32 %v2507, %v2521
  %v2532 = vadd.f32 %v2508, %v2526
  %v2533 = vadd.f32 %v2509, %v2527
  %2534 = vset.pattern.permute.xlu0 36
  %2535 = vperm.xlu0 %2534, %v25
  %v2536 = vpop.permute.xlu0 %2535
  %v2538 = vmul.f32 %v2257, %v2536
  %v2539 = vmul.f32 %v2258, %v2536
  %v2540 = vmul.f32 %v2536, 0.0
  %2544 = vrot.lane.b32.xlu0 %v2538, 48
  %v2545 = vpop.permute.xlu0 %2544
  %2546 = vrot.lane.b32.xlu0 %v2539, 48
  %v2547 = vpop.permute.xlu0 %2546
  %2548 = vrot.lane.b32.xlu0 %v2540, 48
  %v2549 = vpop.permute.xlu0 %2548
  %v2550 = vsel %vm2379, %v2545, %v2547
  %v2551 = vsel %vm2379, %v2547, %v2549
  %v2555 = vadd.f32 %v2531, %v2545
  %v2556 = vadd.f32 %v2532, %v2550
  %v2557 = vadd.f32 %v2533, %v2551
  %2558 = vset.pattern.permute.xlu0 43
  %2559 = vperm.xlu0 %2558, %v25
  %v2560 = vpop.permute.xlu0 %2559
  %v2562 = vmul.f32 %v2257, %v2560
  %v2563 = vmul.f32 %v2258, %v2560
  %v2564 = vmul.f32 %v2560, 0.0
  %2568 = vrot.lane.b32.xlu0 %v2562, 32
  %v2569 = vpop.permute.xlu0 %2568
  %2570 = vrot.lane.b32.xlu0 %v2563, 32
  %v2571 = vpop.permute.xlu0 %2570
  %2572 = vrot.lane.b32.xlu0 %v2564, 32
  %v2573 = vpop.permute.xlu0 %2572
  %v2574 = vsel %vm913, %v2569, %v2571
  %v2575 = vsel %vm913, %v2571, %v2573
  %v2579 = vadd.f32 %v2555, %v2569
  %v2580 = vadd.f32 %v2556, %v2574
  %v2581 = vadd.f32 %v2557, %v2575
  %v2582 = vperm.slane %v30, 1
  %v2583 = vperm.slane %v31, 1
  %2586 = vrot.lane.b32.xlu0 %v2582, 78
  %v2587 = vpop.permute.xlu0 %2586
  %2588 = vrot.lane.b32.xlu0 %v2583, 78
  %v2589 = vpop.permute.xlu0 %2588
  %vm2590 = vcmask 637952
  %v2591 = vsel %vm2590, %v2587, %v2589
  %v2595 = vmul.f32 %v2579, %v2587
  %v2596 = vmul.f32 %v2580, %v2591
  %v2597 = vmul.f32 %v2581, %v2589
  %2601 = vrot.lane.b32.xlu0 %v2595, 127
  %v2602 = vpop.permute.xlu0 %2601
  %2603 = vrot.lane.b32.xlu0 %v2596, 127
  %v2604 = vpop.permute.xlu0 %2603
  %2605 = vrot.lane.b32.xlu0 %v2597, 127
  %v2606 = vpop.permute.xlu0 %2605
  %v2607 = vsel %vm433, %v2602, %v2604
  %v2608 = vsel %vm433, %v2604, %v2606
  %v2612 = vadd.f32 %v2428, %v2607
  %v2613 = vadd.f32 %v2429, %v2608
  %v2614 = vadd.f32 %v2430, %v2606
  %2615 = vset.pattern.permute.xlu0 2
  %2616 = vperm.xlu0 %2615, %v25
  %v2617 = vpop.permute.xlu0 %2616
  %v2619 = vmul.f32 %v2617, 0.0
  %v2620 = vmul.f32 %v2257, %v2617
  %v2621 = vmul.f32 %v2258, %v2617
  %2622 = vset.pattern.permute.xlu0 9
  %2623 = vperm.xlu0 %2622, %v25
  %v2624 = vpop.permute.xlu0 %2623
  %v2626 = vmul.f32 %v2624, 0.0
  %v2627 = vmul.f32 %v2257, %v2624
  %v2628 = vmul.f32 %v2258, %v2624
  %2632 = vrot.lane.b32.xlu0 %v2626, 112
  %v2633 = vpop.permute.xlu0 %2632
  %2634 = vrot.lane.b32.xlu0 %v2627, 112
  %v2635 = vpop.permute.xlu0 %2634
  %2636 = vrot.lane.b32.xlu0 %v2628, 112
  %v2637 = vpop.permute.xlu0 %2636
  %v2638 = vsel %vm202, %v2633, %v2635
  %v2639 = vsel %vm202, %v2635, %v2637
  %v2643 = vadd.f32 %v2619, %v2638
  %v2644 = vadd.f32 %v2620, %v2639
  %v2645 = vadd.f32 %v2621, %v2637
  %2646 = vset.pattern.permute.xlu0 16
  %2647 = vperm.xlu0 %2646, %v25
  %v2648 = vpop.permute.xlu0 %2647
  %v2650 = vmul.f32 %v2648, 0.0
  %v2651 = vmul.f32 %v2257, %v2648
  %v2652 = vmul.f32 %v2258, %v2648
  %2656 = vrot.lane.b32.xlu0 %v2650, 96
  %v2657 = vpop.permute.xlu0 %2656
  %2658 = vrot.lane.b32.xlu0 %v2651, 96
  %v2659 = vpop.permute.xlu0 %2658
  %2660 = vrot.lane.b32.xlu0 %v2652, 96
  %v2661 = vpop.permute.xlu0 %2660
  %v2662 = vsel %vm227, %v2657, %v2659
  %v2663 = vsel %vm227, %v2659, %v2661
  %v2667 = vadd.f32 %v2643, %v2662
  %v2668 = vadd.f32 %v2644, %v2663
  %v2669 = vadd.f32 %v2645, %v2661
  %2670 = vset.pattern.permute.xlu0 23
  %2671 = vperm.xlu0 %2670, %v25
  %v2672 = vpop.permute.xlu0 %2671
  %v2674 = vmul.f32 %v2672, 0.0
  %v2675 = vmul.f32 %v2257, %v2672
  %v2676 = vmul.f32 %v2258, %v2672
  %2680 = vrot.lane.b32.xlu0 %v2674, 80
  %v2681 = vpop.permute.xlu0 %2680
  %2682 = vrot.lane.b32.xlu0 %v2675, 80
  %v2683 = vpop.permute.xlu0 %2682
  %2684 = vrot.lane.b32.xlu0 %v2676, 80
  %v2685 = vpop.permute.xlu0 %2684
  %v2686 = vsel %vm252, %v2681, %v2683
  %v2687 = vsel %vm252, %v2683, %v2685
  %v2691 = vadd.f32 %v2667, %v2686
  %v2692 = vadd.f32 %v2668, %v2687
  %v2693 = vadd.f32 %v2669, %v2685
  %2694 = vset.pattern.permute.xlu0 30
  %2695 = vperm.xlu0 %2694, %v25
  %v2696 = vpop.permute.xlu0 %2695
  %v2698 = vmul.f32 %v2257, %v2696
  %v2699 = vmul.f32 %v2258, %v2696
  %v2700 = vmul.f32 %v2696, 0.0
  %2704 = vrot.lane.b32.xlu0 %v2698, 64
  %v2705 = vpop.permute.xlu0 %2704
  %2706 = vrot.lane.b32.xlu0 %v2699, 64
  %v2707 = vpop.permute.xlu0 %2706
  %2708 = vrot.lane.b32.xlu0 %v2700, 64
  %v2709 = vpop.permute.xlu0 %2708
  %v2710 = vsel %vm277, %v2705, %v2707
  %v2711 = vsel %vm277, %v2707, %v2709
  %v2715 = vadd.f32 %v2691, %v2705
  %v2716 = vadd.f32 %v2692, %v2710
  %v2717 = vadd.f32 %v2693, %v2711
  %2718 = vset.pattern.permute.xlu0 37
  %2719 = vperm.xlu0 %2718, %v25
  %v2720 = vpop.permute.xlu0 %2719
  %v2722 = vmul.f32 %v2257, %v2720
  %v2723 = vmul.f32 %v2258, %v2720
  %v2724 = vmul.f32 %v2720, 0.0
  %2728 = vrot.lane.b32.xlu0 %v2722, 48
  %v2729 = vpop.permute.xlu0 %2728
  %2730 = vrot.lane.b32.xlu0 %v2723, 48
  %v2731 = vpop.permute.xlu0 %2730
  %2732 = vrot.lane.b32.xlu0 %v2724, 48
  %v2733 = vpop.permute.xlu0 %2732
  %v2734 = vsel %vm2379, %v2729, %v2731
  %v2735 = vsel %vm2379, %v2731, %v2733
  %v2739 = vadd.f32 %v2715, %v2729
  %v2740 = vadd.f32 %v2716, %v2734
  %v2741 = vadd.f32 %v2717, %v2735
  %2742 = vset.pattern.permute.xlu0 44
  %2743 = vperm.xlu0 %2742, %v25
  %v2744 = vpop.permute.xlu0 %2743
  %v2746 = vmul.f32 %v2257, %v2744
  %v2747 = vmul.f32 %v2258, %v2744
  %v2748 = vmul.f32 %v2744, 0.0
  %2752 = vrot.lane.b32.xlu0 %v2746, 32
  %v2753 = vpop.permute.xlu0 %2752
  %2754 = vrot.lane.b32.xlu0 %v2747, 32
  %v2755 = vpop.permute.xlu0 %2754
  %2756 = vrot.lane.b32.xlu0 %v2748, 32
  %v2757 = vpop.permute.xlu0 %2756
  %v2758 = vsel %vm913, %v2753, %v2755
  %v2759 = vsel %vm913, %v2755, %v2757
  %v2763 = vadd.f32 %v2739, %v2753
  %v2764 = vadd.f32 %v2740, %v2758
  %v2765 = vadd.f32 %v2741, %v2759
  %v2766 = vperm.slane %v30, 2
  %v2767 = vperm.slane %v31, 2
  %2770 = vrot.lane.b32.xlu0 %v2766, 79
  %v2771 = vpop.permute.xlu0 %2770
  %2772 = vrot.lane.b32.xlu0 %v2767, 79
  %v2773 = vpop.permute.xlu0 %2772
  %vm2774 = vcmask 646144
  %v2775 = vsel %vm2774, %v2771, %v2773
  %v2779 = vmul.f32 %v2763, %v2771
  %v2780 = vmul.f32 %v2764, %v2775
  %v2781 = vmul.f32 %v2765, %v2773
  %2785 = vrot.lane.b32.xlu0 %v2779, 126
  %v2786 = vpop.permute.xlu0 %2785
  %2787 = vrot.lane.b32.xlu0 %v2780, 126
  %v2788 = vpop.permute.xlu0 %2787
  %2789 = vrot.lane.b32.xlu0 %v2781, 126
  %v2790 = vpop.permute.xlu0 %2789
  %v2791 = vsel %vm564, %v2786, %v2788
  %v2792 = vsel %vm564, %v2788, %v2790
  %v2796 = vadd.f32 %v2612, %v2791
  %v2797 = vadd.f32 %v2613, %v2792
  %v2798 = vadd.f32 %v2614, %v2790
  %2799 = vset.pattern.permute.xlu0 3
  %2800 = vperm.xlu0 %2799, %v25
  %v2801 = vpop.permute.xlu0 %2800
  %v2803 = vmul.f32 %v2801, 0.0
  %v2804 = vmul.f32 %v2257, %v2801
  %v2805 = vmul.f32 %v2258, %v2801
  %2806 = vset.pattern.permute.xlu0 10
  %2807 = vperm.xlu0 %2806, %v25
  %v2808 = vpop.permute.xlu0 %2807
  %v2810 = vmul.f32 %v2808, 0.0
  %v2811 = vmul.f32 %v2257, %v2808
  %v2812 = vmul.f32 %v2258, %v2808
  %2816 = vrot.lane.b32.xlu0 %v2810, 112
  %v2817 = vpop.permute.xlu0 %2816
  %2818 = vrot.lane.b32.xlu0 %v2811, 112
  %v2819 = vpop.permute.xlu0 %2818
  %2820 = vrot.lane.b32.xlu0 %v2812, 112
  %v2821 = vpop.permute.xlu0 %2820
  %v2822 = vsel %vm202, %v2817, %v2819
  %v2823 = vsel %vm202, %v2819, %v2821
  %v2827 = vadd.f32 %v2803, %v2822
  %v2828 = vadd.f32 %v2804, %v2823
  %v2829 = vadd.f32 %v2805, %v2821
  %2830 = vset.pattern.permute.xlu0 17
  %2831 = vperm.xlu0 %2830, %v25
  %v2832 = vpop.permute.xlu0 %2831
  %v2834 = vmul.f32 %v2832, 0.0
  %v2835 = vmul.f32 %v2257, %v2832
  %v2836 = vmul.f32 %v2258, %v2832
  %2840 = vrot.lane.b32.xlu0 %v2834, 96
  %v2841 = vpop.permute.xlu0 %2840
  %2842 = vrot.lane.b32.xlu0 %v2835, 96
  %v2843 = vpop.permute.xlu0 %2842
  %2844 = vrot.lane.b32.xlu0 %v2836, 96
  %v2845 = vpop.permute.xlu0 %2844
  %v2846 = vsel %vm227, %v2841, %v2843
  %v2847 = vsel %vm227, %v2843, %v2845
  %v2851 = vadd.f32 %v2827, %v2846
  %v2852 = vadd.f32 %v2828, %v2847
  %v2853 = vadd.f32 %v2829, %v2845
  %2854 = vset.pattern.permute.xlu0 24
  %2855 = vperm.xlu0 %2854, %v25
  %v2856 = vpop.permute.xlu0 %2855
  %v2858 = vmul.f32 %v2257, %v2856
  %v2859 = vmul.f32 %v2258, %v2856
  %2862 = vrot.lane.b32.xlu0 %v2858, 80
  %v2863 = vpop.permute.xlu0 %2862
  %2864 = vrot.lane.b32.xlu0 %v2859, 80
  %v2865 = vpop.permute.xlu0 %2864
  %v2866 = vsel %vm252, %v2863, %v2865
  %v2870 = vadd.f32 %v2851, %v2863
  %v2871 = vadd.f32 %v2852, %v2866
  %v2872 = vadd.f32 %v2853, %v2865
  %2873 = vset.pattern.permute.xlu0 31
  %2874 = vperm.xlu0 %2873, %v25
  %v2875 = vpop.permute.xlu0 %2874
  %v2877 = vmul.f32 %v2257, %v2875
  %v2878 = vmul.f32 %v2258, %v2875
  %v2879 = vmul.f32 %v2875, 0.0
  %2883 = vrot.lane.b32.xlu0 %v2877, 64
  %v2884 = vpop.permute.xlu0 %2883
  %2885 = vrot.lane.b32.xlu0 %v2878, 64
  %v2886 = vpop.permute.xlu0 %2885
  %2887 = vrot.lane.b32.xlu0 %v2879, 64
  %v2888 = vpop.permute.xlu0 %2887
  %v2889 = vsel %vm277, %v2884, %v2886
  %v2890 = vsel %vm277, %v2886, %v2888
  %v2894 = vadd.f32 %v2870, %v2884
  %v2895 = vadd.f32 %v2871, %v2889
  %v2896 = vadd.f32 %v2872, %v2890
  %2897 = vset.pattern.permute.xlu0 38
  %2898 = vperm.xlu0 %2897, %v25
  %v2899 = vpop.permute.xlu0 %2898
  %v2901 = vmul.f32 %v2257, %v2899
  %v2902 = vmul.f32 %v2258, %v2899
  %v2903 = vmul.f32 %v2899, 0.0
  %2907 = vrot.lane.b32.xlu0 %v2901, 48
  %v2908 = vpop.permute.xlu0 %2907
  %2909 = vrot.lane.b32.xlu0 %v2902, 48
  %v2910 = vpop.permute.xlu0 %2909
  %2911 = vrot.lane.b32.xlu0 %v2903, 48
  %v2912 = vpop.permute.xlu0 %2911
  %v2913 = vsel %vm2379, %v2908, %v2910
  %v2914 = vsel %vm2379, %v2910, %v2912
  %v2918 = vadd.f32 %v2894, %v2908
  %v2919 = vadd.f32 %v2895, %v2913
  %v2920 = vadd.f32 %v2896, %v2914
  %2921 = vset.pattern.permute.xlu0 45
  %2922 = vperm.xlu0 %2921, %v25
  %v2923 = vpop.permute.xlu0 %2922
  %v2925 = vmul.f32 %v2257, %v2923
  %v2926 = vmul.f32 %v2258, %v2923
  %v2927 = vmul.f32 %v2923, 0.0
  %2931 = vrot.lane.b32.xlu0 %v2925, 32
  %v2932 = vpop.permute.xlu0 %2931
  %2933 = vrot.lane.b32.xlu0 %v2926, 32
  %v2934 = vpop.permute.xlu0 %2933
  %2935 = vrot.lane.b32.xlu0 %v2927, 32
  %v2936 = vpop.permute.xlu0 %2935
  %v2937 = vsel %vm913, %v2932, %v2934
  %v2938 = vsel %vm913, %v2934, %v2936
  %v2942 = vadd.f32 %v2918, %v2932
  %v2943 = vadd.f32 %v2919, %v2937
  %v2944 = vadd.f32 %v2920, %v2938
  %v2945 = vperm.slane %v30, 3
  %v2946 = vperm.slane %v31, 3
  %2949 = vrot.lane.b32.xlu0 %v2945, 80
  %v2950 = vpop.permute.xlu0 %2949
  %2951 = vrot.lane.b32.xlu0 %v2946, 80
  %v2952 = vpop.permute.xlu0 %2951
  %v2953 = vsel %vm252, %v2950, %v2952
  %v2957 = vmul.f32 %v2942, %v2950
  %v2958 = vmul.f32 %v2943, %v2953
  %v2959 = vmul.f32 %v2944, %v2952
  %2963 = vrot.lane.b32.xlu0 %v2957, 125
  %v2964 = vpop.permute.xlu0 %2963
  %2965 = vrot.lane.b32.xlu0 %v2958, 125
  %v2966 = vpop.permute.xlu0 %2965
  %2967 = vrot.lane.b32.xlu0 %v2959, 125
  %v2968 = vpop.permute.xlu0 %2967
  %v2969 = vsel %vm701, %v2964, %v2966
  %v2970 = vsel %vm701, %v2966, %v2968
  %v2974 = vadd.f32 %v2796, %v2969
  %v2975 = vadd.f32 %v2797, %v2970
  %v2976 = vadd.f32 %v2798, %v2968
  %2977 = vset.pattern.permute.xlu0 4
  %2978 = vperm.xlu0 %2977, %v25
  %v2979 = vpop.permute.xlu0 %2978
  %v2981 = vmul.f32 %v2979, 0.0
  %v2982 = vmul.f32 %v2257, %v2979
  %v2983 = vmul.f32 %v2258, %v2979
  %2984 = vset.pattern.permute.xlu0 11
  %2985 = vperm.xlu0 %2984, %v25
  %v2986 = vpop.permute.xlu0 %2985
  %v2988 = vmul.f32 %v2986, 0.0
  %v2989 = vmul.f32 %v2257, %v2986
  %v2990 = vmul.f32 %v2258, %v2986
  %2994 = vrot.lane.b32.xlu0 %v2988, 112
  %v2995 = vpop.permute.xlu0 %2994
  %2996 = vrot.lane.b32.xlu0 %v2989, 112
  %v2997 = vpop.permute.xlu0 %2996
  %2998 = vrot.lane.b32.xlu0 %v2990, 112
  %v2999 = vpop.permute.xlu0 %2998
  %v3000 = vsel %vm202, %v2995, %v2997
  %v3001 = vsel %vm202, %v2997, %v2999
  %v3005 = vadd.f32 %v2981, %v3000
  %v3006 = vadd.f32 %v2982, %v3001
  %v3007 = vadd.f32 %v2983, %v2999
  %3008 = vset.pattern.permute.xlu0 18
  %3009 = vperm.xlu0 %3008, %v25
  %v3010 = vpop.permute.xlu0 %3009
  %v3012 = vmul.f32 %v3010, 0.0
  %v3013 = vmul.f32 %v2257, %v3010
  %v3014 = vmul.f32 %v2258, %v3010
  %3018 = vrot.lane.b32.xlu0 %v3012, 96
  %v3019 = vpop.permute.xlu0 %3018
  %3020 = vrot.lane.b32.xlu0 %v3013, 96
  %v3021 = vpop.permute.xlu0 %3020
  %3022 = vrot.lane.b32.xlu0 %v3014, 96
  %v3023 = vpop.permute.xlu0 %3022
  %v3024 = vsel %vm227, %v3019, %v3021
  %v3025 = vsel %vm227, %v3021, %v3023
  %v3029 = vadd.f32 %v3005, %v3024
  %v3030 = vadd.f32 %v3006, %v3025
  %v3031 = vadd.f32 %v3007, %v3023
  %3032 = vset.pattern.permute.xlu0 25
  %3033 = vperm.xlu0 %3032, %v25
  %v3034 = vpop.permute.xlu0 %3033
  %v3036 = vmul.f32 %v2257, %v3034
  %v3037 = vmul.f32 %v2258, %v3034
  %v3038 = vmul.f32 %v3034, 0.0
  %3042 = vrot.lane.b32.xlu0 %v3036, 80
  %v3043 = vpop.permute.xlu0 %3042
  %3044 = vrot.lane.b32.xlu0 %v3037, 80
  %v3045 = vpop.permute.xlu0 %3044
  %3046 = vrot.lane.b32.xlu0 %v3038, 80
  %v3047 = vpop.permute.xlu0 %3046
  %v3048 = vsel %vm252, %v3043, %v3045
  %v3049 = vsel %vm252, %v3045, %v3047
  %v3053 = vadd.f32 %v3029, %v3043
  %v3054 = vadd.f32 %v3030, %v3048
  %v3055 = vadd.f32 %v3031, %v3049
  %3056 = vset.pattern.permute.xlu0 32
  %3057 = vperm.xlu0 %3056, %v25
  %v3058 = vpop.permute.xlu0 %3057
  %v3060 = vmul.f32 %v2257, %v3058
  %v3061 = vmul.f32 %v2258, %v3058
  %v3062 = vmul.f32 %v3058, 0.0
  %3066 = vrot.lane.b32.xlu0 %v3060, 64
  %v3067 = vpop.permute.xlu0 %3066
  %3068 = vrot.lane.b32.xlu0 %v3061, 64
  %v3069 = vpop.permute.xlu0 %3068
  %3070 = vrot.lane.b32.xlu0 %v3062, 64
  %v3071 = vpop.permute.xlu0 %3070
  %v3072 = vsel %vm277, %v3067, %v3069
  %v3073 = vsel %vm277, %v3069, %v3071
  %v3077 = vadd.f32 %v3053, %v3067
  %v3078 = vadd.f32 %v3054, %v3072
  %v3079 = vadd.f32 %v3055, %v3073
  %3080 = vset.pattern.permute.xlu0 39
  %3081 = vperm.xlu0 %3080, %v25
  %v3082 = vpop.permute.xlu0 %3081
  %v3084 = vmul.f32 %v2257, %v3082
  %v3085 = vmul.f32 %v2258, %v3082
  %v3086 = vmul.f32 %v3082, 0.0
  %3090 = vrot.lane.b32.xlu0 %v3084, 48
  %v3091 = vpop.permute.xlu0 %3090
  %3092 = vrot.lane.b32.xlu0 %v3085, 48
  %v3093 = vpop.permute.xlu0 %3092
  %3094 = vrot.lane.b32.xlu0 %v3086, 48
  %v3095 = vpop.permute.xlu0 %3094
  %v3096 = vsel %vm2379, %v3091, %v3093
  %v3097 = vsel %vm2379, %v3093, %v3095
  %v3101 = vadd.f32 %v3077, %v3091
  %v3102 = vadd.f32 %v3078, %v3096
  %v3103 = vadd.f32 %v3079, %v3097
  %3104 = vset.pattern.permute.xlu0 46
  %3105 = vperm.xlu0 %3104, %v25
  %v3106 = vpop.permute.xlu0 %3105
  %v3108 = vmul.f32 %v2257, %v3106
  %v3109 = vmul.f32 %v2258, %v3106
  %v3110 = vmul.f32 %v3106, 0.0
  %3114 = vrot.lane.b32.xlu0 %v3108, 32
  %v3115 = vpop.permute.xlu0 %3114
  %3116 = vrot.lane.b32.xlu0 %v3109, 32
  %v3117 = vpop.permute.xlu0 %3116
  %3118 = vrot.lane.b32.xlu0 %v3110, 32
  %v3119 = vpop.permute.xlu0 %3118
  %v3120 = vsel %vm913, %v3115, %v3117
  %v3121 = vsel %vm913, %v3117, %v3119
  %v3125 = vadd.f32 %v3101, %v3115
  %v3126 = vadd.f32 %v3102, %v3120
  %v3127 = vadd.f32 %v3103, %v3121
  %v3128 = vperm.slane %v30, 4
  %v3129 = vperm.slane %v31, 4
  %3132 = vrot.lane.b32.xlu0 %v3128, 81
  %v3133 = vpop.permute.xlu0 %3132
  %3134 = vrot.lane.b32.xlu0 %v3129, 81
  %v3135 = vpop.permute.xlu0 %3134
  %vm3136 = vcmask 662528
  %v3137 = vsel %vm3136, %v3133, %v3135
  %v3141 = vmul.f32 %v3125, %v3133
  %v3142 = vmul.f32 %v3126, %v3137
  %v3143 = vmul.f32 %v3127, %v3135
  %3147 = vrot.lane.b32.xlu0 %v3141, 124
  %v3148 = vpop.permute.xlu0 %3147
  %3149 = vrot.lane.b32.xlu0 %v3142, 124
  %v3150 = vpop.permute.xlu0 %3149
  %3151 = vrot.lane.b32.xlu0 %v3143, 124
  %v3152 = vpop.permute.xlu0 %3151
  %v3153 = vsel %vm838, %v3148, %v3150
  %v3154 = vsel %vm838, %v3150, %v3152
  %v3158 = vadd.f32 %v2974, %v3153
  %v3159 = vadd.f32 %v2975, %v3154
  %v3160 = vadd.f32 %v2976, %v3152
  %3161 = vset.pattern.permute.xlu0 5
  %3162 = vperm.xlu0 %3161, %v25
  %v3163 = vpop.permute.xlu0 %3162
  %v3165 = vmul.f32 %v3163, 0.0
  %v3166 = vmul.f32 %v2257, %v3163
  %v3167 = vmul.f32 %v2258, %v3163
  %3168 = vset.pattern.permute.xlu0 12
  %3169 = vperm.xlu0 %3168, %v25
  %v3170 = vpop.permute.xlu0 %3169
  %v3172 = vmul.f32 %v3170, 0.0
  %v3173 = vmul.f32 %v2257, %v3170
  %v3174 = vmul.f32 %v2258, %v3170
  %3178 = vrot.lane.b32.xlu0 %v3172, 112
  %v3179 = vpop.permute.xlu0 %3178
  %3180 = vrot.lane.b32.xlu0 %v3173, 112
  %v3181 = vpop.permute.xlu0 %3180
  %3182 = vrot.lane.b32.xlu0 %v3174, 112
  %v3183 = vpop.permute.xlu0 %3182
  %v3184 = vsel %vm202, %v3179, %v3181
  %v3185 = vsel %vm202, %v3181, %v3183
  %v3189 = vadd.f32 %v3165, %v3184
  %v3190 = vadd.f32 %v3166, %v3185
  %v3191 = vadd.f32 %v3167, %v3183
  %3192 = vset.pattern.permute.xlu0 19
  %3193 = vperm.xlu0 %3192, %v25
  %v3194 = vpop.permute.xlu0 %3193
  %v3196 = vmul.f32 %v3194, 0.0
  %v3197 = vmul.f32 %v2257, %v3194
  %v3198 = vmul.f32 %v2258, %v3194
  %3202 = vrot.lane.b32.xlu0 %v3196, 96
  %v3203 = vpop.permute.xlu0 %3202
  %3204 = vrot.lane.b32.xlu0 %v3197, 96
  %v3205 = vpop.permute.xlu0 %3204
  %3206 = vrot.lane.b32.xlu0 %v3198, 96
  %v3207 = vpop.permute.xlu0 %3206
  %v3208 = vsel %vm227, %v3203, %v3205
  %v3209 = vsel %vm227, %v3205, %v3207
  %v3213 = vadd.f32 %v3189, %v3208
  %v3214 = vadd.f32 %v3190, %v3209
  %v3215 = vadd.f32 %v3191, %v3207
  %3216 = vset.pattern.permute.xlu0 26
  %3217 = vperm.xlu0 %3216, %v25
  %v3218 = vpop.permute.xlu0 %3217
  %v3220 = vmul.f32 %v2257, %v3218
  %v3221 = vmul.f32 %v2258, %v3218
  %v3222 = vmul.f32 %v3218, 0.0
  %3226 = vrot.lane.b32.xlu0 %v3220, 80
  %v3227 = vpop.permute.xlu0 %3226
  %3228 = vrot.lane.b32.xlu0 %v3221, 80
  %v3229 = vpop.permute.xlu0 %3228
  %3230 = vrot.lane.b32.xlu0 %v3222, 80
  %v3231 = vpop.permute.xlu0 %3230
  %v3232 = vsel %vm252, %v3227, %v3229
  %v3233 = vsel %vm252, %v3229, %v3231
  %v3237 = vadd.f32 %v3213, %v3227
  %v3238 = vadd.f32 %v3214, %v3232
  %v3239 = vadd.f32 %v3215, %v3233
  %3240 = vset.pattern.permute.xlu0 33
  %3241 = vperm.xlu0 %3240, %v25
  %v3242 = vpop.permute.xlu0 %3241
  %v3244 = vmul.f32 %v2257, %v3242
  %v3245 = vmul.f32 %v2258, %v3242
  %v3246 = vmul.f32 %v3242, 0.0
  %3250 = vrot.lane.b32.xlu0 %v3244, 64
  %v3251 = vpop.permute.xlu0 %3250
  %3252 = vrot.lane.b32.xlu0 %v3245, 64
  %v3253 = vpop.permute.xlu0 %3252
  %3254 = vrot.lane.b32.xlu0 %v3246, 64
  %v3255 = vpop.permute.xlu0 %3254
  %v3256 = vsel %vm277, %v3251, %v3253
  %v3257 = vsel %vm277, %v3253, %v3255
  %v3261 = vadd.f32 %v3237, %v3251
  %v3262 = vadd.f32 %v3238, %v3256
  %v3263 = vadd.f32 %v3239, %v3257
  %3264 = vset.pattern.permute.xlu0 40
  %3265 = vperm.xlu0 %3264, %v25
  %v3266 = vpop.permute.xlu0 %3265
  %v3268 = vmul.f32 %v2257, %v3266
  %v3269 = vmul.f32 %v2258, %v3266
  %v3270 = vmul.f32 %v3266, 0.0
  %3274 = vrot.lane.b32.xlu0 %v3268, 48
  %v3275 = vpop.permute.xlu0 %3274
  %3276 = vrot.lane.b32.xlu0 %v3269, 48
  %v3277 = vpop.permute.xlu0 %3276
  %3278 = vrot.lane.b32.xlu0 %v3270, 48
  %v3279 = vpop.permute.xlu0 %3278
  %v3280 = vsel %vm2379, %v3275, %v3277
  %v3281 = vsel %vm2379, %v3277, %v3279
  %v3285 = vadd.f32 %v3261, %v3275
  %v3286 = vadd.f32 %v3262, %v3280
  %v3287 = vadd.f32 %v3263, %v3281
  %3288 = vset.pattern.permute.xlu0 47
  %3289 = vperm.xlu0 %3288, %v25
  %v3290 = vpop.permute.xlu0 %3289
  %v3292 = vmul.f32 %v2257, %v3290
  %v3293 = vmul.f32 %v2258, %v3290
  %v3294 = vmul.f32 %v3290, 0.0
  %3298 = vrot.lane.b32.xlu0 %v3292, 32
  %v3299 = vpop.permute.xlu0 %3298
  %3300 = vrot.lane.b32.xlu0 %v3293, 32
  %v3301 = vpop.permute.xlu0 %3300
  %3302 = vrot.lane.b32.xlu0 %v3294, 32
  %v3303 = vpop.permute.xlu0 %3302
  %v3304 = vsel %vm913, %v3299, %v3301
  %v3305 = vsel %vm913, %v3301, %v3303
  %v3309 = vadd.f32 %v3285, %v3299
  %v3310 = vadd.f32 %v3286, %v3304
  %v3311 = vadd.f32 %v3287, %v3305
  %v3312 = vperm.slane %v30, 5
  %v3313 = vperm.slane %v31, 5
  %3316 = vrot.lane.b32.xlu0 %v3312, 82
  %v3317 = vpop.permute.xlu0 %3316
  %3318 = vrot.lane.b32.xlu0 %v3313, 82
  %v3319 = vpop.permute.xlu0 %3318
  %vm3320 = vcmask 670720
  %v3321 = vsel %vm3320, %v3317, %v3319
  %v3325 = vmul.f32 %v3309, %v3317
  %v3326 = vmul.f32 %v3310, %v3321
  %v3327 = vmul.f32 %v3311, %v3319
  %3331 = vrot.lane.b32.xlu0 %v3325, 123
  %v3332 = vpop.permute.xlu0 %3331
  %3333 = vrot.lane.b32.xlu0 %v3326, 123
  %v3334 = vpop.permute.xlu0 %3333
  %3335 = vrot.lane.b32.xlu0 %v3327, 123
  %v3336 = vpop.permute.xlu0 %3335
  %vm3337 = vcmask 1006592
  %v3338 = vsel %vm3337, %v3332, %v3334
  %v3339 = vsel %vm3337, %v3334, %v3336
  %v3343 = vadd.f32 %v3158, %v3338
  %v3344 = vadd.f32 %v3159, %v3339
  %v3345 = vadd.f32 %v3160, %v3336
  %3346 = vset.pattern.permute.xlu0 6
  %3347 = vperm.xlu0 %3346, %v25
  %v3348 = vpop.permute.xlu0 %3347
  %v3350 = vmul.f32 %v3348, 0.0
  %v3351 = vmul.f32 %v2257, %v3348
  %v3352 = vmul.f32 %v2258, %v3348
  %3353 = vset.pattern.permute.xlu0 13
  %3354 = vperm.xlu0 %3353, %v25
  %v3355 = vpop.permute.xlu0 %3354
  %v3357 = vmul.f32 %v3355, 0.0
  %v3358 = vmul.f32 %v2257, %v3355
  %v3359 = vmul.f32 %v2258, %v3355
  %3363 = vrot.lane.b32.xlu0 %v3357, 112
  %v3364 = vpop.permute.xlu0 %3363
  %3365 = vrot.lane.b32.xlu0 %v3358, 112
  %v3366 = vpop.permute.xlu0 %3365
  %3367 = vrot.lane.b32.xlu0 %v3359, 112
  %v3368 = vpop.permute.xlu0 %3367
  %v3369 = vsel %vm202, %v3364, %v3366
  %v3370 = vsel %vm202, %v3366, %v3368
  %v3374 = vadd.f32 %v3350, %v3369
  %v3375 = vadd.f32 %v3351, %v3370
  %v3376 = vadd.f32 %v3352, %v3368
  %3377 = vset.pattern.permute.xlu0 20
  %3378 = vperm.xlu0 %3377, %v25
  %v3379 = vpop.permute.xlu0 %3378
  %v3381 = vmul.f32 %v3379, 0.0
  %v3382 = vmul.f32 %v2257, %v3379
  %v3383 = vmul.f32 %v2258, %v3379
  %3387 = vrot.lane.b32.xlu0 %v3381, 96
  %v3388 = vpop.permute.xlu0 %3387
  %3389 = vrot.lane.b32.xlu0 %v3382, 96
  %v3390 = vpop.permute.xlu0 %3389
  %3391 = vrot.lane.b32.xlu0 %v3383, 96
  %v3392 = vpop.permute.xlu0 %3391
  %v3393 = vsel %vm227, %v3388, %v3390
  %v3394 = vsel %vm227, %v3390, %v3392
  %v3398 = vadd.f32 %v3374, %v3393
  %v3399 = vadd.f32 %v3375, %v3394
  %v3400 = vadd.f32 %v3376, %v3392
  %3401 = vset.pattern.permute.xlu0 27
  %3402 = vperm.xlu0 %3401, %v25
  %v3403 = vpop.permute.xlu0 %3402
  %v3405 = vmul.f32 %v2257, %v3403
  %v3406 = vmul.f32 %v2258, %v3403
  %v3407 = vmul.f32 %v3403, 0.0
  %3411 = vrot.lane.b32.xlu0 %v3405, 80
  %v3412 = vpop.permute.xlu0 %3411
  %3413 = vrot.lane.b32.xlu0 %v3406, 80
  %v3414 = vpop.permute.xlu0 %3413
  %3415 = vrot.lane.b32.xlu0 %v3407, 80
  %v3416 = vpop.permute.xlu0 %3415
  %v3417 = vsel %vm252, %v3412, %v3414
  %v3418 = vsel %vm252, %v3414, %v3416
  %v3422 = vadd.f32 %v3398, %v3412
  %v3423 = vadd.f32 %v3399, %v3417
  %v3424 = vadd.f32 %v3400, %v3418
  %3425 = vset.pattern.permute.xlu0 34
  %3426 = vperm.xlu0 %3425, %v25
  %v3427 = vpop.permute.xlu0 %3426
  %v3429 = vmul.f32 %v2257, %v3427
  %v3430 = vmul.f32 %v2258, %v3427
  %v3431 = vmul.f32 %v3427, 0.0
  %3435 = vrot.lane.b32.xlu0 %v3429, 64
  %v3436 = vpop.permute.xlu0 %3435
  %3437 = vrot.lane.b32.xlu0 %v3430, 64
  %v3438 = vpop.permute.xlu0 %3437
  %3439 = vrot.lane.b32.xlu0 %v3431, 64
  %v3440 = vpop.permute.xlu0 %3439
  %v3441 = vsel %vm277, %v3436, %v3438
  %v3442 = vsel %vm277, %v3438, %v3440
  %v3446 = vadd.f32 %v3422, %v3436
  %v3447 = vadd.f32 %v3423, %v3441
  %v3448 = vadd.f32 %v3424, %v3442
  %3449 = vset.pattern.permute.xlu0 41
  %3450 = vperm.xlu0 %3449, %v25
  %v3451 = vpop.permute.xlu0 %3450
  %v3453 = vmul.f32 %v2257, %v3451
  %v3454 = vmul.f32 %v2258, %v3451
  %v3455 = vmul.f32 %v3451, 0.0
  %3459 = vrot.lane.b32.xlu0 %v3453, 48
  %v3460 = vpop.permute.xlu0 %3459
  %3461 = vrot.lane.b32.xlu0 %v3454, 48
  %v3462 = vpop.permute.xlu0 %3461
  %3463 = vrot.lane.b32.xlu0 %v3455, 48
  %v3464 = vpop.permute.xlu0 %3463
  %v3465 = vsel %vm2379, %v3460, %v3462
  %v3466 = vsel %vm2379, %v3462, %v3464
  %v3470 = vadd.f32 %v3446, %v3460
  %v3471 = vadd.f32 %v3447, %v3465
  %v3472 = vadd.f32 %v3448, %v3466
  %3473 = vset.pattern.permute.xlu0 48
  %3474 = vperm.xlu0 %3473, %v25
  %v3475 = vpop.permute.xlu0 %3474
  %v3477 = vmul.f32 %v2257, %v3475
  %v3478 = vmul.f32 %v2258, %v3475
  %v3479 = vmul.f32 %v3475, 0.0
  %3483 = vrot.lane.b32.xlu0 %v3477, 32
  %v3484 = vpop.permute.xlu0 %3483
  %3485 = vrot.lane.b32.xlu0 %v3478, 32
  %v3486 = vpop.permute.xlu0 %3485
  %3487 = vrot.lane.b32.xlu0 %v3479, 32
  %v3488 = vpop.permute.xlu0 %3487
  %v3489 = vsel %vm913, %v3484, %v3486
  %v3490 = vsel %vm913, %v3486, %v3488
  %v3494 = vadd.f32 %v3470, %v3484
  %v3495 = vadd.f32 %v3471, %v3489
  %v3496 = vadd.f32 %v3472, %v3490
  %v3497 = vperm.slane %v30, 6
  %v3498 = vperm.slane %v31, 6
  %3501 = vrot.lane.b32.xlu0 %v3497, 83
  %v3502 = vpop.permute.xlu0 %3501
  %3503 = vrot.lane.b32.xlu0 %v3498, 83
  %v3504 = vpop.permute.xlu0 %3503
  %vm3505 = vcmask 678912
  %v3506 = vsel %vm3505, %v3502, %v3504
  %v3510 = vmul.f32 %v3494, %v3502
  %v3511 = vmul.f32 %v3495, %v3506
  %v3512 = vmul.f32 %v3496, %v3504
  %3516 = vrot.lane.b32.xlu0 %v3510, 122
  %v3517 = vpop.permute.xlu0 %3516
  %3518 = vrot.lane.b32.xlu0 %v3511, 122
  %v3519 = vpop.permute.xlu0 %3518
  %3520 = vrot.lane.b32.xlu0 %v3512, 122
  %v3521 = vpop.permute.xlu0 %3520
  %v3522 = vsel %vm1380, %v3517, %v3519
  %v3523 = vsel %vm1380, %v3519, %v3521
  %v3527 = vadd.f32 %v3343, %v3522
  %v3528 = vadd.f32 %v3344, %v3523
  %v3529 = vadd.f32 %v3345, %v3521
  %3531 = vset.pattern.permute.xlu0 8
  %3532 = vperm.xlu0 %3531, %v22
  %v3533 = vpop.permute.xlu0 %3532
  %3538 = vrot.lane.b32.xlu0 %v3527, 51
  %v3539 = vpop.permute.xlu0 %3538
  %3540 = vrot.lane.b32.xlu0 %v3528, 51
  %v3541 = vpop.permute.xlu0 %3540
  %3542 = vrot.lane.b32.xlu0 %v3529, 51
  %v3543 = vpop.permute.xlu0 %3542
  %vm3544 = vcmask 416768
  %v3545 = vsel %vm3544, %v3539, %v3541
  %v3546 = vsel %vm3544, %v3541, %v3543
  %vm3549 = vcmask 64512
  %v3550 = vsel %vm3549, %v22, 0
  %3552 = vmatpush.msra.mxu0 0.0
  %3553 = vmatpush.msra.mxu0 0.0
  %3554 = vmatpush.msra.mxu0 0.0
  %3555 = vmatpush.msra.mxu0 0.0
  %3556 = vmatpush.msra.mxu0 0.0
  %3557 = vmatpush.msra.mxu0 0.0
  %3558 = vmatpush.msra.mxu0 0.0
  %3559 = vmatpush.msra.mxu0 0.0
  %3560 = vmatpush.msra.mxu0 0.0
  %3561 = vmatpush.msra.mxu0 0.0
  %3562 = vmatpush.msra.mxu0 0.0
  %3563 = vmatpush.msra.mxu0 0.0
  %3564 = vmatpush.msra.mxu0 0.0
  %3565 = vmatpush.msra.mxu0 0.0
  %3566 = vmatpush.msra.mxu0 0.0
  %3567 = vmatpush.msra.mxu0 %v3545
  %3568 = vmatmul.f32.gmra.mxu0 %v3550
  %v3569 = vpop.f32.mrf.mxu0
  %v3570 = vadd.f32 %v3533, %v3569
  %3571 = vdwg.mxu0
  %3572 = vmatpush.msra.mxu0 0.0
  %3573 = vmatpush.msra.mxu0 0.0
  %3574 = vmatpush.msra.mxu0 0.0
  %3575 = vmatpush.msra.mxu0 0.0
  %3576 = vmatpush.msra.mxu0 0.0
  %3577 = vmatpush.msra.mxu0 0.0
  %3578 = vmatpush.msra.mxu0 0.0
  %3579 = vmatpush.msra.mxu0 0.0
  %3580 = vmatpush.msra.mxu0 0.0
  %3581 = vmatpush.msra.mxu0 0.0
  %3582 = vmatpush.msra.mxu0 0.0
  %3583 = vmatpush.msra.mxu0 0.0
  %3584 = vmatpush.msra.mxu0 0.0
  %3585 = vmatpush.msra.mxu0 0.0
  %3586 = vmatpush.msra.mxu0 0.0
  %3587 = vmatpush.msra.mxu0 %v3546
  %3588 = vmatmul.f32.gmra.mxu0 %v3550
  %v3589 = vpop.f32.mrf.mxu0
  %v3590 = vadd.f32 %v3533, %v3589
  %3591 = vdwg.mxu0
  %v3592 = vxor.u32 %v3570, 2147483648
  %v3593 = vxor.u32 %v3590, 2147483648
  %v3594 = vmul.f32 %v3592, 1.442695
  %v3595 = vpow.pop %v3594
  %v3596 = vmul.f32 %v3593, 1.442695
  %v3597 = vpow.pop %v3596
  %v3598 = vadd.f32 %v3595, 1.0
  %v3599 = vadd.f32 %v3597, 1.0
  %v3600 = vrcp.pop %v3598
  %v3601 = vmul.f32 %v3598, %v3600
  %v3602 = vsub.f32 1.0, %v3601
  %v3603 = vmul.f32 %v3600, %v3602
  %v3604 = vadd.f32 %v3600, %v3603
  %vm3605 = vweird.f32 %v3598
  %vm3606 = vweird.f32 %v3600
  %vm3607 = vmor %vm3605, %vm3606
  %v3608 = vsel %vm3607, %v3600, %v3604
  %v3609 = vand.u32 2147483647, %v3598
  %vm3610 = vcmp.eq.f32.partialorder %v3609, 8.507059e+37
  %v3611 = vand.u32 %v3598, 2147483648
  %v3612 = vor.u32 1.1754944e-38, %v3611
  %v3613 = vsel %vm3610, %v3612, %v3608
  %v3614 = vmul.f32 1.0, %v3613
  %v3615 = vrcp.pop %v3599
  %v3616 = vmul.f32 %v3599, %v3615
  %v3617 = vsub.f32 1.0, %v3616
  %v3618 = vmul.f32 %v3615, %v3617
  %v3619 = vadd.f32 %v3615, %v3618
  %vm3620 = vweird.f32 %v3599
  %vm3621 = vweird.f32 %v3615
  %vm3622 = vmor %vm3620, %vm3621
  %v3623 = vsel %vm3622, %v3615, %v3619
  %v3624 = vand.u32 2147483647, %v3599
  %vm3625 = vcmp.eq.f32.partialorder %v3624, 8.507059e+37
  %v3626 = vand.u32 %v3599, 2147483648
  %v3627 = vor.u32 1.1754944e-38, %v3626
  %v3628 = vsel %vm3625, %v3627, %v3623
  %v3629 = vmul.f32 1.0, %v3628
  %v3630 = vmul.f32 %v2145, %v3614
  %v3631 = vmul.f32 %v2165, %v3629
  %3633 = vset.pattern.permute.xlu0 8
  %3634 = vperm.xlu0 %3633, %v18
  %v3635 = vpop.permute.xlu0 %3634
  %v3637 = vsel %vm3549, %v18, 0
  %3639 = vmatpush.msra.mxu0 0.0
  %3640 = vmatpush.msra.mxu0 0.0
  %3641 = vmatpush.msra.mxu0 0.0
  %3642 = vmatpush.msra.mxu0 0.0
  %3643 = vmatpush.msra.mxu0 0.0
  %3644 = vmatpush.msra.mxu0 0.0
  %3645 = vmatpush.msra.mxu0 0.0
  %3646 = vmatpush.msra.mxu0 0.0
  %3647 = vmatpush.msra.mxu0 0.0
  %3648 = vmatpush.msra.mxu0 0.0
  %3649 = vmatpush.msra.mxu0 0.0
  %3650 = vmatpush.msra.mxu0 0.0
  %3651 = vmatpush.msra.mxu0 0.0
  %3652 = vmatpush.msra.mxu0 0.0
  %3653 = vmatpush.msra.mxu0 0.0
  %3654 = vmatpush.msra.mxu0 %v3630
  %3655 = vmatmul.f32.gmra.mxu0 %v3637
  %v3656 = vpop.f32.mrf.mxu0
  %v3657 = vadd.f32 %v3635, %v3656
  %3658 = vdwg.mxu0
  %3659 = vmatpush.msra.mxu0 0.0
  %3660 = vmatpush.msra.mxu0 0.0
  %3661 = vmatpush.msra.mxu0 0.0
  %3662 = vmatpush.msra.mxu0 0.0
  %3663 = vmatpush.msra.mxu0 0.0
  %3664 = vmatpush.msra.mxu0 0.0
  %3665 = vmatpush.msra.mxu0 0.0
  %3666 = vmatpush.msra.mxu0 0.0
  %3667 = vmatpush.msra.mxu0 0.0
  %3668 = vmatpush.msra.mxu0 0.0
  %3669 = vmatpush.msra.mxu0 0.0
  %3670 = vmatpush.msra.mxu0 0.0
  %3671 = vmatpush.msra.mxu0 0.0
  %3672 = vmatpush.msra.mxu0 0.0
  %3673 = vmatpush.msra.mxu0 0.0
  %3674 = vmatpush.msra.mxu0 %v3631
  %3675 = vmatmul.f32.gmra.mxu0 %v3637
  %v3676 = vpop.f32.mrf.mxu0
  %v3677 = vadd.f32 %v3635, %v3676
  %3678 = vdwg.mxu0
  %v3679 = vmul.f32 %v171, %v3657
  %v3680 = vmul.f32 %v172, %v3677
  %3682 = vset.pattern.permute.xlu0 8
  %3683 = vperm.xlu0 %3682, %v19
  %v3684 = vpop.permute.xlu0 %3683
  %v3686 = vsel %vm3549, %v19, 0
  %3688 = vmatpush.msra.mxu0 0.0
  %3689 = vmatpush.msra.mxu0 0.0
  %3690 = vmatpush.msra.mxu0 0.0
  %3691 = vmatpush.msra.mxu0 0.0
  %3692 = vmatpush.msra.mxu0 0.0
  %3693 = vmatpush.msra.mxu0 0.0
  %3694 = vmatpush.msra.mxu0 0.0
  %3695 = vmatpush.msra.mxu0 0.0
  %3696 = vmatpush.msra.mxu0 0.0
  %3697 = vmatpush.msra.mxu0 0.0
  %3698 = vmatpush.msra.mxu0 0.0
  %3699 = vmatpush.msra.mxu0 0.0
  %3700 = vmatpush.msra.mxu0 0.0
  %3701 = vmatpush.msra.mxu0 0.0
  %3702 = vmatpush.msra.mxu0 0.0
  %3703 = vmatpush.msra.mxu0 %v3679
  %3704 = vmatmul.f32.gmra.mxu0 %v3686
  %v3705 = vpop.f32.mrf.mxu0
  %v3706 = vadd.f32 %v3684, %v3705
  %3707 = vdwg.mxu0
  %3708 = vmatpush.msra.mxu0 0.0
  %3709 = vmatpush.msra.mxu0 0.0
  %3710 = vmatpush.msra.mxu0 0.0
  %3711 = vmatpush.msra.mxu0 0.0
  %3712 = vmatpush.msra.mxu0 0.0
  %3713 = vmatpush.msra.mxu0 0.0
  %3714 = vmatpush.msra.mxu0 0.0
  %3715 = vmatpush.msra.mxu0 0.0
  %3716 = vmatpush.msra.mxu0 0.0
  %3717 = vmatpush.msra.mxu0 0.0
  %3718 = vmatpush.msra.mxu0 0.0
  %3719 = vmatpush.msra.mxu0 0.0
  %3720 = vmatpush.msra.mxu0 0.0
  %3721 = vmatpush.msra.mxu0 0.0
  %3722 = vmatpush.msra.mxu0 0.0
  %3723 = vmatpush.msra.mxu0 %v3680
  %3724 = vmatmul.f32.gmra.mxu0 %v3686
  %v3725 = vpop.f32.mrf.mxu0
  %v3726 = vadd.f32 %v3684, %v3725
  %3727 = vdwg.mxu0
  %v3728 = vxor.u32 %v3706, 2147483648
  %v3729 = vxor.u32 %v3726, 2147483648
  %v3730 = vmul.f32 %v3728, 1.442695
  %v3731 = vpow.pop %v3730
  %v3732 = vmul.f32 %v3729, 1.442695
  %v3733 = vpow.pop %v3732
  %v3734 = vadd.f32 %v3731, 1.0
  %v3735 = vadd.f32 %v3733, 1.0
  %v3736 = vrcp.pop %v3734
  %v3737 = vmul.f32 %v3734, %v3736
  %v3738 = vsub.f32 1.0, %v3737
  %v3739 = vmul.f32 %v3736, %v3738
  %v3740 = vadd.f32 %v3736, %v3739
  %vm3741 = vweird.f32 %v3734
  %vm3742 = vweird.f32 %v3736
  %vm3743 = vmor %vm3741, %vm3742
  %v3744 = vsel %vm3743, %v3736, %v3740
  %v3745 = vand.u32 2147483647, %v3734
  %vm3746 = vcmp.eq.f32.partialorder %v3745, 8.507059e+37
  %v3747 = vand.u32 %v3734, 2147483648
  %v3748 = vor.u32 1.1754944e-38, %v3747
  %v3749 = vsel %vm3746, %v3748, %v3744
  %v3750 = vmul.f32 1.0, %v3749
  %v3751 = vrcp.pop %v3735
  %v3752 = vmul.f32 %v3735, %v3751
  %v3753 = vsub.f32 1.0, %v3752
  %v3754 = vmul.f32 %v3751, %v3753
  %v3755 = vadd.f32 %v3751, %v3754
  %vm3756 = vweird.f32 %v3735
  %vm3757 = vweird.f32 %v3751
  %vm3758 = vmor %vm3756, %vm3757
  %v3759 = vsel %vm3758, %v3751, %v3755
  %v3760 = vand.u32 2147483647, %v3735
  %vm3761 = vcmp.eq.f32.partialorder %v3760, 8.507059e+37
  %v3762 = vand.u32 %v3735, 2147483648
  %v3763 = vor.u32 1.1754944e-38, %v3762
  %v3764 = vsel %vm3761, %v3763, %v3759
  %v3765 = vmul.f32 1.0, %v3764
  %v3766 = vmul.f32 %v3706, %v3750
  %v3767 = vmul.f32 %v3726, %v3765
  %3770 = vrot.lane.b32.xlu0 %v20, 120
  %v3771 = vpop.permute.xlu0 %3770
  %3772 = vrot.lane.b32.xlu0 %v21, 120
  %v3773 = vpop.permute.xlu0 %3772
  %v3774 = vsel %vm3549, %v3771, 0
  %v3776 = vsel %vm3549, %v3773, 0
  %3778 = vmatpush.msra.mxu0 0.0
  %3779 = vmatpush.msra.mxu0 0.0
  %3780 = vmatpush.msra.mxu0 0.0
  %3781 = vmatpush.msra.mxu0 0.0
  %3782 = vmatpush.msra.mxu0 0.0
  %3783 = vmatpush.msra.mxu0 0.0
  %3784 = vmatpush.msra.mxu0 0.0
  %3785 = vmatpush.msra.mxu0 0.0
  %3786 = vmatpush.msra.mxu0 0.0
  %3787 = vmatpush.msra.mxu0 0.0
  %3788 = vmatpush.msra.mxu0 0.0
  %3789 = vmatpush.msra.mxu0 0.0
  %3790 = vmatpush.msra.mxu0 0.0
  %3791 = vmatpush.msra.mxu0 0.0
  %3792 = vmatpush.msra.mxu0 0.0
  %3793 = vmatpush.msra.mxu0 %v3679
  %3794 = vmatmul.f32.gmra.mxu0 %v3774
  %v3795 = vpop.f32.mrf.mxu0
  %v3796 = vadd.f32 0.0, %v3795
  %3797 = vmatmul.f32.gmra.mxu0 %v3776
  %v3798 = vpop.f32.mrf.mxu0
  %v3799 = vadd.f32 0.0, %v3798
  %3800 = vdwg.mxu0
  %3801 = vmatpush.msra.mxu0 0.0
  %3802 = vmatpush.msra.mxu0 0.0
  %3803 = vmatpush.msra.mxu0 0.0
  %3804 = vmatpush.msra.mxu0 0.0
  %3805 = vmatpush.msra.mxu0 0.0
  %3806 = vmatpush.msra.mxu0 0.0
  %3807 = vmatpush.msra.mxu0 0.0
  %3808 = vmatpush.msra.mxu0 0.0
  %3809 = vmatpush.msra.mxu0 0.0
  %3810 = vmatpush.msra.mxu0 0.0
  %3811 = vmatpush.msra.mxu0 0.0
  %3812 = vmatpush.msra.mxu0 0.0
  %3813 = vmatpush.msra.mxu0 0.0
  %3814 = vmatpush.msra.mxu0 0.0
  %3815 = vmatpush.msra.mxu0 0.0
  %3816 = vmatpush.msra.mxu0 %v3680
  %3817 = vmatmul.f32.gmra.mxu0 %v3774
  %v3818 = vpop.f32.mrf.mxu0
  %v3819 = vadd.f32 0.0, %v3818
  %3820 = vmatmul.f32.gmra.mxu0 %v3776
  %v3821 = vpop.f32.mrf.mxu0
  %v3822 = vadd.f32 0.0, %v3821
  %3823 = vdwg.mxu0
  %v3824 = vsel %vm3549, %v20, 0
  %v3826 = vsel %vm3549, %v21, 0
  %3828 = vmatpush.msra.mxu0 0.0
  %3829 = vmatpush.msra.mxu0 0.0
  %3830 = vmatpush.msra.mxu0 0.0
  %3831 = vmatpush.msra.mxu0 0.0
  %3832 = vmatpush.msra.mxu0 0.0
  %3833 = vmatpush.msra.mxu0 0.0
  %3834 = vmatpush.msra.mxu0 0.0
  %3835 = vmatpush.msra.mxu0 0.0
  %3836 = vmatpush.msra.mxu0 0.0
  %3837 = vmatpush.msra.mxu0 0.0
  %3838 = vmatpush.msra.mxu0 0.0
  %3839 = vmatpush.msra.mxu0 0.0
  %3840 = vmatpush.msra.mxu0 0.0
  %3841 = vmatpush.msra.mxu0 0.0
  %3842 = vmatpush.msra.mxu0 0.0
  %3843 = vmatpush.msra.mxu0 %v169
  %3844 = vmatmul.f32.gmra.mxu0 %v3824
  %v3845 = vpop.f32.mrf.mxu0
  %v3846 = vadd.f32 %v3796, %v3845
  %3847 = vmatmul.f32.gmra.mxu0 %v3826
  %v3848 = vpop.f32.mrf.mxu0
  %v3849 = vadd.f32 %v3799, %v3848
  %3850 = vdwg.mxu0
  %3851 = vmatpush.msra.mxu0 0.0
  %3852 = vmatpush.msra.mxu0 0.0
  %3853 = vmatpush.msra.mxu0 0.0
  %3854 = vmatpush.msra.mxu0 0.0
  %3855 = vmatpush.msra.mxu0 0.0
  %3856 = vmatpush.msra.mxu0 0.0
  %3857 = vmatpush.msra.mxu0 0.0
  %3858 = vmatpush.msra.mxu0 0.0
  %3859 = vmatpush.msra.mxu0 0.0
  %3860 = vmatpush.msra.mxu0 0.0
  %3861 = vmatpush.msra.mxu0 0.0
  %3862 = vmatpush.msra.mxu0 0.0
  %3863 = vmatpush.msra.mxu0 0.0
  %3864 = vmatpush.msra.mxu0 0.0
  %3865 = vmatpush.msra.mxu0 0.0
  %3866 = vmatpush.msra.mxu0 %v170
  %3867 = vmatmul.f32.gmra.mxu0 %v3824
  %v3868 = vpop.f32.mrf.mxu0
  %v3869 = vadd.f32 %v3819, %v3868
  %3870 = vmatmul.f32.gmra.mxu0 %v3826
  %v3871 = vpop.f32.mrf.mxu0
  %v3872 = vadd.f32 %v3822, %v3871
  %3873 = vdwg.mxu0
  %3874 = vrot.lane.b32.xlu0 %v20, 112
  %v3875 = vpop.permute.xlu0 %3874
  %3876 = vrot.lane.b32.xlu0 %v21, 112
  %v3877 = vpop.permute.xlu0 %3876
  %v3878 = vsel %vm3549, %v3875, 0
  %v3880 = vsel %vm3549, %v3877, 0
  %3882 = vmatpush.msra.mxu0 0.0
  %3883 = vmatpush.msra.mxu0 0.0
  %3884 = vmatpush.msra.mxu0 0.0
  %3885 = vmatpush.msra.mxu0 0.0
  %3886 = vmatpush.msra.mxu0 0.0
  %3887 = vmatpush.msra.mxu0 0.0
  %3888 = vmatpush.msra.mxu0 0.0
  %3889 = vmatpush.msra.mxu0 0.0
  %3890 = vmatpush.msra.mxu0 0.0
  %3891 = vmatpush.msra.mxu0 0.0
  %3892 = vmatpush.msra.mxu0 0.0
  %3893 = vmatpush.msra.mxu0 0.0
  %3894 = vmatpush.msra.mxu0 0.0
  %3895 = vmatpush.msra.mxu0 0.0
  %3896 = vmatpush.msra.mxu0 0.0
  %3897 = vmatpush.msra.mxu0 %v3766
  %3898 = vmatmul.f32.gmra.mxu0 %v3878
  %v3899 = vpop.f32.mrf.mxu0
  %v3900 = vadd.f32 0.0, %v3899
  %3901 = vmatmul.f32.gmra.mxu0 %v3880
  %v3902 = vpop.f32.mrf.mxu0
  %v3903 = vadd.f32 0.0, %v3902
  %3904 = vdwg.mxu0
  %3905 = vmatpush.msra.mxu0 0.0
  %3906 = vmatpush.msra.mxu0 0.0
  %3907 = vmatpush.msra.mxu0 0.0
  %3908 = vmatpush.msra.mxu0 0.0
  %3909 = vmatpush.msra.mxu0 0.0
  %3910 = vmatpush.msra.mxu0 0.0
  %3911 = vmatpush.msra.mxu0 0.0
  %3912 = vmatpush.msra.mxu0 0.0
  %3913 = vmatpush.msra.mxu0 0.0
  %3914 = vmatpush.msra.mxu0 0.0
  %3915 = vmatpush.msra.mxu0 0.0
  %3916 = vmatpush.msra.mxu0 0.0
  %3917 = vmatpush.msra.mxu0 0.0
  %3918 = vmatpush.msra.mxu0 0.0
  %3919 = vmatpush.msra.mxu0 0.0
  %3920 = vmatpush.msra.mxu0 %v3767
  %3921 = vmatmul.f32.gmra.mxu0 %v3878
  %v3922 = vpop.f32.mrf.mxu0
  %v3923 = vadd.f32 0.0, %v3922
  %3924 = vmatmul.f32.gmra.mxu0 %v3880
  %v3925 = vpop.f32.mrf.mxu0
  %v3926 = vadd.f32 0.0, %v3925
  %3927 = vdwg.mxu0
  %v3928 = vadd.f32 %v3846, %v3900
  %v3929 = vadd.f32 %v3869, %v3923
  %v3930 = vadd.f32 %v3849, %v3903
  %v3931 = vadd.f32 %v3872, %v3926
  %3932 = vset.pattern.permute.xlu0 24
  %3933 = vperm.xlu0 %3932, %v20
  %v3934 = vpop.permute.xlu0 %3933
  %3936 = vset.pattern.permute.xlu0 24
  %3937 = vperm.xlu0 %3936, %v21
  %v3938 = vpop.permute.xlu0 %3937
  %v3940 = vadd.f32 %v3928, %v3934
  %v3941 = vadd.f32 %v3929, %v3934
  %v3942 = vadd.f32 %v3930, %v3938
  %v3943 = vadd.f32 %v3931, %v3938
  %v3944 = vxor.u32 %v3940, 2147483648
  %v3945 = vxor.u32 %v3941, 2147483648
  %v3946 = vxor.u32 %v3942, 2147483648
  %v3947 = vxor.u32 %v3943, 2147483648
  %v3948 = vmul.f32 %v3944, 1.442695
  %v3949 = vpow.pop %v3948
  %v3950 = vmul.f32 %v3945, 1.442695
  %v3951 = vpow.pop %v3950
  %v3952 = vmul.f32 %v3946, 1.442695
  %v3953 = vpow.pop %v3952
  %v3954 = vmul.f32 %v3947, 1.442695
  %v3955 = vpow.pop %v3954
  %v3956 = vadd.f32 %v3949, 1.0
  %v3957 = vadd.f32 %v3951, 1.0
  %v3958 = vadd.f32 %v3953, 1.0
  %v3959 = vadd.f32 %v3955, 1.0
  %v3960 = vrcp.pop %v3956
  %v3961 = vmul.f32 %v3956, %v3960
  %v3962 = vsub.f32 1.0, %v3961
  %v3963 = vmul.f32 %v3960, %v3962
  %v3964 = vadd.f32 %v3960, %v3963
  %vm3965 = vweird.f32 %v3956
  %vm3966 = vweird.f32 %v3960
  %vm3967 = vmor %vm3965, %vm3966
  %v3968 = vsel %vm3967, %v3960, %v3964
  %v3969 = vand.u32 2147483647, %v3956
  %vm3970 = vcmp.eq.f32.partialorder %v3969, 8.507059e+37
  %v3971 = vand.u32 %v3956, 2147483648
  %v3972 = vor.u32 1.1754944e-38, %v3971
  %v3973 = vsel %vm3970, %v3972, %v3968
  %v3974 = vmul.f32 1.0, %v3973
  %v3975 = vrcp.pop %v3957
  %v3976 = vmul.f32 %v3957, %v3975
  %v3977 = vsub.f32 1.0, %v3976
  %v3978 = vmul.f32 %v3975, %v3977
  %v3979 = vadd.f32 %v3975, %v3978
  %vm3980 = vweird.f32 %v3957
  %vm3981 = vweird.f32 %v3975
  %vm3982 = vmor %vm3980, %vm3981
  %v3983 = vsel %vm3982, %v3975, %v3979
  %v3984 = vand.u32 2147483647, %v3957
  %vm3985 = vcmp.eq.f32.partialorder %v3984, 8.507059e+37
  %v3986 = vand.u32 %v3957, 2147483648
  %v3987 = vor.u32 1.1754944e-38, %v3986
  %v3988 = vsel %vm3985, %v3987, %v3983
  %v3989 = vmul.f32 1.0, %v3988
  %v3990 = vrcp.pop %v3958
  %v3991 = vmul.f32 %v3958, %v3990
  %v3992 = vsub.f32 1.0, %v3991
  %v3993 = vmul.f32 %v3990, %v3992
  %v3994 = vadd.f32 %v3990, %v3993
  %vm3995 = vweird.f32 %v3958
  %vm3996 = vweird.f32 %v3990
  %vm3997 = vmor %vm3995, %vm3996
  %v3998 = vsel %vm3997, %v3990, %v3994
  %v3999 = vand.u32 2147483647, %v3958
  %vm4000 = vcmp.eq.f32.partialorder %v3999, 8.507059e+37
  %v4001 = vand.u32 %v3958, 2147483648
  %v4002 = vor.u32 1.1754944e-38, %v4001
  %v4003 = vsel %vm4000, %v4002, %v3998
  %v4004 = vmul.f32 1.0, %v4003
  %v4005 = vrcp.pop %v3959
  %v4006 = vmul.f32 %v3959, %v4005
  %v4007 = vsub.f32 1.0, %v4006
  %v4008 = vmul.f32 %v4005, %v4007
  %v4009 = vadd.f32 %v4005, %v4008
  %vm4010 = vweird.f32 %v3959
  %vm4011 = vweird.f32 %v4005
  %vm4012 = vmor %vm4010, %vm4011
  %v4013 = vsel %vm4012, %v4005, %v4009
  %v4014 = vand.u32 2147483647, %v3959
  %vm4015 = vcmp.eq.f32.partialorder %v4014, 8.507059e+37
  %v4016 = vand.u32 %v3959, 2147483648
  %v4017 = vor.u32 1.1754944e-38, %v4016
  %v4018 = vsel %vm4015, %v4017, %v4013
  %v4019 = vmul.f32 1.0, %v4018
  %v4020 = vmul.f32 %v3940, %v3974
  %v4021 = vmul.f32 %v3941, %v3989
  %v4022 = vmul.f32 %v3942, %v4004
  %v4023 = vmul.f32 %v3943, %v4019
  %4024 = vst [vmem:[%s2] sm:$0xff] %v4020
  %4025 = vst [vmem:[%s2 + $0x8] sm:$0xff] %v4021
  %4026 = vst [vmem:[%s2 + $0x10] sm:$0xff] %v4022
  %4027 = vst [vmem:[%s2 + $0x18] sm:$0xff] %v4023
  // Predicated region
  $region10: #{_mea_forward_jit.1} parent=0 // pred_check
    _
  $region11: #{_mea_forward_jit.1} parent=0 // pred_check_branch
    %4029 = sbr.rel (0) target = $region13
  $region12: #{_mea_forward_jit.1} parent=0 // pred_region
    _
  $region13: #{_mea_forward_jit.1} parent=0 // pred_fallthru
    _
  // Predicated region
  $region14: #{_mea_forward_jit.1} parent=0 // pred_check
    _
  $region15: #{_mea_forward_jit.1} parent=0 // pred_check_branch
    %4031 = sbr.rel (0) target = $region17
  $region16: #{_mea_forward_jit.1} parent=0 // pred_region
    _
  $region17: #{_mea_forward_jit.1} parent=0 // pred_fallthru
    _

</llo_original>
